<compile_context>
chip_gen: v5e
topology: v5e:2x2
jax: 0.10.0
libtpu: 0.0.40
codegen_flags: <defaults>
</compile_context>

<pallas_src>
import functools

import jax
import jax.numpy as jnp
import numpy as np
from jax.experimental import pallas as pl
from jax.experimental.pallas import tpu as pltpu

EMB = 50      # GLoVe 50d
HID = 50      # LSTM hidden size (per the module)
HP = 128      # hidden padded so each gate is one full 128-lane block
SUB = 8       # sublane granularity; batch is padded to a multiple of this


def _round_up(x, m):
    return (x + m - 1) // m * m


# ----------------------------- Pallas kernel --------------------------------

def _lstm_nonlin(gates, c):
    """Apply LSTM gate nonlinearities (PyTorch gate order i,f,g,o; gate k lives
    in lanes [k*HP, k*HP+HID)).  All math in f32."""
    i_g = jax.nn.sigmoid(gates[:, 0 * HP:1 * HP])
    f_g = jax.nn.sigmoid(gates[:, 1 * HP:2 * HP])
    g_g = jnp.tanh(gates[:, 2 * HP:3 * HP])
    o_g = jax.nn.sigmoid(gates[:, 3 * HP:4 * HP])
    c = f_g * c + i_g * g_g
    h = o_g * jnp.tanh(c)
    return h, c


def ranknet_kernel(idsq_ref, idsd_ref,
                   projq_ref, projd_ref,
                   whh_hbm_ref,
                   wlin_q_ref, wlin_d_ref, blin_ref,
                   out_ref,
                   gq_scr, gd_scr, whh_vmem, whh_sem,
                   *, bp, tq, td, vp):
    # Kick off the recurrence-weight DMA (HBM -> VMEM) immediately so it
    # overlaps with the prologue one-hot matmuls below.
    whh_cp = pltpu.make_async_copy(whh_hbm_ref, whh_vmem, whh_sem)
    whh_cp.start()

    def gate_preacts(ids_ref, proj_ref):
        # Fused embedding lookup + input projection: the wrapper already
        # multiplied the GLoVe table by W_ih^T and folded the biases, so one
        # bf16 one-hot matmul yields all timesteps' gate pre-activations.
        n = ids_ref.shape[0]                                       # T * bp
        ids = ids_ref[...]                                         # [n, 1] int32
        iota = jax.lax.broadcasted_iota(jnp.int32, (n, vp), 1)
        onehot = (ids == iota).astype(jnp.bfloat16)                # [n, vp]
        return jnp.dot(onehot, proj_ref[...],
                       preferred_element_type=jnp.float32)         # [n, 4*HP] f32

    gq_scr[...] = gate_preacts(idsq_ref, projq_ref)
    gd_scr[...] = gate_preacts(idsd_ref, projd_ref)

    # Weights must be resident before the serial chain starts.
    whh_cp.wait()

    zeros = jnp.zeros((bp, HP), jnp.float32)
    hq, cq, accq = zeros, zeros, zeros
    hd, cd, accd = zeros, zeros, zeros

    t_min = min(tq, td)

    # --- Fused steps while both streams are active -------------------------
    # One [2*bp, HP] @ [HP, 8*HP] matmul per step (query weights in lanes
    # [0, 4*HP), doc weights in lanes [4*HP, 8*HP)).  h is cast to bf16 only
    # at the MXU boundary; the c/h state stays f32.
    for t in range(t_min):
        h_both = jnp.concatenate([hq, hd], axis=0).astype(jnp.bfloat16)   # [2bp, HP]
        r = jnp.dot(h_both, whh_vmem[...],
                    preferred_element_type=jnp.float32)                   # [2bp, 8*HP]
        gates_q = gq_scr[t * bp:(t + 1) * bp, :] + r[:bp, 0:4 * HP]
        gates_d = gd_scr[t * bp:(t + 1) * bp, :] + r[bp:, 4 * HP:8 * HP]
        hq, cq = _lstm_nonlin(gates_q, cq)
        hd, cd = _lstm_nonlin(gates_d, cd)
        accq = accq + hq
        accd = accd + hd

    # --- Tail: the longer stream continues alone (statically resolved) -----
    if tq > td:
        for t in range(t_min, tq):
            r = jnp.dot(hq.astype(jnp.bfloat16), whh_vmem[:, 0:4 * HP],
                        preferred_element_type=jnp.float32)
            hq, cq = _lstm_nonlin(gq_scr[t * bp:(t + 1) * bp, :] + r, cq)
            accq = accq + hq
    elif td > tq:
        for t in range(t_min, td):
            r = jnp.dot(hd.astype(jnp.bfloat16), whh_vmem[:, 4 * HP:8 * HP],
                        preferred_element_type=jnp.float32)
            hd, cd = _lstm_nonlin(gd_scr[t * bp:(t + 1) * bp, :] + r, cd)
            accd = accd + hd

    # --- Head ----------------------------------------------------------------
    # No concat, no N=1 matmul: elementwise multiply with the split, zero-padded
    # linear weights (1/Tq and 1/Td already folded in) and reduce over lanes.
    out_ref[...] = (jnp.sum(accq * wlin_q_ref[...], axis=-1, keepdims=True)
                    + jnp.sum(accd * wlin_d_ref[...], axis=-1, keepdims=True)
                    + blin_ref[...])                               # [bp, 1]


# --------------------------- glue / weight prep ------------------------------

def _pad_gate_cols(w):
    """[rows, 4*HID] -> [rows, 4*HP]; gate k moved to lanes [k*HP, k*HP+HID)."""
    out = jnp.zeros((w.shape[0], 4 * HP), jnp.float32)
    for k in range(4):
        out = out.at[:, k * HP:k * HP + HID].set(w[:, k * HID:(k + 1) * HID])
    return out


def _prep_ids(ids, b_pad):
    """[B, T] int32 -> time-major [T*b_pad, 1]; padded batch rows use token 0
    (padding_idx, zero embedding) and are discarded on output."""
    B, T = ids.shape
    p = jnp.zeros((b_pad, T), jnp.int32).at[:B].set(ids)
    return p.T.reshape(T * b_pad, 1)


def ranknet_pallas(query_ids, doc_ids, embed_table, params):
    B, Tq = query_ids.shape
    _, Td = doc_ids.shape
    bp = _round_up(max(B, 1), SUB)
    V = embed_table.shape[0]
    vp = _round_up(V, 128)     # lane-align the one-hot contraction dim

    (wq_ih, wq_hh, bq_ih, bq_hh,
     wd_ih, wd_hh, bd_ih, bd_hh,
     w_lin, b_lin) = params

    table_f32 = embed_table.astype(jnp.float32)

    def prep_proj(w_ih, b_ih, b_hh):
        # Fused embedding+projection table: GLoVe @ W_ih^T + (b_ih + b_hh).
        proj = table_f32 @ w_ih.T.astype(jnp.float32) \
            + (b_ih + b_hh).astype(jnp.float32)                    # [V, 4*HID]
        proj = _pad_gate_cols(proj)                                # [V, 4*HP]
        proj = jnp.zeros((vp, 4 * HP), jnp.float32).at[:V].set(proj)
        return proj.astype(jnp.bfloat16)                           # bf16 MXU operand

    projq = prep_proj(wq_ih, bq_ih, bq_hh)
    projd = prep_proj(wd_ih, bd_ih, bd_hh)

    def prep_whh(w_hh):
        w = jnp.zeros((HP, 4 * HP), jnp.float32).at[:HID].set(
            _pad_gate_cols(w_hh.T.astype(jnp.float32)))            # [HP, 4*HP]
        return w

    # Fused recurrence weights: query gates in lanes [0, 4HP), doc in [4HP, 8HP).
    whh_cat = jnp.concatenate([prep_whh(wq_hh), prep_whh(wd_hh)],
                              axis=1).astype(jnp.bfloat16)         # [HP, 8*HP] bf16

    # Head weights: split per stream, zero-padded to HP lanes, mean (1/T) folded in.
    wlin_q = jnp.zeros((1, HP), jnp.float32).at[:, :HID].set(
        w_lin[:, :HID].astype(jnp.float32) / float(Tq))
    wlin_d = jnp.zeros((1, HP), jnp.float32).at[:, :HID].set(
        w_lin[:, HID:2 * HID].astype(jnp.float32) / float(Td))
    blin = b_lin.reshape(1, 1).astype(jnp.float32)

    idsq = _prep_ids(query_ids, bp)
    idsd = _prep_ids(doc_ids, bp)

    kernel = functools.partial(ranknet_kernel, bp=bp, tq=Tq, td=Td, vp=vp)
    vmem = pl.BlockSpec(memory_space=pltpu.MemorySpace.VMEM)
    hbm = pl.BlockSpec(memory_space=pl.ANY)   # recurrence weights: manual DMA

    out_pad = pl.pallas_call(
        kernel,
        out_shape=jax.ShapeDtypeStruct((bp, 1), jnp.float32),
        in_specs=[vmem, vmem,          # idsq, idsd
                  vmem, vmem,          # projq, projd
                  hbm,                 # whh_cat (async-copied inside)
                  vmem, vmem, vmem],   # wlin_q, wlin_d, blin
        out_specs=vmem,
        scratch_shapes=[
            pltpu.VMEM((Tq * bp, 4 * HP), jnp.float32),   # hoisted query gate pre-acts
            pltpu.VMEM((Td * bp, 4 * HP), jnp.float32),   # hoisted doc   gate pre-acts
            pltpu.VMEM((HP, 8 * HP), jnp.bfloat16),       # landing buffer for whh_cat
            pltpu.SemaphoreType.DMA,                      # whh DMA completion
        ],
    )(idsq, idsd, projq, projd, whh_cat, wlin_q, wlin_d, blin)

    return out_pad[:B]


def ranknet_forward(query_ids, doc_ids, embed_table, params):
    return ranknet_pallas(query_ids, doc_ids, embed_table, params)


# --------------------------- parameters / reference --------------------------

def init_params(key, vocab_size):
    ks = jax.random.split(key, 11)

    embed_table = jax.random.normal(ks[0], (vocab_size, EMB), jnp.float32) * 0.1
    embed_table = embed_table.at[0].set(0.0)   # padding_idx = 0 (frozen zeros)

    def lstm_params(k):
        k1, k2, k3, k4 = jax.random.split(k, 4)
        w_ih = jax.random.normal(k1, (4 * HID, EMB), jnp.float32) * 0.1
        w_hh = jax.random.normal(k2, (4 * HID, HID), jnp.float32) * 0.1
        b_ih = jax.random.normal(k3, (4 * HID,), jnp.float32) * 0.1
        b_hh = jax.random.normal(k4, (4 * HID,), jnp.float32) * 0.1
        return w_ih, w_hh, b_ih, b_hh

    wq_ih, wq_hh, bq_ih, bq_hh = lstm_params(ks[1])
    wd_ih, wd_hh, bd_ih, bd_hh = lstm_params(ks[2])

    w_lin = jax.random.normal(ks[3], (1, 2 * HID), jnp.float32) * 0.1
    b_lin = jax.random.normal(ks[4], (1,), jnp.float32) * 0.1

    params = (wq_ih, wq_hh, bq_ih, bq_hh,
              wd_ih, wd_hh, bd_ih, bd_hh,
              w_lin, b_lin)
    return embed_table, params


def ranknet_reference(query_ids, doc_ids, embed_table, params):
    (wq_ih, wq_hh, bq_ih, bq_hh,
     wd_ih, wd_hh, bd_ih, bd_hh,
     w_lin, b_lin) = params

    def lstm_mean_ref(x, w_ih, w_hh, b_ih, b_hh):
        B, T, _ = x.shape
        h = jnp.zeros((B, HID), jnp.float32)
        c = jnp.zeros((B, HID), jnp.float32)
        acc = jnp.zeros((B, HID), jnp.float32)
        for t in range(T):
            g = x[:, t, :] @ w_ih.T + h @ w_hh.T + b_ih + b_hh
            i_g = jax.nn.sigmoid(g[:, 0 * HID:1 * HID])
            f_g = jax.nn.sigmoid(g[:, 1 * HID:2 * HID])
            g_g = jnp.tanh(g[:, 2 * HID:3 * HID])
            o_g = jax.nn.sigmoid(g[:, 3 * HID:4 * HID])
            c = f_g * c + i_g * g_g
            h = o_g * jnp.tanh(c)
            acc = acc + h
        return acc / float(T)

    xq = jnp.take(embed_table, query_ids, axis=0)
    xd = jnp.take(embed_table, doc_ids, axis=0)
    q = lstm_mean_ref(xq, wq_ih, wq_hh, bq_ih, bq_hh)
    d = lstm_mean_ref(xd, wd_ih, wd_hh, bd_ih, bd_hh)
    qd = jnp.concatenate([q, d], axis=1)
    return qd @ w_lin.T + b_lin


# --------------------------------- main ---------------------------------------

if __name__ == "__main__":
    key = jax.random.PRNGKey(0)
    k_emb, k_q, k_d = jax.random.split(key, 3)

    VOCAB = 100
    B, TQ, TD = 2, 8, 12

    embed_table, params = init_params(k_emb, VOCAB)
    query_ids = jax.random.randint(k_q, (B, TQ), 1, VOCAB, dtype=jnp.int32)
    doc_ids = jax.random.randint(k_d, (B, TD), 1, VOCAB, dtype=jnp.int32)

    out = ranknet_forward(query_ids, doc_ids, embed_table, params)
    out = jax.block_until_ready(out)

    ref = ranknet_reference(query_ids, doc_ids, embed_table, params)
    # bf16 MXU operands on an 8-12 step recurrent chain: relaxed tolerance
    # (state and accumulation stay f32, so errors remain ~1e-3 on ~0.1 scores).
    np.testing.assert_allclose(np.asarray(out), np.asarray(ref),
                               rtol=2e-2, atol=1.5e-2)
    assert out.shape == (B, 1)

    print("KERNEL_OK")
</pallas_src>

<mosaic_0001>
module attributes {stable_mosaic.version = 11 : i64} {
  func.func @ranknet_kernel(%arg0: memref<64x1xi32, #tpu.memory_space<vmem>>, %arg1: memref<96x1xi32, #tpu.memory_space<vmem>>, %arg2: memref<128x512xbf16, #tpu.memory_space<vmem>>, %arg3: memref<128x512xbf16, #tpu.memory_space<vmem>>, %arg4: memref<128x1024xbf16, #tpu.memory_space<any>>, %arg5: memref<1x128xf32, #tpu.memory_space<vmem>>, %arg6: memref<1x128xf32, #tpu.memory_space<vmem>>, %arg7: memref<1x1xf32, #tpu.memory_space<vmem>>, %arg8: memref<8x1xf32, #tpu.memory_space<vmem>>, %arg9: memref<64x512xf32, #tpu.memory_space<vmem>>, %arg10: memref<96x512xf32, #tpu.memory_space<vmem>>, %arg11: memref<128x1024xbf16, #tpu.memory_space<vmem>>, %arg12: memref<!tpu.dma_semaphore, #tpu.memory_space<semaphore_mem>>) attributes {dimension_semantics = [], scalar_prefetch = 0 : i64, scratch_operands = 4 : i64, tpu.core_type = #tpu.core_type<tc>} {
    tpu.enqueue_dma source(%arg4 : memref<128x1024xbf16, #tpu.memory_space<any>>) target(%arg11 : memref<128x1024xbf16, #tpu.memory_space<vmem>>) target_semaphore(%arg12 : memref<!tpu.dma_semaphore, #tpu.memory_space<semaphore_mem>>)
    %c0 = arith.constant 0 : index
    %c0_0 = arith.constant 0 : index
    %0 = vector.load %arg0[%c0, %c0_0] : memref<64x1xi32, #tpu.memory_space<vmem>>, vector<64x1xi32>
    %1 = tpu.iota {dimensions = array<i32: 1>} : vector<64x128xi32>
    %2 = vector.broadcast %0 : vector<64x1xi32> to vector<64x128xi32>
    %3 = arith.cmpi eq, %2, %1 : vector<64x128xi32>
    %4 = arith.extui %3 : vector<64x128xi1> to vector<64x128xi32>
    %5 = arith.sitofp %4 : vector<64x128xi32> to vector<64x128xf32>
    %6 = arith.truncf %5 : vector<64x128xf32> to vector<64x128xbf16>
    %c0_1 = arith.constant 0 : index
    %c0_2 = arith.constant 0 : index
    %7 = vector.load %arg2[%c0_1, %c0_2] : memref<128x512xbf16, #tpu.memory_space<vmem>>, vector<128x512xbf16>
    %cst = arith.constant dense<0.000000e+00> : vector<64x512xf32>
    %8 = tpu.matmul %6, %7, %cst {dimension_numbers = #tpu.dot_dimension_numbers<[1], [0], [0], [1], [0, 0, 1, 1], [], []>} : vector<64x128xbf16>, vector<128x512xbf16>, vector<64x512xf32> -> vector<64x512xf32>
    %c0_3 = arith.constant 0 : index
    %c0_4 = arith.constant 0 : index
    %9 = vector.load %arg9[%c0_3, %c0_4] : memref<64x512xf32, #tpu.memory_space<vmem>>, vector<64x512xf32>
    tpu.vector_store %arg9[%c0_3, %c0_4], %8 {strides = array<i32>} : memref<64x512xf32, #tpu.memory_space<vmem>>, vector<64x512xf32>,
    %c0_5 = arith.constant 0 : index
    %c0_6 = arith.constant 0 : index
    %10 = vector.load %arg1[%c0_5, %c0_6] : memref<96x1xi32, #tpu.memory_space<vmem>>, vector<96x1xi32>
    %11 = tpu.iota {dimensions = array<i32: 1>} : vector<96x128xi32>
    %12 = vector.broadcast %10 : vector<96x1xi32> to vector<96x128xi32>
    %13 = arith.cmpi eq, %12, %11 : vector<96x128xi32>
    %14 = arith.extui %13 : vector<96x128xi1> to vector<96x128xi32>
    %15 = arith.sitofp %14 : vector<96x128xi32> to vector<96x128xf32>
    %16 = arith.truncf %15 : vector<96x128xf32> to vector<96x128xbf16>
    %c0_7 = arith.constant 0 : index
    %c0_8 = arith.constant 0 : index
    %17 = vector.load %arg3[%c0_7, %c0_8] : memref<128x512xbf16, #tpu.memory_space<vmem>>, vector<128x512xbf16>
    %cst_9 = arith.constant dense<0.000000e+00> : vector<96x512xf32>
    %18 = tpu.matmul %16, %17, %cst_9 {dimension_numbers = #tpu.dot_dimension_numbers<[1], [0], [0], [1], [0, 0, 1, 1], [], []>} : vector<96x128xbf16>, vector<128x512xbf16>, vector<96x512xf32> -> vector<96x512xf32>
    %c0_10 = arith.constant 0 : index
    %c0_11 = arith.constant 0 : index
    %19 = vector.load %arg10[%c0_10, %c0_11] : memref<96x512xf32, #tpu.memory_space<vmem>>, vector<96x512xf32>
    tpu.vector_store %arg10[%c0_10, %c0_11], %18 {strides = array<i32>} : memref<96x512xf32, #tpu.memory_space<vmem>>, vector<96x512xf32>,
    tpu.wait_dma2 semaphore(%arg12 : memref<!tpu.dma_semaphore, #tpu.memory_space<semaphore_mem>>) src(%arg4 : memref<128x1024xbf16, #tpu.memory_space<any>>) dst(%arg11 : memref<128x1024xbf16, #tpu.memory_space<vmem>>)
    %cst_12 = arith.constant 0.000000e+00 : f32
    %20 = vector.broadcast %cst_12 : f32 to vector<8x128xf32>
    %21 = tpu.concatenate %20, %20 in 0 : vector<8x128xf32>, vector<8x128xf32> -> vector<16x128xf32>
    %22 = arith.truncf %21 : vector<16x128xf32> to vector<16x128xbf16>
    %c0_13 = arith.constant 0 : index
    %c0_14 = arith.constant 0 : index
    %23 = vector.load %arg11[%c0_13, %c0_14] : memref<128x1024xbf16, #tpu.memory_space<vmem>>, vector<128x1024xbf16>
    %cst_15 = arith.constant dense<0.000000e+00> : vector<16x1024xf32>
    %24 = tpu.matmul %22, %23, %cst_15 {dimension_numbers = #tpu.dot_dimension_numbers<[1], [0], [0], [1], [0, 0, 1, 1], [], []>} : vector<16x128xbf16>, vector<128x1024xbf16>, vector<16x1024xf32> -> vector<16x1024xf32>
    %c0_16 = arith.constant 0 : index
    %c0_17 = arith.constant 0 : index
    %25 = vector.load %arg9[%c0_16, %c0_17] : memref<64x512xf32, #tpu.memory_space<vmem>>, vector<8x512xf32>
    %26 = vector.extract_strided_slice %24 {offsets = [0, 0], sizes = [8, 512], strides = [1, 1]} : vector<16x1024xf32> to vector<8x512xf32>
    %27 = arith.addf %25, %26 : vector<8x512xf32>
    %c0_18 = arith.constant 0 : index
    %c0_19 = arith.constant 0 : index
    %28 = vector.load %arg10[%c0_18, %c0_19] : memref<96x512xf32, #tpu.memory_space<vmem>>, vector<8x512xf32>
    %29 = vector.extract_strided_slice %24 {offsets = [8, 512], sizes = [8, 512], strides = [1, 1]} : vector<16x1024xf32> to vector<8x512xf32>
    %30 = arith.addf %28, %29 : vector<8x512xf32>
    %31 = vector.extract_strided_slice %27 {offsets = [0, 0], sizes = [8, 128], strides = [1, 1]} : vector<8x512xf32> to vector<8x128xf32>
    %32 = arith.negf %31 : vector<8x128xf32>
    %33 = math.exp %32 : vector<8x128xf32>
    %cst_20 = arith.constant 1.000000e+00 : f32
    %34 = vector.broadcast %cst_20 : f32 to vector<8x128xf32>
    %35 = arith.addf %34, %33 : vector<8x128xf32>
    %36 = arith.divf %34, %35 : vector<8x128xf32>
    %37 = vector.extract_strided_slice %27 {offsets = [0, 128], sizes = [8, 128], strides = [1, 1]} : vector<8x512xf32> to vector<8x128xf32>
    %38 = arith.negf %37 : vector<8x128xf32>
    %39 = math.exp %38 : vector<8x128xf32>
    %cst_21 = arith.constant 1.000000e+00 : f32
    %40 = vector.broadcast %cst_21 : f32 to vector<8x128xf32>
    %41 = arith.addf %40, %39 : vector<8x128xf32>
    %42 = arith.divf %40, %41 : vector<8x128xf32>
    %43 = vector.extract_strided_slice %27 {offsets = [0, 256], sizes = [8, 128], strides = [1, 1]} : vector<8x512xf32> to vector<8x128xf32>
    %44 = math.tanh %43 : vector<8x128xf32>
    %45 = vector.extract_strided_slice %27 {offsets = [0, 384], sizes = [8, 128], strides = [1, 1]} : vector<8x512xf32> to vector<8x128xf32>
    %46 = arith.negf %45 : vector<8x128xf32>
    %47 = math.exp %46 : vector<8x128xf32>
    %cst_22 = arith.constant 1.000000e+00 : f32
    %48 = vector.broadcast %cst_22 : f32 to vector<8x128xf32>
    %49 = arith.addf %48, %47 : vector<8x128xf32>
    %50 = arith.divf %48, %49 : vector<8x128xf32>
    %51 = arith.mulf %42, %20 : vector<8x128xf32>
    %52 = arith.mulf %36, %44 : vector<8x128xf32>
    %53 = arith.addf %51, %52 : vector<8x128xf32>
    %54 = math.tanh %53 : vector<8x128xf32>
    %55 = arith.mulf %50, %54 : vector<8x128xf32>
    %56 = vector.extract_strided_slice %30 {offsets = [0, 0], sizes = [8, 128], strides = [1, 1]} : vector<8x512xf32> to vector<8x128xf32>
    %57 = arith.negf %56 : vector<8x128xf32>
    %58 = math.exp %57 : vector<8x128xf32>
    %cst_23 = arith.constant 1.000000e+00 : f32
    %59 = vector.broadcast %cst_23 : f32 to vector<8x128xf32>
    %60 = arith.addf %59, %58 : vector<8x128xf32>
    %61 = arith.divf %59, %60 : vector<8x128xf32>
    %62 = vector.extract_strided_slice %30 {offsets = [0, 128], sizes = [8, 128], strides = [1, 1]} : vector<8x512xf32> to vector<8x128xf32>
    %63 = arith.negf %62 : vector<8x128xf32>
    %64 = math.exp %63 : vector<8x128xf32>
    %cst_24 = arith.constant 1.000000e+00 : f32
    %65 = vector.broadcast %cst_24 : f32 to vector<8x128xf32>
    %66 = arith.addf %65, %64 : vector<8x128xf32>
    %67 = arith.divf %65, %66 : vector<8x128xf32>
    %68 = vector.extract_strided_slice %30 {offsets = [0, 256], sizes = [8, 128], strides = [1, 1]} : vector<8x512xf32> to vector<8x128xf32>
    %69 = math.tanh %68 : vector<8x128xf32>
    %70 = vector.extract_strided_slice %30 {offsets = [0, 384], sizes = [8, 128], strides = [1, 1]} : vector<8x512xf32> to vector<8x128xf32>
    %71 = arith.negf %70 : vector<8x128xf32>
    %72 = math.exp %71 : vector<8x128xf32>
    %cst_25 = arith.constant 1.000000e+00 : f32
    %73 = vector.broadcast %cst_25 : f32 to vector<8x128xf32>
    %74 = arith.addf %73, %72 : vector<8x128xf32>
    %75 = arith.divf %73, %74 : vector<8x128xf32>
    %76 = arith.mulf %67, %20 : vector<8x128xf32>
    %77 = arith.mulf %61, %69 : vector<8x128xf32>
    %78 = arith.addf %76, %77 : vector<8x128xf32>
    %79 = math.tanh %78 : vector<8x128xf32>
    %80 = arith.mulf %75, %79 : vector<8x128xf32>
    %81 = arith.addf %20, %55 : vector<8x128xf32>
    %82 = arith.addf %20, %80 : vector<8x128xf32>
    %83 = tpu.concatenate %55, %80 in 0 : vector<8x128xf32>, vector<8x128xf32> -> vector<16x128xf32>
    %84 = arith.truncf %83 : vector<16x128xf32> to vector<16x128xbf16>
    %c0_26 = arith.constant 0 : index
    %c0_27 = arith.constant 0 : index
    %85 = vector.load %arg11[%c0_26, %c0_27] : memref<128x1024xbf16, #tpu.memory_space<vmem>>, vector<128x1024xbf16>
    %cst_28 = arith.constant dense<0.000000e+00> : vector<16x1024xf32>
    %86 = tpu.matmul %84, %85, %cst_28 {dimension_numbers = #tpu.dot_dimension_numbers<[1], [0], [0], [1], [0, 0, 1, 1], [], []>} : vector<16x128xbf16>, vector<128x1024xbf16>, vector<16x1024xf32> -> vector<16x1024xf32>
    %c8 = arith.constant 8 : index
    %c0_29 = arith.constant 0 : index
    %87 = vector.load %arg9[%c8, %c0_29] : memref<64x512xf32, #tpu.memory_space<vmem>>, vector<8x512xf32>
    %88 = vector.extract_strided_slice %86 {offsets = [0, 0], sizes = [8, 512], strides = [1, 1]} : vector<16x1024xf32> to vector<8x512xf32>
    %89 = arith.addf %87, %88 : vector<8x512xf32>
    %c8_30 = arith.constant 8 : index
    %c0_31 = arith.constant 0 : index
    %90 = vector.load %arg10[%c8_30, %c0_31] : memref<96x512xf32, #tpu.memory_space<vmem>>, vector<8x512xf32>
    %91 = vector.extract_strided_slice %86 {offsets = [8, 512], sizes = [8, 512], strides = [1, 1]} : vector<16x1024xf32> to vector<8x512xf32>
    %92 = arith.addf %90, %91 : vector<8x512xf32>
    %93 = vector.extract_strided_slice %89 {offsets = [0, 0], sizes = [8, 128], strides = [1, 1]} : vector<8x512xf32> to vector<8x128xf32>
    %94 = arith.negf %93 : vector<8x128xf32>
    %95 = math.exp %94 : vector<8x128xf32>
    %cst_32 = arith.constant 1.000000e+00 : f32
    %96 = vector.broadcast %cst_32 : f32 to vector<8x128xf32>
    %97 = arith.addf %96, %95 : vector<8x128xf32>
    %98 = arith.divf %96, %97 : vector<8x128xf32>
    %99 = vector.extract_strided_slice %89 {offsets = [0, 128], sizes = [8, 128], strides = [1, 1]} : vector<8x512xf32> to vector<8x128xf32>
    %100 = arith.negf %99 : vector<8x128xf32>
    %101 = math.exp %100 : vector<8x128xf32>
    %cst_33 = arith.constant 1.000000e+00 : f32
    %102 = vector.broadcast %cst_33 : f32 to vector<8x128xf32>
    %103 = arith.addf %102, %101 : vector<8x128xf32>
    %104 = arith.divf %102, %103 : vector<8x128xf32>
    %105 = vector.extract_strided_slice %89 {offsets = [0, 256], sizes = [8, 128], strides = [1, 1]} : vector<8x512xf32> to vector<8x128xf32>
    %106 = math.tanh %105 : vector<8x128xf32>
    %107 = vector.extract_strided_slice %89 {offsets = [0, 384], sizes = [8, 128], strides = [1, 1]} : vector<8x512xf32> to vector<8x128xf32>
    %108 = arith.negf %107 : vector<8x128xf32>
    %109 = math.exp %108 : vector<8x128xf32>
    %cst_34 = arith.constant 1.000000e+00 : f32
    %110 = vector.broadcast %cst_34 : f32 to vector<8x128xf32>
    %111 = arith.addf %110, %109 : vector<8x128xf32>
    %112 = arith.divf %110, %111 : vector<8x128xf32>
    %113 = arith.mulf %104, %53 : vector<8x128xf32>
    %114 = arith.mulf %98, %106 : vector<8x128xf32>
    %115 = arith.addf %113, %114 : vector<8x128xf32>
    %116 = math.tanh %115 : vector<8x128xf32>
    %117 = arith.mulf %112, %116 : vector<8x128xf32>
    %118 = vector.extract_strided_slice %92 {offsets = [0, 0], sizes = [8, 128], strides = [1, 1]} : vector<8x512xf32> to vector<8x128xf32>
    %119 = arith.negf %118 : vector<8x128xf32>
    %120 = math.exp %119 : vector<8x128xf32>
    %cst_35 = arith.constant 1.000000e+00 : f32
    %121 = vector.broadcast %cst_35 : f32 to vector<8x128xf32>
    %122 = arith.addf %121, %120 : vector<8x128xf32>
    %123 = arith.divf %121, %122 : vector<8x128xf32>
    %124 = vector.extract_strided_slice %92 {offsets = [0, 128], sizes = [8, 128], strides = [1, 1]} : vector<8x512xf32> to vector<8x128xf32>
    %125 = arith.negf %124 : vector<8x128xf32>
    %126 = math.exp %125 : vector<8x128xf32>
    %cst_36 = arith.constant 1.000000e+00 : f32
    %127 = vector.broadcast %cst_36 : f32 to vector<8x128xf32>
    %128 = arith.addf %127, %126 : vector<8x128xf32>
    %129 = arith.divf %127, %128 : vector<8x128xf32>
    %130 = vector.extract_strided_slice %92 {offsets = [0, 256], sizes = [8, 128], strides = [1, 1]} : vector<8x512xf32> to vector<8x128xf32>
    %131 = math.tanh %130 : vector<8x128xf32>
    %132 = vector.extract_strided_slice %92 {offsets = [0, 384], sizes = [8, 128], strides = [1, 1]} : vector<8x512xf32> to vector<8x128xf32>
    %133 = arith.negf %132 : vector<8x128xf32>
    %134 = math.exp %133 : vector<8x128xf32>
    %cst_37 = arith.constant 1.000000e+00 : f32
    %135 = vector.broadcast %cst_37 : f32 to vector<8x128xf32>
    %136 = arith.addf %135, %134 : vector<8x128xf32>
    %137 = arith.divf %135, %136 : vector<8x128xf32>
    %138 = arith.mulf %129, %78 : vector<8x128xf32>
    %139 = arith.mulf %123, %131 : vector<8x128xf32>
    %140 = arith.addf %138, %139 : vector<8x128xf32>
    %141 = math.tanh %140 : vector<8x128xf32>
    %142 = arith.mulf %137, %141 : vector<8x128xf32>
    %143 = arith.addf %81, %117 : vector<8x128xf32>
    %144 = arith.addf %82, %142 : vector<8x128xf32>
    %145 = tpu.concatenate %117, %142 in 0 : vector<8x128xf32>, vector<8x128xf32> -> vector<16x128xf32>
    %146 = arith.truncf %145 : vector<16x128xf32> to vector<16x128xbf16>
    %c0_38 = arith.constant 0 : index
    %c0_39 = arith.constant 0 : index
    %147 = vector.load %arg11[%c0_38, %c0_39] : memref<128x1024xbf16, #tpu.memory_space<vmem>>, vector<128x1024xbf16>
    %cst_40 = arith.constant dense<0.000000e+00> : vector<16x1024xf32>
    %148 = tpu.matmul %146, %147, %cst_40 {dimension_numbers = #tpu.dot_dimension_numbers<[1], [0], [0], [1], [0, 0, 1, 1], [], []>} : vector<16x128xbf16>, vector<128x1024xbf16>, vector<16x1024xf32> -> vector<16x1024xf32>
    %c16 = arith.constant 16 : index
    %c0_41 = arith.constant 0 : index
    %149 = vector.load %arg9[%c16, %c0_41] : memref<64x512xf32, #tpu.memory_space<vmem>>, vector<8x512xf32>
    %150 = vector.extract_strided_slice %148 {offsets = [0, 0], sizes = [8, 512], strides = [1, 1]} : vector<16x1024xf32> to vector<8x512xf32>
    %151 = arith.addf %149, %150 : vector<8x512xf32>
    %c16_42 = arith.constant 16 : index
    %c0_43 = arith.constant 0 : index
    %152 = vector.load %arg10[%c16_42, %c0_43] : memref<96x512xf32, #tpu.memory_space<vmem>>, vector<8x512xf32>
    %153 = vector.extract_strided_slice %148 {offsets = [8, 512], sizes = [8, 512], strides = [1, 1]} : vector<16x1024xf32> to vector<8x512xf32>
    %154 = arith.addf %152, %153 : vector<8x512xf32>
    %155 = vector.extract_strided_slice %151 {offsets = [0, 0], sizes = [8, 128], strides = [1, 1]} : vector<8x512xf32> to vector<8x128xf32>
    %156 = arith.negf %155 : vector<8x128xf32>
    %157 = math.exp %156 : vector<8x128xf32>
    %cst_44 = arith.constant 1.000000e+00 : f32
    %158 = vector.broadcast %cst_44 : f32 to vector<8x128xf32>
    %159 = arith.addf %158, %157 : vector<8x128xf32>
    %160 = arith.divf %158, %159 : vector<8x128xf32>
    %161 = vector.extract_strided_slice %151 {offsets = [0, 128], sizes = [8, 128], strides = [1, 1]} : vector<8x512xf32> to vector<8x128xf32>
    %162 = arith.negf %161 : vector<8x128xf32>
    %163 = math.exp %162 : vector<8x128xf32>
    %cst_45 = arith.constant 1.000000e+00 : f32
    %164 = vector.broadcast %cst_45 : f32 to vector<8x128xf32>
    %165 = arith.addf %164, %163 : vector<8x128xf32>
    %166 = arith.divf %164, %165 : vector<8x128xf32>
    %167 = vector.extract_strided_slice %151 {offsets = [0, 256], sizes = [8, 128], strides = [1, 1]} : vector<8x512xf32> to vector<8x128xf32>
    %168 = math.tanh %167 : vector<8x128xf32>
    %169 = vector.extract_strided_slice %151 {offsets = [0, 384], sizes = [8, 128], strides = [1, 1]} : vector<8x512xf32> to vector<8x128xf32>
    %170 = arith.negf %169 : vector<8x128xf32>
    %171 = math.exp %170 : vector<8x128xf32>
    %cst_46 = arith.constant 1.000000e+00 : f32
    %172 = vector.broadcast %cst_46 : f32 to vector<8x128xf32>
    %173 = arith.addf %172, %171 : vector<8x128xf32>
    %174 = arith.divf %172, %173 : vector<8x128xf32>
    %175 = arith.mulf %166, %115 : vector<8x128xf32>
    %176 = arith.mulf %160, %168 : vector<8x128xf32>
    %177 = arith.addf %175, %176 : vector<8x128xf32>
    %178 = math.tanh %177 : vector<8x128xf32>
    %179 = arith.mulf %174, %178 : vector<8x128xf32>
    %180 = vector.extract_strided_slice %154 {offsets = [0, 0], sizes = [8, 128], strides = [1, 1]} : vector<8x512xf32> to vector<8x128xf32>
    %181 = arith.negf %180 : vector<8x128xf32>
    %182 = math.exp %181 : vector<8x128xf32>
    %cst_47 = arith.constant 1.000000e+00 : f32
    %183 = vector.broadcast %cst_47 : f32 to vector<8x128xf32>
    %184 = arith.addf %183, %182 : vector<8x128xf32>
    %185 = arith.divf %183, %184 : vector<8x128xf32>
    %186 = vector.extract_strided_slice %154 {offsets = [0, 128], sizes = [8, 128], strides = [1, 1]} : vector<8x512xf32> to vector<8x128xf32>
    %187 = arith.negf %186 : vector<8x128xf32>
    %188 = math.exp %187 : vector<8x128xf32>
    %cst_48 = arith.constant 1.000000e+00 : f32
    %189 = vector.broadcast %cst_48 : f32 to vector<8x128xf32>
    %190 = arith.addf %189, %188 : vector<8x128xf32>
    %191 = arith.divf %189, %190 : vector<8x128xf32>
    %192 = vector.extract_strided_slice %154 {offsets = [0, 256], sizes = [8, 128], strides = [1, 1]} : vector<8x512xf32> to vector<8x128xf32>
    %193 = math.tanh %192 : vector<8x128xf32>
    %194 = vector.extract_strided_slice %154 {offsets = [0, 384], sizes = [8, 128], strides = [1, 1]} : vector<8x512xf32> to vector<8x128xf32>
    %195 = arith.negf %194 : vector<8x128xf32>
    %196 = math.exp %195 : vector<8x128xf32>
    %cst_49 = arith.constant 1.000000e+00 : f32
    %197 = vector.broadcast %cst_49 : f32 to vector<8x128xf32>
    %198 = arith.addf %197, %196 : vector<8x128xf32>
    %199 = arith.divf %197, %198 : vector<8x128xf32>
    %200 = arith.mulf %191, %140 : vector<8x128xf32>
    %201 = arith.mulf %185, %193 : vector<8x128xf32>
    %202 = arith.addf %200, %201 : vector<8x128xf32>
    %203 = math.tanh %202 : vector<8x128xf32>
    %204 = arith.mulf %199, %203 : vector<8x128xf32>
    %205 = arith.addf %143, %179 : vector<8x128xf32>
    %206 = arith.addf %144, %204 : vector<8x128xf32>
    %207 = tpu.concatenate %179, %204 in 0 : vector<8x128xf32>, vector<8x128xf32> -> vector<16x128xf32>
    %208 = arith.truncf %207 : vector<16x128xf32> to vector<16x128xbf16>
    %c0_50 = arith.constant 0 : index
    %c0_51 = arith.constant 0 : index
    %209 = vector.load %arg11[%c0_50, %c0_51] : memref<128x1024xbf16, #tpu.memory_space<vmem>>, vector<128x1024xbf16>
    %cst_52 = arith.constant dense<0.000000e+00> : vector<16x1024xf32>
    %210 = tpu.matmul %208, %209, %cst_52 {dimension_numbers = #tpu.dot_dimension_numbers<[1], [0], [0], [1], [0, 0, 1, 1], [], []>} : vector<16x128xbf16>, vector<128x1024xbf16>, vector<16x1024xf32> -> vector<16x1024xf32>
    %c24 = arith.constant 24 : index
    %c0_53 = arith.constant 0 : index
    %211 = vector.load %arg9[%c24, %c0_53] : memref<64x512xf32, #tpu.memory_space<vmem>>, vector<8x512xf32>
    %212 = vector.extract_strided_slice %210 {offsets = [0, 0], sizes = [8, 512], strides = [1, 1]} : vector<16x1024xf32> to vector<8x512xf32>
    %213 = arith.addf %211, %212 : vector<8x512xf32>
    %c24_54 = arith.constant 24 : index
    %c0_55 = arith.constant 0 : index
    %214 = vector.load %arg10[%c24_54, %c0_55] : memref<96x512xf32, #tpu.memory_space<vmem>>, vector<8x512xf32>
    %215 = vector.extract_strided_slice %210 {offsets = [8, 512], sizes = [8, 512], strides = [1, 1]} : vector<16x1024xf32> to vector<8x512xf32>
    %216 = arith.addf %214, %215 : vector<8x512xf32>
    %217 = vector.extract_strided_slice %213 {offsets = [0, 0], sizes = [8, 128], strides = [1, 1]} : vector<8x512xf32> to vector<8x128xf32>
    %218 = arith.negf %217 : vector<8x128xf32>
    %219 = math.exp %218 : vector<8x128xf32>
    %cst_56 = arith.constant 1.000000e+00 : f32
    %220 = vector.broadcast %cst_56 : f32 to vector<8x128xf32>
    %221 = arith.addf %220, %219 : vector<8x128xf32>
    %222 = arith.divf %220, %221 : vector<8x128xf32>
    %223 = vector.extract_strided_slice %213 {offsets = [0, 128], sizes = [8, 128], strides = [1, 1]} : vector<8x512xf32> to vector<8x128xf32>
    %224 = arith.negf %223 : vector<8x128xf32>
    %225 = math.exp %224 : vector<8x128xf32>
    %cst_57 = arith.constant 1.000000e+00 : f32
    %226 = vector.broadcast %cst_57 : f32 to vector<8x128xf32>
    %227 = arith.addf %226, %225 : vector<8x128xf32>
    %228 = arith.divf %226, %227 : vector<8x128xf32>
    %229 = vector.extract_strided_slice %213 {offsets = [0, 256], sizes = [8, 128], strides = [1, 1]} : vector<8x512xf32> to vector<8x128xf32>
    %230 = math.tanh %229 : vector<8x128xf32>
    %231 = vector.extract_strided_slice %213 {offsets = [0, 384], sizes = [8, 128], strides = [1, 1]} : vector<8x512xf32> to vector<8x128xf32>
    %232 = arith.negf %231 : vector<8x128xf32>
    %233 = math.exp %232 : vector<8x128xf32>
    %cst_58 = arith.constant 1.000000e+00 : f32
    %234 = vector.broadcast %cst_58 : f32 to vector<8x128xf32>
    %235 = arith.addf %234, %233 : vector<8x128xf32>
    %236 = arith.divf %234, %235 : vector<8x128xf32>
    %237 = arith.mulf %228, %177 : vector<8x128xf32>
    %238 = arith.mulf %222, %230 : vector<8x128xf32>
    %239 = arith.addf %237, %238 : vector<8x128xf32>
    %240 = math.tanh %239 : vector<8x128xf32>
    %241 = arith.mulf %236, %240 : vector<8x128xf32>
    %242 = vector.extract_strided_slice %216 {offsets = [0, 0], sizes = [8, 128], strides = [1, 1]} : vector<8x512xf32> to vector<8x128xf32>
    %243 = arith.negf %242 : vector<8x128xf32>
    %244 = math.exp %243 : vector<8x128xf32>
    %cst_59 = arith.constant 1.000000e+00 : f32
    %245 = vector.broadcast %cst_59 : f32 to vector<8x128xf32>
    %246 = arith.addf %245, %244 : vector<8x128xf32>
    %247 = arith.divf %245, %246 : vector<8x128xf32>
    %248 = vector.extract_strided_slice %216 {offsets = [0, 128], sizes = [8, 128], strides = [1, 1]} : vector<8x512xf32> to vector<8x128xf32>
    %249 = arith.negf %248 : vector<8x128xf32>
    %250 = math.exp %249 : vector<8x128xf32>
    %cst_60 = arith.constant 1.000000e+00 : f32
    %251 = vector.broadcast %cst_60 : f32 to vector<8x128xf32>
    %252 = arith.addf %251, %250 : vector<8x128xf32>
    %253 = arith.divf %251, %252 : vector<8x128xf32>
    %254 = vector.extract_strided_slice %216 {offsets = [0, 256], sizes = [8, 128], strides = [1, 1]} : vector<8x512xf32> to vector<8x128xf32>
    %255 = math.tanh %254 : vector<8x128xf32>
    %256 = vector.extract_strided_slice %216 {offsets = [0, 384], sizes = [8, 128], strides = [1, 1]} : vector<8x512xf32> to vector<8x128xf32>
    %257 = arith.negf %256 : vector<8x128xf32>
    %258 = math.exp %257 : vector<8x128xf32>
    %cst_61 = arith.constant 1.000000e+00 : f32
    %259 = vector.broadcast %cst_61 : f32 to vector<8x128xf32>
    %260 = arith.addf %259, %258 : vector<8x128xf32>
    %261 = arith.divf %259, %260 : vector<8x128xf32>
    %262 = arith.mulf %253, %202 : vector<8x128xf32>
    %263 = arith.mulf %247, %255 : vector<8x128xf32>
    %264 = arith.addf %262, %263 : vector<8x128xf32>
    %265 = math.tanh %264 : vector<8x128xf32>
    %266 = arith.mulf %261, %265 : vector<8x128xf32>
    %267 = arith.addf %205, %241 : vector<8x128xf32>
    %268 = arith.addf %206, %266 : vector<8x128xf32>
    %269 = tpu.concatenate %241, %266 in 0 : vector<8x128xf32>, vector<8x128xf32> -> vector<16x128xf32>
    %270 = arith.truncf %269 : vector<16x128xf32> to vector<16x128xbf16>
    %c0_62 = arith.constant 0 : index
    %c0_63 = arith.constant 0 : index
    %271 = vector.load %arg11[%c0_62, %c0_63] : memref<128x1024xbf16, #tpu.memory_space<vmem>>, vector<128x1024xbf16>
    %cst_64 = arith.constant dense<0.000000e+00> : vector<16x1024xf32>
    %272 = tpu.matmul %270, %271, %cst_64 {dimension_numbers = #tpu.dot_dimension_numbers<[1], [0], [0], [1], [0, 0, 1, 1], [], []>} : vector<16x128xbf16>, vector<128x1024xbf16>, vector<16x1024xf32> -> vector<16x1024xf32>
    %c32 = arith.constant 32 : index
    %c0_65 = arith.constant 0 : index
    %273 = vector.load %arg9[%c32, %c0_65] : memref<64x512xf32, #tpu.memory_space<vmem>>, vector<8x512xf32>
    %274 = vector.extract_strided_slice %272 {offsets = [0, 0], sizes = [8, 512], strides = [1, 1]} : vector<16x1024xf32> to vector<8x512xf32>
    %275 = arith.addf %273, %274 : vector<8x512xf32>
    %c32_66 = arith.constant 32 : index
    %c0_67 = arith.constant 0 : index
    %276 = vector.load %arg10[%c32_66, %c0_67] : memref<96x512xf32, #tpu.memory_space<vmem>>, vector<8x512xf32>
    %277 = vector.extract_strided_slice %272 {offsets = [8, 512], sizes = [8, 512], strides = [1, 1]} : vector<16x1024xf32> to vector<8x512xf32>
    %278 = arith.addf %276, %277 : vector<8x512xf32>
    %279 = vector.extract_strided_slice %275 {offsets = [0, 0], sizes = [8, 128], strides = [1, 1]} : vector<8x512xf32> to vector<8x128xf32>
    %280 = arith.negf %279 : vector<8x128xf32>
    %281 = math.exp %280 : vector<8x128xf32>
    %cst_68 = arith.constant 1.000000e+00 : f32
    %282 = vector.broadcast %cst_68 : f32 to vector<8x128xf32>
    %283 = arith.addf %282, %281 : vector<8x128xf32>
    %284 = arith.divf %282, %283 : vector<8x128xf32>
    %285 = vector.extract_strided_slice %275 {offsets = [0, 128], sizes = [8, 128], strides = [1, 1]} : vector<8x512xf32> to vector<8x128xf32>
    %286 = arith.negf %285 : vector<8x128xf32>
    %287 = math.exp %286 : vector<8x128xf32>
    %cst_69 = arith.constant 1.000000e+00 : f32
    %288 = vector.broadcast %cst_69 : f32 to vector<8x128xf32>
    %289 = arith.addf %288, %287 : vector<8x128xf32>
    %290 = arith.divf %288, %289 : vector<8x128xf32>
    %291 = vector.extract_strided_slice %275 {offsets = [0, 256], sizes = [8, 128], strides = [1, 1]} : vector<8x512xf32> to vector<8x128xf32>
    %292 = math.tanh %291 : vector<8x128xf32>
    %293 = vector.extract_strided_slice %275 {offsets = [0, 384], sizes = [8, 128], strides = [1, 1]} : vector<8x512xf32> to vector<8x128xf32>
    %294 = arith.negf %293 : vector<8x128xf32>
    %295 = math.exp %294 : vector<8x128xf32>
    %cst_70 = arith.constant 1.000000e+00 : f32
    %296 = vector.broadcast %cst_70 : f32 to vector<8x128xf32>
    %297 = arith.addf %296, %295 : vector<8x128xf32>
    %298 = arith.divf %296, %297 : vector<8x128xf32>
    %299 = arith.mulf %290, %239 : vector<8x128xf32>
    %300 = arith.mulf %284, %292 : vector<8x128xf32>
    %301 = arith.addf %299, %300 : vector<8x128xf32>
    %302 = math.tanh %301 : vector<8x128xf32>
    %303 = arith.mulf %298, %302 : vector<8x128xf32>
    %304 = vector.extract_strided_slice %278 {offsets = [0, 0], sizes = [8, 128], strides = [1, 1]} : vector<8x512xf32> to vector<8x128xf32>
    %305 = arith.negf %304 : vector<8x128xf32>
    %306 = math.exp %305 : vector<8x128xf32>
    %cst_71 = arith.constant 1.000000e+00 : f32
    %307 = vector.broadcast %cst_71 : f32 to vector<8x128xf32>
    %308 = arith.addf %307, %306 : vector<8x128xf32>
    %309 = arith.divf %307, %308 : vector<8x128xf32>
    %310 = vector.extract_strided_slice %278 {offsets = [0, 128], sizes = [8, 128], strides = [1, 1]} : vector<8x512xf32> to vector<8x128xf32>
    %311 = arith.negf %310 : vector<8x128xf32>
    %312 = math.exp %311 : vector<8x128xf32>
    %cst_72 = arith.constant 1.000000e+00 : f32
    %313 = vector.broadcast %cst_72 : f32 to vector<8x128xf32>
    %314 = arith.addf %313, %312 : vector<8x128xf32>
    %315 = arith.divf %313, %314 : vector<8x128xf32>
    %316 = vector.extract_strided_slice %278 {offsets = [0, 256], sizes = [8, 128], strides = [1, 1]} : vector<8x512xf32> to vector<8x128xf32>
    %317 = math.tanh %316 : vector<8x128xf32>
    %318 = vector.extract_strided_slice %278 {offsets = [0, 384], sizes = [8, 128], strides = [1, 1]} : vector<8x512xf32> to vector<8x128xf32>
    %319 = arith.negf %318 : vector<8x128xf32>
    %320 = math.exp %319 : vector<8x128xf32>
    %cst_73 = arith.constant 1.000000e+00 : f32
    %321 = vector.broadcast %cst_73 : f32 to vector<8x128xf32>
    %322 = arith.addf %321, %320 : vector<8x128xf32>
    %323 = arith.divf %321, %322 : vector<8x128xf32>
    %324 = arith.mulf %315, %264 : vector<8x128xf32>
    %325 = arith.mulf %309, %317 : vector<8x128xf32>
    %326 = arith.addf %324, %325 : vector<8x128xf32>
    %327 = math.tanh %326 : vector<8x128xf32>
    %328 = arith.mulf %323, %327 : vector<8x128xf32>
    %329 = arith.addf %267, %303 : vector<8x128xf32>
    %330 = arith.addf %268, %328 : vector<8x128xf32>
    %331 = tpu.concatenate %303, %328 in 0 : vector<8x128xf32>, vector<8x128xf32> -> vector<16x128xf32>
    %332 = arith.truncf %331 : vector<16x128xf32> to vector<16x128xbf16>
    %c0_74 = arith.constant 0 : index
    %c0_75 = arith.constant 0 : index
    %333 = vector.load %arg11[%c0_74, %c0_75] : memref<128x1024xbf16, #tpu.memory_space<vmem>>, vector<128x1024xbf16>
    %cst_76 = arith.constant dense<0.000000e+00> : vector<16x1024xf32>
    %334 = tpu.matmul %332, %333, %cst_76 {dimension_numbers = #tpu.dot_dimension_numbers<[1], [0], [0], [1], [0, 0, 1, 1], [], []>} : vector<16x128xbf16>, vector<128x1024xbf16>, vector<16x1024xf32> -> vector<16x1024xf32>
    %c40 = arith.constant 40 : index
    %c0_77 = arith.constant 0 : index
    %335 = vector.load %arg9[%c40, %c0_77] : memref<64x512xf32, #tpu.memory_space<vmem>>, vector<8x512xf32>
    %336 = vector.extract_strided_slice %334 {offsets = [0, 0], sizes = [8, 512], strides = [1, 1]} : vector<16x1024xf32> to vector<8x512xf32>
    %337 = arith.addf %335, %336 : vector<8x512xf32>
    %c40_78 = arith.constant 40 : index
    %c0_79 = arith.constant 0 : index
    %338 = vector.load %arg10[%c40_78, %c0_79] : memref<96x512xf32, #tpu.memory_space<vmem>>, vector<8x512xf32>
    %339 = vector.extract_strided_slice %334 {offsets = [8, 512], sizes = [8, 512], strides = [1, 1]} : vector<16x1024xf32> to vector<8x512xf32>
    %340 = arith.addf %338, %339 : vector<8x512xf32>
    %341 = vector.extract_strided_slice %337 {offsets = [0, 0], sizes = [8, 128], strides = [1, 1]} : vector<8x512xf32> to vector<8x128xf32>
    %342 = arith.negf %341 : vector<8x128xf32>
    %343 = math.exp %342 : vector<8x128xf32>
    %cst_80 = arith.constant 1.000000e+00 : f32
    %344 = vector.broadcast %cst_80 : f32 to vector<8x128xf32>
    %345 = arith.addf %344, %343 : vector<8x128xf32>
    %346 = arith.divf %344, %345 : vector<8x128xf32>
    %347 = vector.extract_strided_slice %337 {offsets = [0, 128], sizes = [8, 128], strides = [1, 1]} : vector<8x512xf32> to vector<8x128xf32>
    %348 = arith.negf %347 : vector<8x128xf32>
    %349 = math.exp %348 : vector<8x128xf32>
    %cst_81 = arith.constant 1.000000e+00 : f32
    %350 = vector.broadcast %cst_81 : f32 to vector<8x128xf32>
    %351 = arith.addf %350, %349 : vector<8x128xf32>
    %352 = arith.divf %350, %351 : vector<8x128xf32>
    %353 = vector.extract_strided_slice %337 {offsets = [0, 256], sizes = [8, 128], strides = [1, 1]} : vector<8x512xf32> to vector<8x128xf32>
    %354 = math.tanh %353 : vector<8x128xf32>
    %355 = vector.extract_strided_slice %337 {offsets = [0, 384], sizes = [8, 128], strides = [1, 1]} : vector<8x512xf32> to vector<8x128xf32>
    %356 = arith.negf %355 : vector<8x128xf32>
    %357 = math.exp %356 : vector<8x128xf32>
    %cst_82 = arith.constant 1.000000e+00 : f32
    %358 = vector.broadcast %cst_82 : f32 to vector<8x128xf32>
    %359 = arith.addf %358, %357 : vector<8x128xf32>
    %360 = arith.divf %358, %359 : vector<8x128xf32>
    %361 = arith.mulf %352, %301 : vector<8x128xf32>
    %362 = arith.mulf %346, %354 : vector<8x128xf32>
    %363 = arith.addf %361, %362 : vector<8x128xf32>
    %364 = math.tanh %363 : vector<8x128xf32>
    %365 = arith.mulf %360, %364 : vector<8x128xf32>
    %366 = vector.extract_strided_slice %340 {offsets = [0, 0], sizes = [8, 128], strides = [1, 1]} : vector<8x512xf32> to vector<8x128xf32>
    %367 = arith.negf %366 : vector<8x128xf32>
    %368 = math.exp %367 : vector<8x128xf32>
    %cst_83 = arith.constant 1.000000e+00 : f32
    %369 = vector.broadcast %cst_83 : f32 to vector<8x128xf32>
    %370 = arith.addf %369, %368 : vector<8x128xf32>
    %371 = arith.divf %369, %370 : vector<8x128xf32>
    %372 = vector.extract_strided_slice %340 {offsets = [0, 128], sizes = [8, 128], strides = [1, 1]} : vector<8x512xf32> to vector<8x128xf32>
    %373 = arith.negf %372 : vector<8x128xf32>
    %374 = math.exp %373 : vector<8x128xf32>
    %cst_84 = arith.constant 1.000000e+00 : f32
    %375 = vector.broadcast %cst_84 : f32 to vector<8x128xf32>
    %376 = arith.addf %375, %374 : vector<8x128xf32>
    %377 = arith.divf %375, %376 : vector<8x128xf32>
    %378 = vector.extract_strided_slice %340 {offsets = [0, 256], sizes = [8, 128], strides = [1, 1]} : vector<8x512xf32> to vector<8x128xf32>
    %379 = math.tanh %378 : vector<8x128xf32>
    %380 = vector.extract_strided_slice %340 {offsets = [0, 384], sizes = [8, 128], strides = [1, 1]} : vector<8x512xf32> to vector<8x128xf32>
    %381 = arith.negf %380 : vector<8x128xf32>
    %382 = math.exp %381 : vector<8x128xf32>
    %cst_85 = arith.constant 1.000000e+00 : f32
    %383 = vector.broadcast %cst_85 : f32 to vector<8x128xf32>
    %384 = arith.addf %383, %382 : vector<8x128xf32>
    %385 = arith.divf %383, %384 : vector<8x128xf32>
    %386 = arith.mulf %377, %326 : vector<8x128xf32>
    %387 = arith.mulf %371, %379 : vector<8x128xf32>
    %388 = arith.addf %386, %387 : vector<8x128xf32>
    %389 = math.tanh %388 : vector<8x128xf32>
    %390 = arith.mulf %385, %389 : vector<8x128xf32>
    %391 = arith.addf %329, %365 : vector<8x128xf32>
    %392 = arith.addf %330, %390 : vector<8x128xf32>
    %393 = tpu.concatenate %365, %390 in 0 : vector<8x128xf32>, vector<8x128xf32> -> vector<16x128xf32>
    %394 = arith.truncf %393 : vector<16x128xf32> to vector<16x128xbf16>
    %c0_86 = arith.constant 0 : index
    %c0_87 = arith.constant 0 : index
    %395 = vector.load %arg11[%c0_86, %c0_87] : memref<128x1024xbf16, #tpu.memory_space<vmem>>, vector<128x1024xbf16>
    %cst_88 = arith.constant dense<0.000000e+00> : vector<16x1024xf32>
    %396 = tpu.matmul %394, %395, %cst_88 {dimension_numbers = #tpu.dot_dimension_numbers<[1], [0], [0], [1], [0, 0, 1, 1], [], []>} : vector<16x128xbf16>, vector<128x1024xbf16>, vector<16x1024xf32> -> vector<16x1024xf32>
    %c48 = arith.constant 48 : index
    %c0_89 = arith.constant 0 : index
    %397 = vector.load %arg9[%c48, %c0_89] : memref<64x512xf32, #tpu.memory_space<vmem>>, vector<8x512xf32>
    %398 = vector.extract_strided_slice %396 {offsets = [0, 0], sizes = [8, 512], strides = [1, 1]} : vector<16x1024xf32> to vector<8x512xf32>
    %399 = arith.addf %397, %398 : vector<8x512xf32>
    %c48_90 = arith.constant 48 : index
    %c0_91 = arith.constant 0 : index
    %400 = vector.load %arg10[%c48_90, %c0_91] : memref<96x512xf32, #tpu.memory_space<vmem>>, vector<8x512xf32>
    %401 = vector.extract_strided_slice %396 {offsets = [8, 512], sizes = [8, 512], strides = [1, 1]} : vector<16x1024xf32> to vector<8x512xf32>
    %402 = arith.addf %400, %401 : vector<8x512xf32>
    %403 = vector.extract_strided_slice %399 {offsets = [0, 0], sizes = [8, 128], strides = [1, 1]} : vector<8x512xf32> to vector<8x128xf32>
    %404 = arith.negf %403 : vector<8x128xf32>
    %405 = math.exp %404 : vector<8x128xf32>
    %cst_92 = arith.constant 1.000000e+00 : f32
    %406 = vector.broadcast %cst_92 : f32 to vector<8x128xf32>
    %407 = arith.addf %406, %405 : vector<8x128xf32>
    %408 = arith.divf %406, %407 : vector<8x128xf32>
    %409 = vector.extract_strided_slice %399 {offsets = [0, 128], sizes = [8, 128], strides = [1, 1]} : vector<8x512xf32> to vector<8x128xf32>
    %410 = arith.negf %409 : vector<8x128xf32>
    %411 = math.exp %410 : vector<8x128xf32>
    %cst_93 = arith.constant 1.000000e+00 : f32
    %412 = vector.broadcast %cst_93 : f32 to vector<8x128xf32>
    %413 = arith.addf %412, %411 : vector<8x128xf32>
    %414 = arith.divf %412, %413 : vector<8x128xf32>
    %415 = vector.extract_strided_slice %399 {offsets = [0, 256], sizes = [8, 128], strides = [1, 1]} : vector<8x512xf32> to vector<8x128xf32>
    %416 = math.tanh %415 : vector<8x128xf32>
    %417 = vector.extract_strided_slice %399 {offsets = [0, 384], sizes = [8, 128], strides = [1, 1]} : vector<8x512xf32> to vector<8x128xf32>
    %418 = arith.negf %417 : vector<8x128xf32>
    %419 = math.exp %418 : vector<8x128xf32>
    %cst_94 = arith.constant 1.000000e+00 : f32
    %420 = vector.broadcast %cst_94 : f32 to vector<8x128xf32>
    %421 = arith.addf %420, %419 : vector<8x128xf32>
    %422 = arith.divf %420, %421 : vector<8x128xf32>
    %423 = arith.mulf %414, %363 : vector<8x128xf32>
    %424 = arith.mulf %408, %416 : vector<8x128xf32>
    %425 = arith.addf %423, %424 : vector<8x128xf32>
    %426 = math.tanh %425 : vector<8x128xf32>
    %427 = arith.mulf %422, %426 : vector<8x128xf32>
    %428 = vector.extract_strided_slice %402 {offsets = [0, 0], sizes = [8, 128], strides = [1, 1]} : vector<8x512xf32> to vector<8x128xf32>
    %429 = arith.negf %428 : vector<8x128xf32>
    %430 = math.exp %429 : vector<8x128xf32>
    %cst_95 = arith.constant 1.000000e+00 : f32
    %431 = vector.broadcast %cst_95 : f32 to vector<8x128xf32>
    %432 = arith.addf %431, %430 : vector<8x128xf32>
    %433 = arith.divf %431, %432 : vector<8x128xf32>
    %434 = vector.extract_strided_slice %402 {offsets = [0, 128], sizes = [8, 128], strides = [1, 1]} : vector<8x512xf32> to vector<8x128xf32>
    %435 = arith.negf %434 : vector<8x128xf32>
    %436 = math.exp %435 : vector<8x128xf32>
    %cst_96 = arith.constant 1.000000e+00 : f32
    %437 = vector.broadcast %cst_96 : f32 to vector<8x128xf32>
    %438 = arith.addf %437, %436 : vector<8x128xf32>
    %439 = arith.divf %437, %438 : vector<8x128xf32>
    %440 = vector.extract_strided_slice %402 {offsets = [0, 256], sizes = [8, 128], strides = [1, 1]} : vector<8x512xf32> to vector<8x128xf32>
    %441 = math.tanh %440 : vector<8x128xf32>
    %442 = vector.extract_strided_slice %402 {offsets = [0, 384], sizes = [8, 128], strides = [1, 1]} : vector<8x512xf32> to vector<8x128xf32>
    %443 = arith.negf %442 : vector<8x128xf32>
    %444 = math.exp %443 : vector<8x128xf32>
    %cst_97 = arith.constant 1.000000e+00 : f32
    %445 = vector.broadcast %cst_97 : f32 to vector<8x128xf32>
    %446 = arith.addf %445, %444 : vector<8x128xf32>
    %447 = arith.divf %445, %446 : vector<8x128xf32>
    %448 = arith.mulf %439, %388 : vector<8x128xf32>
    %449 = arith.mulf %433, %441 : vector<8x128xf32>
    %450 = arith.addf %448, %449 : vector<8x128xf32>
    %451 = math.tanh %450 : vector<8x128xf32>
    %452 = arith.mulf %447, %451 : vector<8x128xf32>
    %453 = arith.addf %391, %427 : vector<8x128xf32>
    %454 = arith.addf %392, %452 : vector<8x128xf32>
    %455 = tpu.concatenate %427, %452 in 0 : vector<8x128xf32>, vector<8x128xf32> -> vector<16x128xf32>
    %456 = arith.truncf %455 : vector<16x128xf32> to vector<16x128xbf16>
    %c0_98 = arith.constant 0 : index
    %c0_99 = arith.constant 0 : index
    %457 = vector.load %arg11[%c0_98, %c0_99] : memref<128x1024xbf16, #tpu.memory_space<vmem>>, vector<128x1024xbf16>
    %cst_100 = arith.constant dense<0.000000e+00> : vector<16x1024xf32>
    %458 = tpu.matmul %456, %457, %cst_100 {dimension_numbers = #tpu.dot_dimension_numbers<[1], [0], [0], [1], [0, 0, 1, 1], [], []>} : vector<16x128xbf16>, vector<128x1024xbf16>, vector<16x1024xf32> -> vector<16x1024xf32>
    %c56 = arith.constant 56 : index
    %c0_101 = arith.constant 0 : index
    %459 = vector.load %arg9[%c56, %c0_101] : memref<64x512xf32, #tpu.memory_space<vmem>>, vector<8x512xf32>
    %460 = vector.extract_strided_slice %458 {offsets = [0, 0], sizes = [8, 512], strides = [1, 1]} : vector<16x1024xf32> to vector<8x512xf32>
    %461 = arith.addf %459, %460 : vector<8x512xf32>
    %c56_102 = arith.constant 56 : index
    %c0_103 = arith.constant 0 : index
    %462 = vector.load %arg10[%c56_102, %c0_103] : memref<96x512xf32, #tpu.memory_space<vmem>>, vector<8x512xf32>
    %463 = vector.extract_strided_slice %458 {offsets = [8, 512], sizes = [8, 512], strides = [1, 1]} : vector<16x1024xf32> to vector<8x512xf32>
    %464 = arith.addf %462, %463 : vector<8x512xf32>
    %465 = vector.extract_strided_slice %461 {offsets = [0, 0], sizes = [8, 128], strides = [1, 1]} : vector<8x512xf32> to vector<8x128xf32>
    %466 = arith.negf %465 : vector<8x128xf32>
    %467 = math.exp %466 : vector<8x128xf32>
    %cst_104 = arith.constant 1.000000e+00 : f32
    %468 = vector.broadcast %cst_104 : f32 to vector<8x128xf32>
    %469 = arith.addf %468, %467 : vector<8x128xf32>
    %470 = arith.divf %468, %469 : vector<8x128xf32>
    %471 = vector.extract_strided_slice %461 {offsets = [0, 128], sizes = [8, 128], strides = [1, 1]} : vector<8x512xf32> to vector<8x128xf32>
    %472 = arith.negf %471 : vector<8x128xf32>
    %473 = math.exp %472 : vector<8x128xf32>
    %cst_105 = arith.constant 1.000000e+00 : f32
    %474 = vector.broadcast %cst_105 : f32 to vector<8x128xf32>
    %475 = arith.addf %474, %473 : vector<8x128xf32>
    %476 = arith.divf %474, %475 : vector<8x128xf32>
    %477 = vector.extract_strided_slice %461 {offsets = [0, 256], sizes = [8, 128], strides = [1, 1]} : vector<8x512xf32> to vector<8x128xf32>
    %478 = math.tanh %477 : vector<8x128xf32>
    %479 = vector.extract_strided_slice %461 {offsets = [0, 384], sizes = [8, 128], strides = [1, 1]} : vector<8x512xf32> to vector<8x128xf32>
    %480 = arith.negf %479 : vector<8x128xf32>
    %481 = math.exp %480 : vector<8x128xf32>
    %cst_106 = arith.constant 1.000000e+00 : f32
    %482 = vector.broadcast %cst_106 : f32 to vector<8x128xf32>
    %483 = arith.addf %482, %481 : vector<8x128xf32>
    %484 = arith.divf %482, %483 : vector<8x128xf32>
    %485 = arith.mulf %476, %425 : vector<8x128xf32>
    %486 = arith.mulf %470, %478 : vector<8x128xf32>
    %487 = arith.addf %485, %486 : vector<8x128xf32>
    %488 = math.tanh %487 : vector<8x128xf32>
    %489 = arith.mulf %484, %488 : vector<8x128xf32>
    %490 = vector.extract_strided_slice %464 {offsets = [0, 0], sizes = [8, 128], strides = [1, 1]} : vector<8x512xf32> to vector<8x128xf32>
    %491 = arith.negf %490 : vector<8x128xf32>
    %492 = math.exp %491 : vector<8x128xf32>
    %cst_107 = arith.constant 1.000000e+00 : f32
    %493 = vector.broadcast %cst_107 : f32 to vector<8x128xf32>
    %494 = arith.addf %493, %492 : vector<8x128xf32>
    %495 = arith.divf %493, %494 : vector<8x128xf32>
    %496 = vector.extract_strided_slice %464 {offsets = [0, 128], sizes = [8, 128], strides = [1, 1]} : vector<8x512xf32> to vector<8x128xf32>
    %497 = arith.negf %496 : vector<8x128xf32>
    %498 = math.exp %497 : vector<8x128xf32>
    %cst_108 = arith.constant 1.000000e+00 : f32
    %499 = vector.broadcast %cst_108 : f32 to vector<8x128xf32>
    %500 = arith.addf %499, %498 : vector<8x128xf32>
    %501 = arith.divf %499, %500 : vector<8x128xf32>
    %502 = vector.extract_strided_slice %464 {offsets = [0, 256], sizes = [8, 128], strides = [1, 1]} : vector<8x512xf32> to vector<8x128xf32>
    %503 = math.tanh %502 : vector<8x128xf32>
    %504 = vector.extract_strided_slice %464 {offsets = [0, 384], sizes = [8, 128], strides = [1, 1]} : vector<8x512xf32> to vector<8x128xf32>
    %505 = arith.negf %504 : vector<8x128xf32>
    %506 = math.exp %505 : vector<8x128xf32>
    %cst_109 = arith.constant 1.000000e+00 : f32
    %507 = vector.broadcast %cst_109 : f32 to vector<8x128xf32>
    %508 = arith.addf %507, %506 : vector<8x128xf32>
    %509 = arith.divf %507, %508 : vector<8x128xf32>
    %510 = arith.mulf %501, %450 : vector<8x128xf32>
    %511 = arith.mulf %495, %503 : vector<8x128xf32>
    %512 = arith.addf %510, %511 : vector<8x128xf32>
    %513 = math.tanh %512 : vector<8x128xf32>
    %514 = arith.mulf %509, %513 : vector<8x128xf32>
    %515 = arith.addf %453, %489 : vector<8x128xf32>
    %516 = arith.addf %454, %514 : vector<8x128xf32>
    %517 = arith.truncf %514 : vector<8x128xf32> to vector<8x128xbf16>
    %c0_110 = arith.constant 0 : index
    %c512 = arith.constant 512 : index
    %518 = vector.load %arg11[%c0_110, %c512] : memref<128x1024xbf16, #tpu.memory_space<vmem>>, vector<128x512xbf16>
    %cst_111 = arith.constant dense<0.000000e+00> : vector<8x512xf32>
    %519 = tpu.matmul %517, %518, %cst_111 {dimension_numbers = #tpu.dot_dimension_numbers<[1], [0], [0], [1], [0, 0, 1, 1], [], []>} : vector<8x128xbf16>, vector<128x512xbf16>, vector<8x512xf32> -> vector<8x512xf32>
    %c64 = arith.constant 64 : index
    %c0_112 = arith.constant 0 : index
    %520 = vector.load %arg10[%c64, %c0_112] : memref<96x512xf32, #tpu.memory_space<vmem>>, vector<8x512xf32>
    %521 = arith.addf %520, %519 : vector<8x512xf32>
    %522 = vector.extract_strided_slice %521 {offsets = [0, 0], sizes = [8, 128], strides = [1, 1]} : vector<8x512xf32> to vector<8x128xf32>
    %523 = arith.negf %522 : vector<8x128xf32>
    %524 = math.exp %523 : vector<8x128xf32>
    %cst_113 = arith.constant 1.000000e+00 : f32
    %525 = vector.broadcast %cst_113 : f32 to vector<8x128xf32>
    %526 = arith.addf %525, %524 : vector<8x128xf32>
    %527 = arith.divf %525, %526 : vector<8x128xf32>
    %528 = vector.extract_strided_slice %521 {offsets = [0, 128], sizes = [8, 128], strides = [1, 1]} : vector<8x512xf32> to vector<8x128xf32>
    %529 = arith.negf %528 : vector<8x128xf32>
    %530 = math.exp %529 : vector<8x128xf32>
    %cst_114 = arith.constant 1.000000e+00 : f32
    %531 = vector.broadcast %cst_114 : f32 to vector<8x128xf32>
    %532 = arith.addf %531, %530 : vector<8x128xf32>
    %533 = arith.divf %531, %532 : vector<8x128xf32>
    %534 = vector.extract_strided_slice %521 {offsets = [0, 256], sizes = [8, 128], strides = [1, 1]} : vector<8x512xf32> to vector<8x128xf32>
    %535 = math.tanh %534 : vector<8x128xf32>
    %536 = vector.extract_strided_slice %521 {offsets = [0, 384], sizes = [8, 128], strides = [1, 1]} : vector<8x512xf32> to vector<8x128xf32>
    %537 = arith.negf %536 : vector<8x128xf32>
    %538 = math.exp %537 : vector<8x128xf32>
    %cst_115 = arith.constant 1.000000e+00 : f32
    %539 = vector.broadcast %cst_115 : f32 to vector<8x128xf32>
    %540 = arith.addf %539, %538 : vector<8x128xf32>
    %541 = arith.divf %539, %540 : vector<8x128xf32>
    %542 = arith.mulf %533, %512 : vector<8x128xf32>
    %543 = arith.mulf %527, %535 : vector<8x128xf32>
    %544 = arith.addf %542, %543 : vector<8x128xf32>
    %545 = math.tanh %544 : vector<8x128xf32>
    %546 = arith.mulf %541, %545 : vector<8x128xf32>
    %547 = arith.addf %516, %546 : vector<8x128xf32>
    %548 = arith.truncf %546 : vector<8x128xf32> to vector<8x128xbf16>
    %c0_116 = arith.constant 0 : index
    %c512_117 = arith.constant 512 : index
    %549 = vector.load %arg11[%c0_116, %c512_117] : memref<128x1024xbf16, #tpu.memory_space<vmem>>, vector<128x512xbf16>
    %cst_118 = arith.constant dense<0.000000e+00> : vector<8x512xf32>
    %550 = tpu.matmul %548, %549, %cst_118 {dimension_numbers = #tpu.dot_dimension_numbers<[1], [0], [0], [1], [0, 0, 1, 1], [], []>} : vector<8x128xbf16>, vector<128x512xbf16>, vector<8x512xf32> -> vector<8x512xf32>
    %c72 = arith.constant 72 : index
    %c0_119 = arith.constant 0 : index
    %551 = vector.load %arg10[%c72, %c0_119] : memref<96x512xf32, #tpu.memory_space<vmem>>, vector<8x512xf32>
    %552 = arith.addf %551, %550 : vector<8x512xf32>
    %553 = vector.extract_strided_slice %552 {offsets = [0, 0], sizes = [8, 128], strides = [1, 1]} : vector<8x512xf32> to vector<8x128xf32>
    %554 = arith.negf %553 : vector<8x128xf32>
    %555 = math.exp %554 : vector<8x128xf32>
    %cst_120 = arith.constant 1.000000e+00 : f32
    %556 = vector.broadcast %cst_120 : f32 to vector<8x128xf32>
    %557 = arith.addf %556, %555 : vector<8x128xf32>
    %558 = arith.divf %556, %557 : vector<8x128xf32>
    %559 = vector.extract_strided_slice %552 {offsets = [0, 128], sizes = [8, 128], strides = [1, 1]} : vector<8x512xf32> to vector<8x128xf32>
    %560 = arith.negf %559 : vector<8x128xf32>
    %561 = math.exp %560 : vector<8x128xf32>
    %cst_121 = arith.constant 1.000000e+00 : f32
    %562 = vector.broadcast %cst_121 : f32 to vector<8x128xf32>
    %563 = arith.addf %562, %561 : vector<8x128xf32>
    %564 = arith.divf %562, %563 : vector<8x128xf32>
    %565 = vector.extract_strided_slice %552 {offsets = [0, 256], sizes = [8, 128], strides = [1, 1]} : vector<8x512xf32> to vector<8x128xf32>
    %566 = math.tanh %565 : vector<8x128xf32>
    %567 = vector.extract_strided_slice %552 {offsets = [0, 384], sizes = [8, 128], strides = [1, 1]} : vector<8x512xf32> to vector<8x128xf32>
    %568 = arith.negf %567 : vector<8x128xf32>
    %569 = math.exp %568 : vector<8x128xf32>
    %cst_122 = arith.constant 1.000000e+00 : f32
    %570 = vector.broadcast %cst_122 : f32 to vector<8x128xf32>
    %571 = arith.addf %570, %569 : vector<8x128xf32>
    %572 = arith.divf %570, %571 : vector<8x128xf32>
    %573 = arith.mulf %564, %544 : vector<8x128xf32>
    %574 = arith.mulf %558, %566 : vector<8x128xf32>
    %575 = arith.addf %573, %574 : vector<8x128xf32>
    %576 = math.tanh %575 : vector<8x128xf32>
    %577 = arith.mulf %572, %576 : vector<8x128xf32>
    %578 = arith.addf %547, %577 : vector<8x128xf32>
    %579 = arith.truncf %577 : vector<8x128xf32> to vector<8x128xbf16>
    %c0_123 = arith.constant 0 : index
    %c512_124 = arith.constant 512 : index
    %580 = vector.load %arg11[%c0_123, %c512_124] : memref<128x1024xbf16, #tpu.memory_space<vmem>>, vector<128x512xbf16>
    %cst_125 = arith.constant dense<0.000000e+00> : vector<8x512xf32>
    %581 = tpu.matmul %579, %580, %cst_125 {dimension_numbers = #tpu.dot_dimension_numbers<[1], [0], [0], [1], [0, 0, 1, 1], [], []>} : vector<8x128xbf16>, vector<128x512xbf16>, vector<8x512xf32> -> vector<8x512xf32>
    %c80 = arith.constant 80 : index
    %c0_126 = arith.constant 0 : index
    %582 = vector.load %arg10[%c80, %c0_126] : memref<96x512xf32, #tpu.memory_space<vmem>>, vector<8x512xf32>
    %583 = arith.addf %582, %581 : vector<8x512xf32>
    %584 = vector.extract_strided_slice %583 {offsets = [0, 0], sizes = [8, 128], strides = [1, 1]} : vector<8x512xf32> to vector<8x128xf32>
    %585 = arith.negf %584 : vector<8x128xf32>
    %586 = math.exp %585 : vector<8x128xf32>
    %cst_127 = arith.constant 1.000000e+00 : f32
    %587 = vector.broadcast %cst_127 : f32 to vector<8x128xf32>
    %588 = arith.addf %587, %586 : vector<8x128xf32>
    %589 = arith.divf %587, %588 : vector<8x128xf32>
    %590 = vector.extract_strided_slice %583 {offsets = [0, 128], sizes = [8, 128], strides = [1, 1]} : vector<8x512xf32> to vector<8x128xf32>
    %591 = arith.negf %590 : vector<8x128xf32>
    %592 = math.exp %591 : vector<8x128xf32>
    %cst_128 = arith.constant 1.000000e+00 : f32
    %593 = vector.broadcast %cst_128 : f32 to vector<8x128xf32>
    %594 = arith.addf %593, %592 : vector<8x128xf32>
    %595 = arith.divf %593, %594 : vector<8x128xf32>
    %596 = vector.extract_strided_slice %583 {offsets = [0, 256], sizes = [8, 128], strides = [1, 1]} : vector<8x512xf32> to vector<8x128xf32>
    %597 = math.tanh %596 : vector<8x128xf32>
    %598 = vector.extract_strided_slice %583 {offsets = [0, 384], sizes = [8, 128], strides = [1, 1]} : vector<8x512xf32> to vector<8x128xf32>
    %599 = arith.negf %598 : vector<8x128xf32>
    %600 = math.exp %599 : vector<8x128xf32>
    %cst_129 = arith.constant 1.000000e+00 : f32
    %601 = vector.broadcast %cst_129 : f32 to vector<8x128xf32>
    %602 = arith.addf %601, %600 : vector<8x128xf32>
    %603 = arith.divf %601, %602 : vector<8x128xf32>
    %604 = arith.mulf %595, %575 : vector<8x128xf32>
    %605 = arith.mulf %589, %597 : vector<8x128xf32>
    %606 = arith.addf %604, %605 : vector<8x128xf32>
    %607 = math.tanh %606 : vector<8x128xf32>
    %608 = arith.mulf %603, %607 : vector<8x128xf32>
    %609 = arith.addf %578, %608 : vector<8x128xf32>
    %610 = arith.truncf %608 : vector<8x128xf32> to vector<8x128xbf16>
    %c0_130 = arith.constant 0 : index
    %c512_131 = arith.constant 512 : index
    %611 = vector.load %arg11[%c0_130, %c512_131] : memref<128x1024xbf16, #tpu.memory_space<vmem>>, vector<128x512xbf16>
    %cst_132 = arith.constant dense<0.000000e+00> : vector<8x512xf32>
    %612 = tpu.matmul %610, %611, %cst_132 {dimension_numbers = #tpu.dot_dimension_numbers<[1], [0], [0], [1], [0, 0, 1, 1], [], []>} : vector<8x128xbf16>, vector<128x512xbf16>, vector<8x512xf32> -> vector<8x512xf32>
    %c88 = arith.constant 88 : index
    %c0_133 = arith.constant 0 : index
    %613 = vector.load %arg10[%c88, %c0_133] : memref<96x512xf32, #tpu.memory_space<vmem>>, vector<8x512xf32>
    %614 = arith.addf %613, %612 : vector<8x512xf32>
    %615 = vector.extract_strided_slice %614 {offsets = [0, 0], sizes = [8, 128], strides = [1, 1]} : vector<8x512xf32> to vector<8x128xf32>
    %616 = arith.negf %615 : vector<8x128xf32>
    %617 = math.exp %616 : vector<8x128xf32>
    %cst_134 = arith.constant 1.000000e+00 : f32
    %618 = vector.broadcast %cst_134 : f32 to vector<8x128xf32>
    %619 = arith.addf %618, %617 : vector<8x128xf32>
    %620 = arith.divf %618, %619 : vector<8x128xf32>
    %621 = vector.extract_strided_slice %614 {offsets = [0, 128], sizes = [8, 128], strides = [1, 1]} : vector<8x512xf32> to vector<8x128xf32>
    %622 = arith.negf %621 : vector<8x128xf32>
    %623 = math.exp %622 : vector<8x128xf32>
    %cst_135 = arith.constant 1.000000e+00 : f32
    %624 = vector.broadcast %cst_135 : f32 to vector<8x128xf32>
    %625 = arith.addf %624, %623 : vector<8x128xf32>
    %626 = arith.divf %624, %625 : vector<8x128xf32>
    %627 = vector.extract_strided_slice %614 {offsets = [0, 256], sizes = [8, 128], strides = [1, 1]} : vector<8x512xf32> to vector<8x128xf32>
    %628 = math.tanh %627 : vector<8x128xf32>
    %629 = vector.extract_strided_slice %614 {offsets = [0, 384], sizes = [8, 128], strides = [1, 1]} : vector<8x512xf32> to vector<8x128xf32>
    %630 = arith.negf %629 : vector<8x128xf32>
    %631 = math.exp %630 : vector<8x128xf32>
    %cst_136 = arith.constant 1.000000e+00 : f32
    %632 = vector.broadcast %cst_136 : f32 to vector<8x128xf32>
    %633 = arith.addf %632, %631 : vector<8x128xf32>
    %634 = arith.divf %632, %633 : vector<8x128xf32>
    %635 = arith.mulf %626, %606 : vector<8x128xf32>
    %636 = arith.mulf %620, %628 : vector<8x128xf32>
    %637 = arith.addf %635, %636 : vector<8x128xf32>
    %638 = math.tanh %637 : vector<8x128xf32>
    %639 = arith.mulf %634, %638 : vector<8x128xf32>
    %640 = arith.addf %609, %639 : vector<8x128xf32>
    %c0_137 = arith.constant 0 : index
    %c0_138 = arith.constant 0 : index
    %641 = vector.load %arg5[%c0_137, %c0_138] : memref<1x128xf32, #tpu.memory_space<vmem>>, vector<1x128xf32>
    %642 = vector.broadcast %641 : vector<1x128xf32> to vector<8x128xf32>
    %643 = arith.mulf %515, %642 : vector<8x128xf32>
    %cst_139 = arith.constant dense<0.000000e+00> : vector<8xf32>
    %644 = vector.multi_reduction <add>, %643, %cst_139 [1] : vector<8x128xf32> to vector<8xf32>
    %645 = vector.shape_cast %644 : vector<8xf32> to vector<8x1xf32>
    %c0_140 = arith.constant 0 : index
    %c0_141 = arith.constant 0 : index
    %646 = vector.load %arg6[%c0_140, %c0_141] : memref<1x128xf32, #tpu.memory_space<vmem>>, vector<1x128xf32>
    %647 = vector.broadcast %646 : vector<1x128xf32> to vector<8x128xf32>
    %648 = arith.mulf %640, %647 : vector<8x128xf32>
    %cst_142 = arith.constant dense<0.000000e+00> : vector<8xf32>
    %649 = vector.multi_reduction <add>, %648, %cst_142 [1] : vector<8x128xf32> to vector<8xf32>
    %650 = vector.shape_cast %649 : vector<8xf32> to vector<8x1xf32>
    %651 = arith.addf %645, %650 : vector<8x1xf32>
    %c0_143 = arith.constant 0 : index
    %c0_144 = arith.constant 0 : index
    %652 = vector.load %arg7[%c0_143, %c0_144] : memref<1x1xf32, #tpu.memory_space<vmem>>, vector<1x1xf32>
    %653 = vector.broadcast %652 : vector<1x1xf32> to vector<8x1xf32>
    %654 = arith.addf %651, %653 : vector<8x1xf32>
    %c0_145 = arith.constant 0 : index
    %c0_146 = arith.constant 0 : index
    %655 = vector.load %arg8[%c0_145, %c0_146] : memref<8x1xf32, #tpu.memory_space<vmem>>, vector<8x1xf32>
    tpu.vector_store %arg8[%c0_145, %c0_146], %654 {strides = array<i32>} : memref<8x1xf32, #tpu.memory_space<vmem>>, vector<8x1xf32>,
    return
  }
}

</mosaic_0001>

<llo_original>
// kernel: tpu_custom_call.1
$region0: #{tpu_custom_call.1}
  #allocation0 [shape = 'u32[]', space=smem, size = 0x4, offset = 0x4, fixed_abs, tag = 'smem constant byte address 0x4 - core index']
  #allocation1 [shape = 'u32[72,128]{1,0:T(1,128)}', space=vmem, size = 0x9000, scoped, tag = 'internal scratch']
  #allocation2 [shape = 'f32[64,512]{1,0:T(8,128)}', space=vmem, size = 0x20000, scoped, tag = 'scratch operand']
  #allocation3 [shape = 'f32[96,512]{1,0:T(8,128)}', space=vmem, size = 0x30000, scoped, tag = 'scratch operand']
  #allocation4 [shape = 'bf16[128,1024]{1,0:T(8,128)(2,1)}', space=vmem, size = 0x40000, scoped, tag = 'scratch operand']
  #allocation5 [shape = 's32[1]{0}', space=sflag, size = 0x4, scoped, tag = 'scratch operand']
  #allocation6 [shape = 'f32[1,1]{1,0:T(1,128)S(1)}', space=vmem, size = 0x200, scoped, tag = 'scoped memory for tpu_custom_call.1']
  #allocation11 [shape = 's32[]', space=sflag, size = 0x4, offset = 0, fixed_abs, tag = 'sflag constant byte address 0x0 - dummy sync flag']
  #allocation12 [shape = 's32[]', space=sflag, size = 0x4, offset = 0, fixed_abs, tag = 'sflag constant byte address 0x0 - dummy sync flag']
  #allocation13 [shape = 'u32[]', space=smem, size = 0x4, offset = 0x44, fixed_abs, tag = 'smem constant byte address 0x44 - assertion arg 0']
  #allocation14 [shape = 'u32[]', space=smem, size = 0x4, offset = 0x48, fixed_abs, tag = 'smem constant byte address 0x48 - assertion arg 1']
  %s0 = inlined_call_operand.vmem [shape: s32[64,1], index: 0, kind: input, shape index: {}]
  %s1 = inlined_call_operand.vmem [shape: s32[96,1], index: 1, kind: input, shape index: {}]
  %s2 = inlined_call_operand.hbm [shape: bf16[128,512], index: 2, kind: input, shape index: {}]
  %s3 = inlined_call_operand.hbm [shape: bf16[128,512], index: 3, kind: input, shape index: {}]
  %s4 = inlined_call_operand.hbm [shape: bf16[128,1024], index: 4, kind: input, shape index: {}]
  %s5 = inlined_call_operand.vmem [shape: f32[1,128], index: 5, kind: input, shape index: {}]
  %s6 = inlined_call_operand.vmem [shape: f32[1,128], index: 6, kind: input, shape index: {}]
  %s7 = inlined_call_operand.<no memory space> [shape: f32[1,1], index: 7, kind: input, shape index: {}]
  %s8 = inlined_call_operand.vmem [shape: f32[8,1], index: 8, kind: output, shape index: {}]
  %s9 = sld [smem:[#allocation0]]
  $region50: #{tpu_custom_call.1} parent=0
    _
  %s11 = ssub.s32 1, %s9
  %s12 = scalar_select 0, %s11, %s9
  %v13 = vstv %s7
  %14 = vst [vmem:[#allocation6] sm:$0x1] %v13
  $region1: #{tpu_custom_call.1} parent=0
    #allocation7 [shape = 'u8[131072]{0}', space=vmem, size = 0x20000, scoped, tag = 'input window, operand 2, single buffered']
    #allocation8 [shape = 's32[1]{0}', space=sflag, size = 0x4, scoped, tag = 'scoped memory for tpu_custom_call.1']
    #allocation9 [shape = 'u8[131072]{0}', space=vmem, size = 0x20000, scoped, tag = 'input window, operand 3, single buffered']
    #allocation10 [shape = 's32[1]{0}', space=sflag, size = 0x4, scoped, tag = 'scoped memory for tpu_custom_call.1']
    %15 = vsyncpa [#allocation8], 0
    %16 = vsyncpa [#allocation10], 0
    // Predicated region
    $region2: #{tpu_custom_call.1} parent=1 // pred_check
      _
    $region3: #{tpu_custom_call.1} parent=1 // pred_check_branch
      %18 = sbr.rel (0) target = $region5
    $region4: #{tpu_custom_call.1} parent=1 // pred_region
      _
    $region5: #{tpu_custom_call.1} parent=1 // pred_fallthru
      _
    // Predicated region
    $region6: #{tpu_custom_call.1} parent=1 // pred_check
      _
    $region7: #{tpu_custom_call.1} parent=1 // pred_check_branch
      %20 = sbr.rel (0) target = $region9
    $region8: #{tpu_custom_call.1} parent=1 // pred_region
      _
    $region9: #{tpu_custom_call.1} parent=1 // pred_fallthru
      _
    // Predicated region
    $region10: #{tpu_custom_call.1} parent=1 // pred_check
      _
    $region11: #{tpu_custom_call.1} parent=1 // pred_check_branch
      %22 = sbr.rel (0) target = $region13
    $region12: #{tpu_custom_call.1} parent=1 // pred_region
      %24 = vsyncadd [#allocation8], 0
      %s25 = sshll.u32 %s2, 4
      %s26 = int_to_ptr.hbm [resolvable:$true] %s25
      %s27 = sshll.u32 [#allocation7], 4
      %s28 = int_to_ptr.vmem [resolvable:$true] %s27
      %33 = dma.hbm_to_vmem [thread:$0]  %s26, 4096, %s28, [#allocation8], 256, 256, 16
    $region13: #{tpu_custom_call.1} parent=1 // pred_fallthru
      _
    // Predicated region
    $region14: #{tpu_custom_call.1} parent=1 // pred_check
      _
    $region15: #{tpu_custom_call.1} parent=1 // pred_check_branch
      %35 = sbr.rel (0) target = $region17
    $region16: #{tpu_custom_call.1} parent=1 // pred_region
      %37 = vsyncadd [#allocation10], 0
      %s38 = sshll.u32 %s3, 4
      %s39 = int_to_ptr.hbm [resolvable:$true] %s38
      %s40 = sshll.u32 [#allocation9], 4
      %s41 = int_to_ptr.vmem [resolvable:$true] %s40
      %46 = dma.hbm_to_vmem [thread:$0]  %s39, 4096, %s41, [#allocation10], 256, 256, 16
    $region17: #{tpu_custom_call.1} parent=1 // pred_fallthru
      _
    // Predicated region
    $region18: #{tpu_custom_call.1} parent=1 // pred_check
      _
    $region19: #{tpu_custom_call.1} parent=1 // pred_check_branch
      %48 = sbr.rel (0) target = $region21
    $region20: #{tpu_custom_call.1} parent=1 // pred_region
      _
    $region21: #{tpu_custom_call.1} parent=1 // pred_fallthru
      _
    // Predicated region
    $region22: #{tpu_custom_call.1} parent=1 // pred_check
      _
    $region23: #{tpu_custom_call.1} parent=1 // pred_check_branch
      %50 = sbr.rel (0) target = $region25
    $region24: #{tpu_custom_call.1} parent=1 // pred_region
      _
    $region25: #{tpu_custom_call.1} parent=1 // pred_fallthru
      _
    // Predicated region
    $region26: #{tpu_custom_call.1} parent=1 // pred_check
      _
    $region27: #{tpu_custom_call.1} parent=1 // pred_check_branch
      %52 = sbr.rel (0) target = $region29
    $region28: #{tpu_custom_call.1} parent=1 // pred_region
      _
    $region29: #{tpu_custom_call.1} parent=1 // pred_fallthru
      _
    // Predicated region
    $region30: #{tpu_custom_call.1} parent=1 // pred_check
      _
    $region31: #{tpu_custom_call.1} parent=1 // pred_check_branch
      %54 = sbr.rel (0) target = $region33
    $region32: #{tpu_custom_call.1} parent=1 // pred_region
      %56 = dma.done [#allocation8], 4096
    $region33: #{tpu_custom_call.1} parent=1 // pred_fallthru
      _
    // Predicated region
    $region34: #{tpu_custom_call.1} parent=1 // pred_check
      _
    $region35: #{tpu_custom_call.1} parent=1 // pred_check_branch
      %58 = sbr.rel (0) target = $region37
    $region36: #{tpu_custom_call.1} parent=1 // pred_region
      %60 = dma.done [#allocation10], 4096
    $region37: #{tpu_custom_call.1} parent=1 // pred_fallthru
      _
    // Predicated region
    $region38: #{tpu_custom_call.1} parent=1 // pred_check
      _
    $region39: #{tpu_custom_call.1} parent=1 // pred_check_branch
      %62 = sbr.rel target = $region41
    $region40: #{tpu_custom_call.1} parent=1 // pred_region
      %63 = sst [smem:[#allocation13]] [#allocation12]
      %64 = sst [smem:[#allocation14]] [#allocation11]
    $region41: #{tpu_custom_call.1} parent=1 // pred_fallthru
      _
    %66 = shalt.err (0)
    %s68 = sshll.u32 %s4, 4
    %s69 = int_to_ptr.hbm [resolvable:$true] %s68
    %s70 = sshll.u32 [#allocation4], 4
    %s71 = int_to_ptr.vmem [resolvable:$true] %s70
    %73 = dma.hbm_to_vmem [thread:$0]  %s69, 8192, %s71, [#allocation5]
    %v74 = vld [vmem:[%s0] sm:$0xff]
    %v75 = vld [vmem:[%s0 + $0x8] sm:$0xff]
    %v76 = vld [vmem:[%s0 + $0x10] sm:$0xff]
    %v77 = vld [vmem:[%s0 + $0x18] sm:$0xff]
    %v78 = vld [vmem:[%s0 + $0x20] sm:$0xff]
    %v79 = vld [vmem:[%s0 + $0x28] sm:$0xff]
    %v80 = vld [vmem:[%s0 + $0x30] sm:$0xff]
    %v81 = vld [vmem:[%s0 + $0x38] sm:$0xff]
    %v82 = vlaneseq
    %v83 = vand.u32 %v82, 127
    %84 = vset.pattern.permute.xlu0 0
    %85 = vperm.xlu0 %84, %v74
    %v86 = vpop.permute.xlu0 %85
    %87 = vset.pattern.permute.xlu0 0
    %88 = vperm.xlu0 %87, %v75
    %v89 = vpop.permute.xlu0 %88
    %90 = vset.pattern.permute.xlu0 0
    %91 = vperm.xlu0 %90, %v76
    %v92 = vpop.permute.xlu0 %91
    %93 = vset.pattern.permute.xlu0 0
    %94 = vperm.xlu0 %93, %v77
    %v95 = vpop.permute.xlu0 %94
    %96 = vset.pattern.permute.xlu0 0
    %97 = vperm.xlu0 %96, %v78
    %v98 = vpop.permute.xlu0 %97
    %99 = vset.pattern.permute.xlu0 0
    %100 = vperm.xlu0 %99, %v79
    %v101 = vpop.permute.xlu0 %100
    %102 = vset.pattern.permute.xlu0 0
    %103 = vperm.xlu0 %102, %v80
    %v104 = vpop.permute.xlu0 %103
    %105 = vset.pattern.permute.xlu0 0
    %106 = vperm.xlu0 %105, %v81
    %v107 = vpop.permute.xlu0 %106
    %vm108 = vcmp.eq.s32.totalorder %v86, %v83
    %vm109 = vcmp.eq.s32.totalorder %v89, %v83
    %vm110 = vcmp.eq.s32.totalorder %v92, %v83
    %vm111 = vcmp.eq.s32.totalorder %v95, %v83
    %vm112 = vcmp.eq.s32.totalorder %v98, %v83
    %vm113 = vcmp.eq.s32.totalorder %v101, %v83
    %vm114 = vcmp.eq.s32.totalorder %v104, %v83
    %vm115 = vcmp.eq.s32.totalorder %v107, %v83
    %v116 = vsel %vm108, 1, 0
    %v117 = vsel %vm109, 1, 0
    %v118 = vsel %vm110, 1, 0
    %v119 = vsel %vm111, 1, 0
    %v120 = vsel %vm112, 1, 0
    %v121 = vsel %vm113, 1, 0
    %v122 = vsel %vm114, 1, 0
    %v123 = vsel %vm115, 1, 0
    %v124 = vcvt.s32.f32 %v116
    %v125 = vcvt.s32.f32 %v117
    %v126 = vcvt.s32.f32 %v118
    %v127 = vcvt.s32.f32 %v119
    %v128 = vcvt.s32.f32 %v120
    %v129 = vcvt.s32.f32 %v121
    %v130 = vcvt.s32.f32 %v122
    %v131 = vcvt.s32.f32 %v123
    %v132 = vpack.c.bf16 %v125, %v124
    %v133 = vpack.c.bf16 %v127, %v126
    %v134 = vpack.c.bf16 %v129, %v128
    %v135 = vpack.c.bf16 %v131, %v130
    %v136 = vld [vmem:[#allocation7] sm:$0xff]
    %v137 = vld [vmem:[#allocation7 + $0x8] sm:$0xff]
    %v138 = vld [vmem:[#allocation7 + $0x10] sm:$0xff]
    %v139 = vld [vmem:[#allocation7 + $0x18] sm:$0xff]
    %v140 = vld [vmem:[#allocation7 + $0x20] sm:$0xff]
    %v141 = vld [vmem:[#allocation7 + $0x28] sm:$0xff]
    %v142 = vld [vmem:[#allocation7 + $0x30] sm:$0xff]
    %v143 = vld [vmem:[#allocation7 + $0x38] sm:$0xff]
    %v144 = vld [vmem:[#allocation7 + $0x40] sm:$0xff]
    %v145 = vld [vmem:[#allocation7 + $0x48] sm:$0xff]
    %v146 = vld [vmem:[#allocation7 + $0x50] sm:$0xff]
    %v147 = vld [vmem:[#allocation7 + $0x58] sm:$0xff]
    %v148 = vld [vmem:[#allocation7 + $0x60] sm:$0xff]
    %v149 = vld [vmem:[#allocation7 + $0x68] sm:$0xff]
    %v150 = vld [vmem:[#allocation7 + $0x70] sm:$0xff]
    %v151 = vld [vmem:[#allocation7 + $0x78] sm:$0xff]
    %v152 = vld [vmem:[#allocation7 + $0x80] sm:$0xff]
    %v153 = vld [vmem:[#allocation7 + $0x88] sm:$0xff]
    %v154 = vld [vmem:[#allocation7 + $0x90] sm:$0xff]
    %v155 = vld [vmem:[#allocation7 + $0x98] sm:$0xff]
    %v156 = vld [vmem:[#allocation7 + $0xa0] sm:$0xff]
    %v157 = vld [vmem:[#allocation7 + $0xa8] sm:$0xff]
    %v158 = vld [vmem:[#allocation7 + $0xb0] sm:$0xff]
    %v159 = vld [vmem:[#allocation7 + $0xb8] sm:$0xff]
    %v160 = vld [vmem:[#allocation7 + $0xc0] sm:$0xff]
    %v161 = vld [vmem:[#allocation7 + $0xc8] sm:$0xff]
    %v162 = vld [vmem:[#allocation7 + $0xd0] sm:$0xff]
    %v163 = vld [vmem:[#allocation7 + $0xd8] sm:$0xff]
    %v164 = vld [vmem:[#allocation7 + $0xe0] sm:$0xff]
    %v165 = vld [vmem:[#allocation7 + $0xe8] sm:$0xff]
    %v166 = vld [vmem:[#allocation7 + $0xf0] sm:$0xff]
    %v167 = vld [vmem:[#allocation7 + $0xf8] sm:$0xff]
    %v200 = vunpack.c.l.b16 %v136
    %v201 = vunpack.c.h.b16 %v136
    %v202 = vunpack.c.l.b16 %v137
    %v203 = vunpack.c.h.b16 %v137
    %v204 = vunpack.c.l.b16 %v138
    %v205 = vunpack.c.h.b16 %v138
    %v206 = vunpack.c.l.b16 %v139
    %v207 = vunpack.c.h.b16 %v139
    %v208 = vunpack.c.l.b16 %v140
    %v209 = vunpack.c.h.b16 %v140
    %v210 = vunpack.c.l.b16 %v141
    %v211 = vunpack.c.h.b16 %v141
    %v212 = vunpack.c.l.b16 %v142
    %v213 = vunpack.c.h.b16 %v142
    %v214 = vunpack.c.l.b16 %v143
    %v215 = vunpack.c.h.b16 %v143
    %v216 = vunpack.c.l.b16 %v144
    %v217 = vunpack.c.h.b16 %v144
    %v218 = vunpack.c.l.b16 %v145
    %v219 = vunpack.c.h.b16 %v145
    %v220 = vunpack.c.l.b16 %v146
    %v221 = vunpack.c.h.b16 %v146
    %v222 = vunpack.c.l.b16 %v147
    %v223 = vunpack.c.h.b16 %v147
    %v224 = vunpack.c.l.b16 %v148
    %v225 = vunpack.c.h.b16 %v148
    %v226 = vunpack.c.l.b16 %v149
    %v227 = vunpack.c.h.b16 %v149
    %v228 = vunpack.c.l.b16 %v150
    %v229 = vunpack.c.h.b16 %v150
    %v230 = vunpack.c.l.b16 %v151
    %v231 = vunpack.c.h.b16 %v151
    %v232 = vunpack.c.l.b16 %v152
    %v233 = vunpack.c.h.b16 %v152
    %v234 = vunpack.c.l.b16 %v153
    %v235 = vunpack.c.h.b16 %v153
    %v236 = vunpack.c.l.b16 %v154
    %v237 = vunpack.c.h.b16 %v154
    %v238 = vunpack.c.l.b16 %v155
    %v239 = vunpack.c.h.b16 %v155
    %v240 = vunpack.c.l.b16 %v156
    %v241 = vunpack.c.h.b16 %v156
    %v242 = vunpack.c.l.b16 %v157
    %v243 = vunpack.c.h.b16 %v157
    %v244 = vunpack.c.l.b16 %v158
    %v245 = vunpack.c.h.b16 %v158
    %v246 = vunpack.c.l.b16 %v159
    %v247 = vunpack.c.h.b16 %v159
    %v248 = vunpack.c.l.b16 %v160
    %v249 = vunpack.c.h.b16 %v160
    %v250 = vunpack.c.l.b16 %v161
    %v251 = vunpack.c.h.b16 %v161
    %v252 = vunpack.c.l.b16 %v162
    %v253 = vunpack.c.h.b16 %v162
    %v254 = vunpack.c.l.b16 %v163
    %v255 = vunpack.c.h.b16 %v163
    %v256 = vunpack.c.l.b16 %v164
    %v257 = vunpack.c.h.b16 %v164
    %v258 = vunpack.c.l.b16 %v165
    %v259 = vunpack.c.h.b16 %v165
    %v260 = vunpack.c.l.b16 %v166
    %v261 = vunpack.c.h.b16 %v166
    %v262 = vunpack.c.l.b16 %v167
    %v263 = vunpack.c.h.b16 %v167
    %v264 = vpack.c.b16 %v204, %v200
    %v265 = vpack.c.b16 %v205, %v201
    %v266 = vpack.c.b16 %v206, %v202
    %v267 = vpack.c.b16 %v207, %v203
    %v268 = vpack.c.b16 %v212, %v208
    %v269 = vpack.c.b16 %v213, %v209
    %v270 = vpack.c.b16 %v214, %v210
    %v271 = vpack.c.b16 %v215, %v211
    %v272 = vpack.c.b16 %v220, %v216
    %v273 = vpack.c.b16 %v221, %v217
    %v274 = vpack.c.b16 %v222, %v218
    %v275 = vpack.c.b16 %v223, %v219
    %v276 = vpack.c.b16 %v228, %v224
    %v277 = vpack.c.b16 %v229, %v225
    %v278 = vpack.c.b16 %v230, %v226
    %v279 = vpack.c.b16 %v231, %v227
    %v280 = vpack.c.b16 %v236, %v232
    %v281 = vpack.c.b16 %v237, %v233
    %v282 = vpack.c.b16 %v238, %v234
    %v283 = vpack.c.b16 %v239, %v235
    %v284 = vpack.c.b16 %v244, %v240
    %v285 = vpack.c.b16 %v245, %v241
    %v286 = vpack.c.b16 %v246, %v242
    %v287 = vpack.c.b16 %v247, %v243
    %v288 = vpack.c.b16 %v252, %v248
    %v289 = vpack.c.b16 %v253, %v249
    %v290 = vpack.c.b16 %v254, %v250
    %v291 = vpack.c.b16 %v255, %v251
    %v292 = vpack.c.b16 %v260, %v256
    %v293 = vpack.c.b16 %v261, %v257
    %v294 = vpack.c.b16 %v262, %v258
    %v295 = vpack.c.b16 %v263, %v259
    %328 = vmatpush.bf16.msra.mxu0 %v292
    %329 = vmatpush.bf16.msra.mxu0 %v288
    %330 = vmatpush.bf16.msra.mxu0 %v284
    %331 = vmatpush.bf16.msra.mxu0 %v280
    %332 = vmatpush.bf16.msra.mxu0 %v276
    %333 = vmatpush.bf16.msra.mxu0 %v272
    %334 = vmatpush.bf16.msra.mxu0 %v268
    %335 = vmatpush.bf16.msra.mxu0 %v264
    %336 = vmatmul.bf16.gmra.mxu0 %v132
    %v337 = vpop.f32.mrf.mxu0
    %v338 = vadd.f32 0.0, %v337
    %v339 = vpop.f32.mrf.mxu0
    %v340 = vadd.f32 0.0, %v339
    %341 = vmatmul.bf16.gmra.mxu0 %v133
    %v342 = vpop.f32.mrf.mxu0
    %v343 = vadd.f32 0.0, %v342
    %v344 = vpop.f32.mrf.mxu0
    %v345 = vadd.f32 0.0, %v344
    %346 = vmatmul.bf16.gmra.mxu0 %v134
    %v347 = vpop.f32.mrf.mxu0
    %v348 = vadd.f32 0.0, %v347
    %v349 = vpop.f32.mrf.mxu0
    %v350 = vadd.f32 0.0, %v349
    %351 = vmatmul.bf16.gmra.mxu0 %v135
    %v352 = vpop.f32.mrf.mxu0
    %v353 = vadd.f32 0.0, %v352
    %v354 = vpop.f32.mrf.mxu0
    %v355 = vadd.f32 0.0, %v354
    %356 = vdwg.mxu0
    %357 = vmatpush.bf16.msra.mxu0 %v293
    %358 = vmatpush.bf16.msra.mxu0 %v289
    %359 = vmatpush.bf16.msra.mxu0 %v285
    %360 = vmatpush.bf16.msra.mxu0 %v281
    %361 = vmatpush.bf16.msra.mxu0 %v277
    %362 = vmatpush.bf16.msra.mxu0 %v273
    %363 = vmatpush.bf16.msra.mxu0 %v269
    %364 = vmatpush.bf16.msra.mxu0 %v265
    %365 = vmatmul.bf16.gmra.mxu0 %v132
    %v366 = vpop.f32.mrf.mxu0
    %v367 = vadd.f32 0.0, %v366
    %v368 = vpop.f32.mrf.mxu0
    %v369 = vadd.f32 0.0, %v368
    %370 = vmatmul.bf16.gmra.mxu0 %v133
    %v371 = vpop.f32.mrf.mxu0
    %v372 = vadd.f32 0.0, %v371
    %v373 = vpop.f32.mrf.mxu0
    %v374 = vadd.f32 0.0, %v373
    %375 = vmatmul.bf16.gmra.mxu0 %v134
    %v376 = vpop.f32.mrf.mxu0
    %v377 = vadd.f32 0.0, %v376
    %v378 = vpop.f32.mrf.mxu0
    %v379 = vadd.f32 0.0, %v378
    %380 = vmatmul.bf16.gmra.mxu0 %v135
    %v381 = vpop.f32.mrf.mxu0
    %v382 = vadd.f32 0.0, %v381
    %v383 = vpop.f32.mrf.mxu0
    %v384 = vadd.f32 0.0, %v383
    %385 = vdwg.mxu0
    %386 = vmatpush.bf16.msra.mxu0 %v294
    %387 = vmatpush.bf16.msra.mxu0 %v290
    %388 = vmatpush.bf16.msra.mxu0 %v286
    %389 = vmatpush.bf16.msra.mxu0 %v282
    %390 = vmatpush.bf16.msra.mxu0 %v278
    %391 = vmatpush.bf16.msra.mxu0 %v274
    %392 = vmatpush.bf16.msra.mxu0 %v270
    %393 = vmatpush.bf16.msra.mxu0 %v266
    %394 = vmatmul.bf16.gmra.mxu0 %v132
    %v395 = vpop.f32.mrf.mxu0
    %v396 = vadd.f32 0.0, %v395
    %v397 = vpop.f32.mrf.mxu0
    %v398 = vadd.f32 0.0, %v397
    %399 = vmatmul.bf16.gmra.mxu0 %v133
    %v400 = vpop.f32.mrf.mxu0
    %v401 = vadd.f32 0.0, %v400
    %v402 = vpop.f32.mrf.mxu0
    %v403 = vadd.f32 0.0, %v402
    %404 = vmatmul.bf16.gmra.mxu0 %v134
    %v405 = vpop.f32.mrf.mxu0
    %v406 = vadd.f32 0.0, %v405
    %v407 = vpop.f32.mrf.mxu0
    %v408 = vadd.f32 0.0, %v407
    %409 = vmatmul.bf16.gmra.mxu0 %v135
    %v410 = vpop.f32.mrf.mxu0
    %v411 = vadd.f32 0.0, %v410
    %v412 = vpop.f32.mrf.mxu0
    %v413 = vadd.f32 0.0, %v412
    %414 = vdwg.mxu0
    %415 = vmatpush.bf16.msra.mxu0 %v295
    %416 = vmatpush.bf16.msra.mxu0 %v291
    %417 = vmatpush.bf16.msra.mxu0 %v287
    %418 = vmatpush.bf16.msra.mxu0 %v283
    %419 = vmatpush.bf16.msra.mxu0 %v279
    %420 = vmatpush.bf16.msra.mxu0 %v275
    %421 = vmatpush.bf16.msra.mxu0 %v271
    %422 = vmatpush.bf16.msra.mxu0 %v267
    %423 = vmatmul.bf16.gmra.mxu0 %v132
    %v424 = vpop.f32.mrf.mxu0
    %v425 = vadd.f32 0.0, %v424
    %v426 = vpop.f32.mrf.mxu0
    %v427 = vadd.f32 0.0, %v426
    %428 = vmatmul.bf16.gmra.mxu0 %v133
    %v429 = vpop.f32.mrf.mxu0
    %v430 = vadd.f32 0.0, %v429
    %v431 = vpop.f32.mrf.mxu0
    %v432 = vadd.f32 0.0, %v431
    %433 = vmatmul.bf16.gmra.mxu0 %v134
    %v434 = vpop.f32.mrf.mxu0
    %v435 = vadd.f32 0.0, %v434
    %v436 = vpop.f32.mrf.mxu0
    %v437 = vadd.f32 0.0, %v436
    %438 = vmatmul.bf16.gmra.mxu0 %v135
    %v439 = vpop.f32.mrf.mxu0
    %v440 = vadd.f32 0.0, %v439
    %v441 = vpop.f32.mrf.mxu0
    %v442 = vadd.f32 0.0, %v441
    %443 = vdwg.mxu0
    %444 = vst [vmem:[#allocation2] sm:$0xff] %v338
    %445 = vst [vmem:[#allocation2 + $0x8] sm:$0xff] %v367
    %446 = vst [vmem:[#allocation2 + $0x10] sm:$0xff] %v396
    %447 = vst [vmem:[#allocation2 + $0x18] sm:$0xff] %v425
    %448 = vst [vmem:[#allocation2 + $0x20] sm:$0xff] %v340
    %449 = vst [vmem:[#allocation2 + $0x28] sm:$0xff] %v369
    %450 = vst [vmem:[#allocation2 + $0x30] sm:$0xff] %v398
    %451 = vst [vmem:[#allocation2 + $0x38] sm:$0xff] %v427
    %452 = vst [vmem:[#allocation2 + $0x40] sm:$0xff] %v343
    %453 = vst [vmem:[#allocation2 + $0x48] sm:$0xff] %v372
    %454 = vst [vmem:[#allocation2 + $0x50] sm:$0xff] %v401
    %455 = vst [vmem:[#allocation2 + $0x58] sm:$0xff] %v430
    %456 = vst [vmem:[#allocation2 + $0x60] sm:$0xff] %v345
    %457 = vst [vmem:[#allocation2 + $0x68] sm:$0xff] %v374
    %458 = vst [vmem:[#allocation2 + $0x70] sm:$0xff] %v403
    %459 = vst [vmem:[#allocation2 + $0x78] sm:$0xff] %v432
    %460 = vst [vmem:[#allocation2 + $0x80] sm:$0xff] %v348
    %461 = vst [vmem:[#allocation2 + $0x88] sm:$0xff] %v377
    %462 = vst [vmem:[#allocation2 + $0x90] sm:$0xff] %v406
    %463 = vst [vmem:[#allocation2 + $0x98] sm:$0xff] %v435
    %464 = vst [vmem:[#allocation2 + $0xa0] sm:$0xff] %v350
    %465 = vst [vmem:[#allocation2 + $0xa8] sm:$0xff] %v379
    %466 = vst [vmem:[#allocation2 + $0xb0] sm:$0xff] %v408
    %467 = vst [vmem:[#allocation2 + $0xb8] sm:$0xff] %v437
    %468 = vst [vmem:[#allocation2 + $0xc0] sm:$0xff] %v353
    %469 = vst [vmem:[#allocation2 + $0xc8] sm:$0xff] %v382
    %470 = vst [vmem:[#allocation2 + $0xd0] sm:$0xff] %v411
    %471 = vst [vmem:[#allocation2 + $0xd8] sm:$0xff] %v440
    %472 = vst [vmem:[#allocation2 + $0xe0] sm:$0xff] %v355
    %473 = vst [vmem:[#allocation2 + $0xe8] sm:$0xff] %v384
    %474 = vst [vmem:[#allocation2 + $0xf0] sm:$0xff] %v413
    %475 = vst [vmem:[#allocation2 + $0xf8] sm:$0xff] %v442
    %v476 = vld [vmem:[%s1] sm:$0xff]
    %v477 = vld [vmem:[%s1 + $0x8] sm:$0xff]
    %v478 = vld [vmem:[%s1 + $0x10] sm:$0xff]
    %v479 = vld [vmem:[%s1 + $0x18] sm:$0xff]
    %v480 = vld [vmem:[%s1 + $0x20] sm:$0xff]
    %v481 = vld [vmem:[%s1 + $0x28] sm:$0xff]
    %v482 = vld [vmem:[%s1 + $0x30] sm:$0xff]
    %v483 = vld [vmem:[%s1 + $0x38] sm:$0xff]
    %v484 = vld [vmem:[%s1 + $0x40] sm:$0xff]
    %v485 = vld [vmem:[%s1 + $0x48] sm:$0xff]
    %v486 = vld [vmem:[%s1 + $0x50] sm:$0xff]
    %v487 = vld [vmem:[%s1 + $0x58] sm:$0xff]
    %488 = vset.pattern.permute.xlu0 0
    %489 = vperm.xlu0 %488, %v476
    %v490 = vpop.permute.xlu0 %489
    %491 = vset.pattern.permute.xlu0 0
    %492 = vperm.xlu0 %491, %v477
    %v493 = vpop.permute.xlu0 %492
    %494 = vset.pattern.permute.xlu0 0
    %495 = vperm.xlu0 %494, %v478
    %v496 = vpop.permute.xlu0 %495
    %497 = vset.pattern.permute.xlu0 0
    %498 = vperm.xlu0 %497, %v479
    %v499 = vpop.permute.xlu0 %498
    %500 = vset.pattern.permute.xlu0 0
    %501 = vperm.xlu0 %500, %v480
    %v502 = vpop.permute.xlu0 %501
    %503 = vset.pattern.permute.xlu0 0
    %504 = vperm.xlu0 %503, %v481
    %v505 = vpop.permute.xlu0 %504
    %506 = vset.pattern.permute.xlu0 0
    %507 = vperm.xlu0 %506, %v482
    %v508 = vpop.permute.xlu0 %507
    %509 = vset.pattern.permute.xlu0 0
    %510 = vperm.xlu0 %509, %v483
    %v511 = vpop.permute.xlu0 %510
    %512 = vset.pattern.permute.xlu0 0
    %513 = vperm.xlu0 %512, %v484
    %v514 = vpop.permute.xlu0 %513
    %515 = vset.pattern.permute.xlu0 0
    %516 = vperm.xlu0 %515, %v485
    %v517 = vpop.permute.xlu0 %516
    %518 = vset.pattern.permute.xlu0 0
    %519 = vperm.xlu0 %518, %v486
    %v520 = vpop.permute.xlu0 %519
    %521 = vset.pattern.permute.xlu0 0
    %522 = vperm.xlu0 %521, %v487
    %v523 = vpop.permute.xlu0 %522
    %vm524 = vcmp.eq.s32.totalorder %v490, %v83
    %vm525 = vcmp.eq.s32.totalorder %v493, %v83
    %vm526 = vcmp.eq.s32.totalorder %v496, %v83
    %vm527 = vcmp.eq.s32.totalorder %v499, %v83
    %vm528 = vcmp.eq.s32.totalorder %v502, %v83
    %vm529 = vcmp.eq.s32.totalorder %v505, %v83
    %vm530 = vcmp.eq.s32.totalorder %v508, %v83
    %vm531 = vcmp.eq.s32.totalorder %v511, %v83
    %vm532 = vcmp.eq.s32.totalorder %v514, %v83
    %vm533 = vcmp.eq.s32.totalorder %v517, %v83
    %vm534 = vcmp.eq.s32.totalorder %v520, %v83
    %vm535 = vcmp.eq.s32.totalorder %v523, %v83
    %v536 = vsel %vm524, 1, 0
    %v537 = vsel %vm525, 1, 0
    %v538 = vsel %vm526, 1, 0
    %v539 = vsel %vm527, 1, 0
    %v540 = vsel %vm528, 1, 0
    %v541 = vsel %vm529, 1, 0
    %v542 = vsel %vm530, 1, 0
    %v543 = vsel %vm531, 1, 0
    %v544 = vsel %vm532, 1, 0
    %v545 = vsel %vm533, 1, 0
    %v546 = vsel %vm534, 1, 0
    %v547 = vsel %vm535, 1, 0
    %v548 = vcvt.s32.f32 %v536
    %v549 = vcvt.s32.f32 %v537
    %v550 = vcvt.s32.f32 %v538
    %v551 = vcvt.s32.f32 %v539
    %v552 = vcvt.s32.f32 %v540
    %v553 = vcvt.s32.f32 %v541
    %v554 = vcvt.s32.f32 %v542
    %v555 = vcvt.s32.f32 %v543
    %v556 = vcvt.s32.f32 %v544
    %v557 = vcvt.s32.f32 %v545
    %v558 = vcvt.s32.f32 %v546
    %v559 = vcvt.s32.f32 %v547
    %v560 = vpack.c.bf16 %v549, %v548
    %v561 = vpack.c.bf16 %v551, %v550
    %v562 = vpack.c.bf16 %v553, %v552
    %v563 = vpack.c.bf16 %v555, %v554
    %v564 = vpack.c.bf16 %v557, %v556
    %v565 = vpack.c.bf16 %v559, %v558
    %v566 = vld [vmem:[#allocation9] sm:$0xff]
    %v567 = vld [vmem:[#allocation9 + $0x8] sm:$0xff]
    %v568 = vld [vmem:[#allocation9 + $0x10] sm:$0xff]
    %v569 = vld [vmem:[#allocation9 + $0x18] sm:$0xff]
    %v570 = vld [vmem:[#allocation9 + $0x20] sm:$0xff]
    %v571 = vld [vmem:[#allocation9 + $0x28] sm:$0xff]
    %v572 = vld [vmem:[#allocation9 + $0x30] sm:$0xff]
    %v573 = vld [vmem:[#allocation9 + $0x38] sm:$0xff]
    %v574 = vld [vmem:[#allocation9 + $0x40] sm:$0xff]
    %v575 = vld [vmem:[#allocation9 + $0x48] sm:$0xff]
    %v576 = vld [vmem:[#allocation9 + $0x50] sm:$0xff]
    %v577 = vld [vmem:[#allocation9 + $0x58] sm:$0xff]
    %v578 = vld [vmem:[#allocation9 + $0x60] sm:$0xff]
    %v579 = vld [vmem:[#allocation9 + $0x68] sm:$0xff]
    %v580 = vld [vmem:[#allocation9 + $0x70] sm:$0xff]
    %v581 = vld [vmem:[#allocation9 + $0x78] sm:$0xff]
    %v582 = vld [vmem:[#allocation9 + $0x80] sm:$0xff]
    %v583 = vld [vmem:[#allocation9 + $0x88] sm:$0xff]
    %v584 = vld [vmem:[#allocation9 + $0x90] sm:$0xff]
    %v585 = vld [vmem:[#allocation9 + $0x98] sm:$0xff]
    %v586 = vld [vmem:[#allocation9 + $0xa0] sm:$0xff]
    %v587 = vld [vmem:[#allocation9 + $0xa8] sm:$0xff]
    %v588 = vld [vmem:[#allocation9 + $0xb0] sm:$0xff]
    %v589 = vld [vmem:[#allocation9 + $0xb8] sm:$0xff]
    %v590 = vld [vmem:[#allocation9 + $0xc0] sm:$0xff]
    %v591 = vld [vmem:[#allocation9 + $0xc8] sm:$0xff]
    %v592 = vld [vmem:[#allocation9 + $0xd0] sm:$0xff]
    %v593 = vld [vmem:[#allocation9 + $0xd8] sm:$0xff]
    %v594 = vld [vmem:[#allocation9 + $0xe0] sm:$0xff]
    %v595 = vld [vmem:[#allocation9 + $0xe8] sm:$0xff]
    %v596 = vld [vmem:[#allocation9 + $0xf0] sm:$0xff]
    %v597 = vld [vmem:[#allocation9 + $0xf8] sm:$0xff]
    %v630 = vunpack.c.l.b16 %v566
    %v631 = vunpack.c.h.b16 %v566
    %v632 = vunpack.c.l.b16 %v567
    %v633 = vunpack.c.h.b16 %v567
    %v634 = vunpack.c.l.b16 %v568
    %v635 = vunpack.c.h.b16 %v568
    %v636 = vunpack.c.l.b16 %v569
    %v637 = vunpack.c.h.b16 %v569
    %v638 = vunpack.c.l.b16 %v570
    %v639 = vunpack.c.h.b16 %v570
    %v640 = vunpack.c.l.b16 %v571
    %v641 = vunpack.c.h.b16 %v571
    %v642 = vunpack.c.l.b16 %v572
    %v643 = vunpack.c.h.b16 %v572
    %v644 = vunpack.c.l.b16 %v573
    %v645 = vunpack.c.h.b16 %v573
    %v646 = vunpack.c.l.b16 %v574
    %v647 = vunpack.c.h.b16 %v574
    %v648 = vunpack.c.l.b16 %v575
    %v649 = vunpack.c.h.b16 %v575
    %v650 = vunpack.c.l.b16 %v576
    %v651 = vunpack.c.h.b16 %v576
    %v652 = vunpack.c.l.b16 %v577
    %v653 = vunpack.c.h.b16 %v577
    %v654 = vunpack.c.l.b16 %v578
    %v655 = vunpack.c.h.b16 %v578
    %v656 = vunpack.c.l.b16 %v579
    %v657 = vunpack.c.h.b16 %v579
    %v658 = vunpack.c.l.b16 %v580
    %v659 = vunpack.c.h.b16 %v580
    %v660 = vunpack.c.l.b16 %v581
    %v661 = vunpack.c.h.b16 %v581
    %v662 = vunpack.c.l.b16 %v582
    %v663 = vunpack.c.h.b16 %v582
    %v664 = vunpack.c.l.b16 %v583
    %v665 = vunpack.c.h.b16 %v583
    %v666 = vunpack.c.l.b16 %v584
    %v667 = vunpack.c.h.b16 %v584
    %v668 = vunpack.c.l.b16 %v585
    %v669 = vunpack.c.h.b16 %v585
    %v670 = vunpack.c.l.b16 %v586
    %v671 = vunpack.c.h.b16 %v586
    %v672 = vunpack.c.l.b16 %v587
    %v673 = vunpack.c.h.b16 %v587
    %v674 = vunpack.c.l.b16 %v588
    %v675 = vunpack.c.h.b16 %v588
    %v676 = vunpack.c.l.b16 %v589
    %v677 = vunpack.c.h.b16 %v589
    %v678 = vunpack.c.l.b16 %v590
    %v679 = vunpack.c.h.b16 %v590
    %v680 = vunpack.c.l.b16 %v591
    %v681 = vunpack.c.h.b16 %v591
    %v682 = vunpack.c.l.b16 %v592
    %v683 = vunpack.c.h.b16 %v592
    %v684 = vunpack.c.l.b16 %v593
    %v685 = vunpack.c.h.b16 %v593
    %v686 = vunpack.c.l.b16 %v594
    %v687 = vunpack.c.h.b16 %v594
    %v688 = vunpack.c.l.b16 %v595
    %v689 = vunpack.c.h.b16 %v595
    %v690 = vunpack.c.l.b16 %v596
    %v691 = vunpack.c.h.b16 %v596
    %v692 = vunpack.c.l.b16 %v597
    %v693 = vunpack.c.h.b16 %v597
    %v694 = vpack.c.b16 %v634, %v630
    %v695 = vpack.c.b16 %v635, %v631
    %v696 = vpack.c.b16 %v636, %v632
    %v697 = vpack.c.b16 %v637, %v633
    %v698 = vpack.c.b16 %v642, %v638
    %v699 = vpack.c.b16 %v643, %v639
    %v700 = vpack.c.b16 %v644, %v640
    %v701 = vpack.c.b16 %v645, %v641
    %v702 = vpack.c.b16 %v650, %v646
    %v703 = vpack.c.b16 %v651, %v647
    %v704 = vpack.c.b16 %v652, %v648
    %v705 = vpack.c.b16 %v653, %v649
    %v706 = vpack.c.b16 %v658, %v654
    %v707 = vpack.c.b16 %v659, %v655
    %v708 = vpack.c.b16 %v660, %v656
    %v709 = vpack.c.b16 %v661, %v657
    %v710 = vpack.c.b16 %v666, %v662
    %v711 = vpack.c.b16 %v667, %v663
    %v712 = vpack.c.b16 %v668, %v664
    %v713 = vpack.c.b16 %v669, %v665
    %v714 = vpack.c.b16 %v674, %v670
    %v715 = vpack.c.b16 %v675, %v671
    %v716 = vpack.c.b16 %v676, %v672
    %v717 = vpack.c.b16 %v677, %v673
    %v718 = vpack.c.b16 %v682, %v678
    %v719 = vpack.c.b16 %v683, %v679
    %v720 = vpack.c.b16 %v684, %v680
    %v721 = vpack.c.b16 %v685, %v681
    %v722 = vpack.c.b16 %v690, %v686
    %v723 = vpack.c.b16 %v691, %v687
    %v724 = vpack.c.b16 %v692, %v688
    %v725 = vpack.c.b16 %v693, %v689
    %758 = vmatpush.bf16.msra.mxu0 %v722
    %759 = vmatpush.bf16.msra.mxu0 %v718
    %760 = vmatpush.bf16.msra.mxu0 %v714
    %761 = vmatpush.bf16.msra.mxu0 %v710
    %762 = vmatpush.bf16.msra.mxu0 %v706
    %763 = vmatpush.bf16.msra.mxu0 %v702
    %764 = vmatpush.bf16.msra.mxu0 %v698
    %765 = vmatpush.bf16.msra.mxu0 %v694
    %766 = vmatmul.bf16.gmra.mxu0 %v560
    %v767 = vpop.f32.mrf.mxu0
    %v768 = vadd.f32 0.0, %v767
    %v769 = vpop.f32.mrf.mxu0
    %v770 = vadd.f32 0.0, %v769
    %771 = vmatmul.bf16.gmra.mxu0 %v561
    %v772 = vpop.f32.mrf.mxu0
    %v773 = vadd.f32 0.0, %v772
    %v774 = vpop.f32.mrf.mxu0
    %v775 = vadd.f32 0.0, %v774
    %776 = vmatmul.bf16.gmra.mxu0 %v562
    %v777 = vpop.f32.mrf.mxu0
    %v778 = vadd.f32 0.0, %v777
    %v779 = vpop.f32.mrf.mxu0
    %v780 = vadd.f32 0.0, %v779
    %781 = vmatmul.bf16.gmra.mxu0 %v563
    %v782 = vpop.f32.mrf.mxu0
    %v783 = vadd.f32 0.0, %v782
    %v784 = vpop.f32.mrf.mxu0
    %v785 = vadd.f32 0.0, %v784
    %786 = vmatmul.bf16.gmra.mxu0 %v564
    %v787 = vpop.f32.mrf.mxu0
    %v788 = vadd.f32 0.0, %v787
    %v789 = vpop.f32.mrf.mxu0
    %v790 = vadd.f32 0.0, %v789
    %791 = vmatmul.bf16.gmra.mxu0 %v565
    %v792 = vpop.f32.mrf.mxu0
    %v793 = vadd.f32 0.0, %v792
    %v794 = vpop.f32.mrf.mxu0
    %v795 = vadd.f32 0.0, %v794
    %796 = vdwg.mxu0
    %797 = vmatpush.bf16.msra.mxu0 %v723
    %798 = vmatpush.bf16.msra.mxu0 %v719
    %799 = vmatpush.bf16.msra.mxu0 %v715
    %800 = vmatpush.bf16.msra.mxu0 %v711
    %801 = vmatpush.bf16.msra.mxu0 %v707
    %802 = vmatpush.bf16.msra.mxu0 %v703
    %803 = vmatpush.bf16.msra.mxu0 %v699
    %804 = vmatpush.bf16.msra.mxu0 %v695
    %805 = vmatmul.bf16.gmra.mxu0 %v560
    %v806 = vpop.f32.mrf.mxu0
    %v807 = vadd.f32 0.0, %v806
    %v808 = vpop.f32.mrf.mxu0
    %v809 = vadd.f32 0.0, %v808
    %810 = vmatmul.bf16.gmra.mxu0 %v561
    %v811 = vpop.f32.mrf.mxu0
    %v812 = vadd.f32 0.0, %v811
    %v813 = vpop.f32.mrf.mxu0
    %v814 = vadd.f32 0.0, %v813
    %815 = vmatmul.bf16.gmra.mxu0 %v562
    %v816 = vpop.f32.mrf.mxu0
    %v817 = vadd.f32 0.0, %v816
    %v818 = vpop.f32.mrf.mxu0
    %v819 = vadd.f32 0.0, %v818
    %820 = vmatmul.bf16.gmra.mxu0 %v563
    %v821 = vpop.f32.mrf.mxu0
    %v822 = vadd.f32 0.0, %v821
    %v823 = vpop.f32.mrf.mxu0
    %v824 = vadd.f32 0.0, %v823
    %825 = vmatmul.bf16.gmra.mxu0 %v564
    %v826 = vpop.f32.mrf.mxu0
    %v827 = vadd.f32 0.0, %v826
    %v828 = vpop.f32.mrf.mxu0
    %v829 = vadd.f32 0.0, %v828
    %830 = vmatmul.bf16.gmra.mxu0 %v565
    %v831 = vpop.f32.mrf.mxu0
    %v832 = vadd.f32 0.0, %v831
    %v833 = vpop.f32.mrf.mxu0
    %v834 = vadd.f32 0.0, %v833
    %835 = vdwg.mxu0
    %836 = vmatpush.bf16.msra.mxu0 %v724
    %837 = vmatpush.bf16.msra.mxu0 %v720
    %838 = vmatpush.bf16.msra.mxu0 %v716
    %839 = vmatpush.bf16.msra.mxu0 %v712
    %840 = vmatpush.bf16.msra.mxu0 %v708
    %841 = vmatpush.bf16.msra.mxu0 %v704
    %842 = vmatpush.bf16.msra.mxu0 %v700
    %843 = vmatpush.bf16.msra.mxu0 %v696
    %844 = vmatmul.bf16.gmra.mxu0 %v560
    %v845 = vpop.f32.mrf.mxu0
    %v846 = vadd.f32 0.0, %v845
    %v847 = vpop.f32.mrf.mxu0
    %v848 = vadd.f32 0.0, %v847
    %849 = vmatmul.bf16.gmra.mxu0 %v561
    %v850 = vpop.f32.mrf.mxu0
    %v851 = vadd.f32 0.0, %v850
    %v852 = vpop.f32.mrf.mxu0
    %v853 = vadd.f32 0.0, %v852
    %854 = vmatmul.bf16.gmra.mxu0 %v562
    %v855 = vpop.f32.mrf.mxu0
    %v856 = vadd.f32 0.0, %v855
    %v857 = vpop.f32.mrf.mxu0
    %v858 = vadd.f32 0.0, %v857
    %859 = vmatmul.bf16.gmra.mxu0 %v563
    %v860 = vpop.f32.mrf.mxu0
    %v861 = vadd.f32 0.0, %v860
    %v862 = vpop.f32.mrf.mxu0
    %v863 = vadd.f32 0.0, %v862
    %864 = vmatmul.bf16.gmra.mxu0 %v564
    %v865 = vpop.f32.mrf.mxu0
    %v866 = vadd.f32 0.0, %v865
    %v867 = vpop.f32.mrf.mxu0
    %v868 = vadd.f32 0.0, %v867
    %869 = vmatmul.bf16.gmra.mxu0 %v565
    %v870 = vpop.f32.mrf.mxu0
    %v871 = vadd.f32 0.0, %v870
    %v872 = vpop.f32.mrf.mxu0
    %v873 = vadd.f32 0.0, %v872
    %874 = vdwg.mxu0
    %875 = vmatpush.bf16.msra.mxu0 %v725
    %876 = vmatpush.bf16.msra.mxu0 %v721
    %877 = vmatpush.bf16.msra.mxu0 %v717
    %878 = vmatpush.bf16.msra.mxu0 %v713
    %879 = vmatpush.bf16.msra.mxu0 %v709
    %880 = vmatpush.bf16.msra.mxu0 %v705
    %881 = vmatpush.bf16.msra.mxu0 %v701
    %882 = vmatpush.bf16.msra.mxu0 %v697
    %883 = vmatmul.bf16.gmra.mxu0 %v560
    %v884 = vpop.f32.mrf.mxu0
    %v885 = vadd.f32 0.0, %v884
    %v886 = vpop.f32.mrf.mxu0
    %v887 = vadd.f32 0.0, %v886
    %888 = vmatmul.bf16.gmra.mxu0 %v561
    %v889 = vpop.f32.mrf.mxu0
    %v890 = vadd.f32 0.0, %v889
    %v891 = vpop.f32.mrf.mxu0
    %v892 = vadd.f32 0.0, %v891
    %893 = vmatmul.bf16.gmra.mxu0 %v562
    %v894 = vpop.f32.mrf.mxu0
    %v895 = vadd.f32 0.0, %v894
    %v896 = vpop.f32.mrf.mxu0
    %v897 = vadd.f32 0.0, %v896
    %898 = vmatmul.bf16.gmra.mxu0 %v563
    %v899 = vpop.f32.mrf.mxu0
    %v900 = vadd.f32 0.0, %v899
    %v901 = vpop.f32.mrf.mxu0
    %v902 = vadd.f32 0.0, %v901
    %903 = vmatmul.bf16.gmra.mxu0 %v564
    %v904 = vpop.f32.mrf.mxu0
    %v905 = vadd.f32 0.0, %v904
    %v906 = vpop.f32.mrf.mxu0
    %v907 = vadd.f32 0.0, %v906
    %908 = vmatmul.bf16.gmra.mxu0 %v565
    %v909 = vpop.f32.mrf.mxu0
    %v910 = vadd.f32 0.0, %v909
    %v911 = vpop.f32.mrf.mxu0
    %v912 = vadd.f32 0.0, %v911
    %913 = vdwg.mxu0
    %914 = vst [vmem:[#allocation3] sm:$0xff] %v768
    %915 = vst [vmem:[#allocation3 + $0x8] sm:$0xff] %v807
    %916 = vst [vmem:[#allocation3 + $0x10] sm:$0xff] %v846
    %917 = vst [vmem:[#allocation3 + $0x18] sm:$0xff] %v885
    %918 = vst [vmem:[#allocation3 + $0x20] sm:$0xff] %v770
    %919 = vst [vmem:[#allocation3 + $0x28] sm:$0xff] %v809
    %920 = vst [vmem:[#allocation3 + $0x30] sm:$0xff] %v848
    %921 = vst [vmem:[#allocation3 + $0x38] sm:$0xff] %v887
    %922 = vst [vmem:[#allocation3 + $0x40] sm:$0xff] %v773
    %923 = vst [vmem:[#allocation3 + $0x48] sm:$0xff] %v812
    %924 = vst [vmem:[#allocation3 + $0x50] sm:$0xff] %v851
    %925 = vst [vmem:[#allocation3 + $0x58] sm:$0xff] %v890
    %926 = vst [vmem:[#allocation3 + $0x60] sm:$0xff] %v775
    %927 = vst [vmem:[#allocation3 + $0x68] sm:$0xff] %v814
    %928 = vst [vmem:[#allocation3 + $0x70] sm:$0xff] %v853
    %929 = vst [vmem:[#allocation3 + $0x78] sm:$0xff] %v892
    %930 = vst [vmem:[#allocation3 + $0x80] sm:$0xff] %v778
    %931 = vst [vmem:[#allocation3 + $0x88] sm:$0xff] %v817
    %932 = vst [vmem:[#allocation3 + $0x90] sm:$0xff] %v856
    %933 = vst [vmem:[#allocation3 + $0x98] sm:$0xff] %v895
    %934 = vst [vmem:[#allocation3 + $0xa0] sm:$0xff] %v780
    %935 = vst [vmem:[#allocation3 + $0xa8] sm:$0xff] %v819
    %936 = vst [vmem:[#allocation3 + $0xb0] sm:$0xff] %v858
    %937 = vst [vmem:[#allocation3 + $0xb8] sm:$0xff] %v897
    %938 = vst [vmem:[#allocation3 + $0xc0] sm:$0xff] %v783
    %939 = vst [vmem:[#allocation3 + $0xc8] sm:$0xff] %v822
    %940 = vst [vmem:[#allocation3 + $0xd0] sm:$0xff] %v861
    %941 = vst [vmem:[#allocation3 + $0xd8] sm:$0xff] %v900
    %942 = vst [vmem:[#allocation3 + $0xe0] sm:$0xff] %v785
    %943 = vst [vmem:[#allocation3 + $0xe8] sm:$0xff] %v824
    %944 = vst [vmem:[#allocation3 + $0xf0] sm:$0xff] %v863
    %945 = vst [vmem:[#allocation3 + $0xf8] sm:$0xff] %v902
    %946 = vst [vmem:[#allocation3 + $0x100] sm:$0xff] %v788
    %947 = vst [vmem:[#allocation3 + $0x108] sm:$0xff] %v827
    %948 = vst [vmem:[#allocation3 + $0x110] sm:$0xff] %v866
    %949 = vst [vmem:[#allocation3 + $0x118] sm:$0xff] %v905
    %950 = vst [vmem:[#allocation3 + $0x120] sm:$0xff] %v790
    %951 = vst [vmem:[#allocation3 + $0x128] sm:$0xff] %v829
    %952 = vst [vmem:[#allocation3 + $0x130] sm:$0xff] %v868
    %953 = vst [vmem:[#allocation3 + $0x138] sm:$0xff] %v907
    %954 = vst [vmem:[#allocation3 + $0x140] sm:$0xff] %v793
    %955 = vst [vmem:[#allocation3 + $0x148] sm:$0xff] %v832
    %956 = vst [vmem:[#allocation3 + $0x150] sm:$0xff] %v871
    %957 = vst [vmem:[#allocation3 + $0x158] sm:$0xff] %v910
    %958 = vst [vmem:[#allocation3 + $0x160] sm:$0xff] %v795
    %959 = vst [vmem:[#allocation3 + $0x168] sm:$0xff] %v834
    %960 = vst [vmem:[#allocation3 + $0x170] sm:$0xff] %v873
    %961 = vst [vmem:[#allocation3 + $0x178] sm:$0xff] %v912
    %s962 = smul.u32 4, 16
    %s963 = smul.u32 %s962, 8
    %s964 = sshll.u32 %s963, 4
    %965 = dma.done [#allocation5], %s964
    %v966 = vpack.c.bf16 0.0, 0.0
    %v967 = vld [vmem:[#allocation4] sm:$0xff]
    %v968 = vld [vmem:[#allocation4 + $0x8] sm:$0xff]
    %v969 = vld [vmem:[#allocation4 + $0x10] sm:$0xff]
    %v970 = vld [vmem:[#allocation4 + $0x18] sm:$0xff]
    %v971 = vld [vmem:[#allocation4 + $0x20] sm:$0xff]
    %v972 = vld [vmem:[#allocation4 + $0x28] sm:$0xff]
    %v973 = vld [vmem:[#allocation4 + $0x30] sm:$0xff]
    %v974 = vld [vmem:[#allocation4 + $0x38] sm:$0xff]
    %v975 = vld [vmem:[#allocation4 + $0x40] sm:$0xff]
    %v976 = vld [vmem:[#allocation4 + $0x48] sm:$0xff]
    %v977 = vld [vmem:[#allocation4 + $0x50] sm:$0xff]
    %v978 = vld [vmem:[#allocation4 + $0x58] sm:$0xff]
    %v979 = vld [vmem:[#allocation4 + $0x60] sm:$0xff]
    %v980 = vld [vmem:[#allocation4 + $0x68] sm:$0xff]
    %v981 = vld [vmem:[#allocation4 + $0x70] sm:$0xff]
    %v982 = vld [vmem:[#allocation4 + $0x78] sm:$0xff]
    %v983 = vld [vmem:[#allocation4 + $0x80] sm:$0xff]
    %v984 = vld [vmem:[#allocation4 + $0x88] sm:$0xff]
    %v985 = vld [vmem:[#allocation4 + $0x90] sm:$0xff]
    %v986 = vld [vmem:[#allocation4 + $0x98] sm:$0xff]
    %v987 = vld [vmem:[#allocation4 + $0xa0] sm:$0xff]
    %v988 = vld [vmem:[#allocation4 + $0xa8] sm:$0xff]
    %v989 = vld [vmem:[#allocation4 + $0xb0] sm:$0xff]
    %v990 = vld [vmem:[#allocation4 + $0xb8] sm:$0xff]
    %v991 = vld [vmem:[#allocation4 + $0xc0] sm:$0xff]
    %v992 = vld [vmem:[#allocation4 + $0xc8] sm:$0xff]
    %v993 = vld [vmem:[#allocation4 + $0xd0] sm:$0xff]
    %v994 = vld [vmem:[#allocation4 + $0xd8] sm:$0xff]
    %v995 = vld [vmem:[#allocation4 + $0xe0] sm:$0xff]
    %v996 = vld [vmem:[#allocation4 + $0xe8] sm:$0xff]
    %v997 = vld [vmem:[#allocation4 + $0xf0] sm:$0xff]
    %v998 = vld [vmem:[#allocation4 + $0xf8] sm:$0xff]
    %v999 = vld [vmem:[#allocation4 + $0x100] sm:$0xff]
    %v1000 = vld [vmem:[#allocation4 + $0x108] sm:$0xff]
    %v1001 = vld [vmem:[#allocation4 + $0x110] sm:$0xff]
    %v1002 = vld [vmem:[#allocation4 + $0x118] sm:$0xff]
    %v1003 = vld [vmem:[#allocation4 + $0x120] sm:$0xff]
    %v1004 = vld [vmem:[#allocation4 + $0x128] sm:$0xff]
    %v1005 = vld [vmem:[#allocation4 + $0x130] sm:$0xff]
    %v1006 = vld [vmem:[#allocation4 + $0x138] sm:$0xff]
    %v1007 = vld [vmem:[#allocation4 + $0x140] sm:$0xff]
    %v1008 = vld [vmem:[#allocation4 + $0x148] sm:$0xff]
    %v1009 = vld [vmem:[#allocation4 + $0x150] sm:$0xff]
    %v1010 = vld [vmem:[#allocation4 + $0x158] sm:$0xff]
    %v1011 = vld [vmem:[#allocation4 + $0x160] sm:$0xff]
    %v1012 = vld [vmem:[#allocation4 + $0x168] sm:$0xff]
    %v1013 = vld [vmem:[#allocation4 + $0x170] sm:$0xff]
    %v1014 = vld [vmem:[#allocation4 + $0x178] sm:$0xff]
    %v1015 = vld [vmem:[#allocation4 + $0x180] sm:$0xff]
    %v1016 = vld [vmem:[#allocation4 + $0x188] sm:$0xff]
    %v1017 = vld [vmem:[#allocation4 + $0x190] sm:$0xff]
    %v1018 = vld [vmem:[#allocation4 + $0x198] sm:$0xff]
    %v1019 = vld [vmem:[#allocation4 + $0x1a0] sm:$0xff]
    %v1020 = vld [vmem:[#allocation4 + $0x1a8] sm:$0xff]
    %v1021 = vld [vmem:[#allocation4 + $0x1b0] sm:$0xff]
    %v1022 = vld [vmem:[#allocation4 + $0x1b8] sm:$0xff]
    %v1023 = vld [vmem:[#allocation4 + $0x1c0] sm:$0xff]
    %v1024 = vld [vmem:[#allocation4 + $0x1c8] sm:$0xff]
    %v1025 = vld [vmem:[#allocation4 + $0x1d0] sm:$0xff]
    %v1026 = vld [vmem:[#allocation4 + $0x1d8] sm:$0xff]
    %v1027 = vld [vmem:[#allocation4 + $0x1e0] sm:$0xff]
    %v1028 = vld [vmem:[#allocation4 + $0x1e8] sm:$0xff]
    %v1029 = vld [vmem:[#allocation4 + $0x1f0] sm:$0xff]
    %v1030 = vld [vmem:[#allocation4 + $0x1f8] sm:$0xff]
    %v1095 = vunpack.c.l.b16 %v967
    %v1096 = vunpack.c.h.b16 %v967
    %v1097 = vunpack.c.l.b16 %v968
    %v1098 = vunpack.c.h.b16 %v968
    %v1099 = vunpack.c.l.b16 %v969
    %v1100 = vunpack.c.h.b16 %v969
    %v1101 = vunpack.c.l.b16 %v970
    %v1102 = vunpack.c.h.b16 %v970
    %v1103 = vunpack.c.l.b16 %v971
    %v1104 = vunpack.c.h.b16 %v971
    %v1105 = vunpack.c.l.b16 %v972
    %v1106 = vunpack.c.h.b16 %v972
    %v1107 = vunpack.c.l.b16 %v973
    %v1108 = vunpack.c.h.b16 %v973
    %v1109 = vunpack.c.l.b16 %v974
    %v1110 = vunpack.c.h.b16 %v974
    %v1111 = vunpack.c.l.b16 %v975
    %v1112 = vunpack.c.h.b16 %v975
    %v1113 = vunpack.c.l.b16 %v976
    %v1114 = vunpack.c.h.b16 %v976
    %v1115 = vunpack.c.l.b16 %v977
    %v1116 = vunpack.c.h.b16 %v977
    %v1117 = vunpack.c.l.b16 %v978
    %v1118 = vunpack.c.h.b16 %v978
    %v1119 = vunpack.c.l.b16 %v979
    %v1120 = vunpack.c.h.b16 %v979
    %v1121 = vunpack.c.l.b16 %v980
    %v1122 = vunpack.c.h.b16 %v980
    %v1123 = vunpack.c.l.b16 %v981
    %v1124 = vunpack.c.h.b16 %v981
    %v1125 = vunpack.c.l.b16 %v982
    %v1126 = vunpack.c.h.b16 %v982
    %v1127 = vunpack.c.l.b16 %v983
    %v1128 = vunpack.c.h.b16 %v983
    %v1129 = vunpack.c.l.b16 %v984
    %v1130 = vunpack.c.h.b16 %v984
    %v1131 = vunpack.c.l.b16 %v985
    %v1132 = vunpack.c.h.b16 %v985
    %v1133 = vunpack.c.l.b16 %v986
    %v1134 = vunpack.c.h.b16 %v986
    %v1135 = vunpack.c.l.b16 %v987
    %v1136 = vunpack.c.h.b16 %v987
    %v1137 = vunpack.c.l.b16 %v988
    %v1138 = vunpack.c.h.b16 %v988
    %v1139 = vunpack.c.l.b16 %v989
    %v1140 = vunpack.c.h.b16 %v989
    %v1141 = vunpack.c.l.b16 %v990
    %v1142 = vunpack.c.h.b16 %v990
    %v1143 = vunpack.c.l.b16 %v991
    %v1144 = vunpack.c.h.b16 %v991
    %v1145 = vunpack.c.l.b16 %v992
    %v1146 = vunpack.c.h.b16 %v992
    %v1147 = vunpack.c.l.b16 %v993
    %v1148 = vunpack.c.h.b16 %v993
    %v1149 = vunpack.c.l.b16 %v994
    %v1150 = vunpack.c.h.b16 %v994
    %v1151 = vunpack.c.l.b16 %v995
    %v1152 = vunpack.c.h.b16 %v995
    %v1153 = vunpack.c.l.b16 %v996
    %v1154 = vunpack.c.h.b16 %v996
    %v1155 = vunpack.c.l.b16 %v997
    %v1156 = vunpack.c.h.b16 %v997
    %v1157 = vunpack.c.l.b16 %v998
    %v1158 = vunpack.c.h.b16 %v998
    %v1159 = vunpack.c.l.b16 %v999
    %v1160 = vunpack.c.h.b16 %v999
    %v1161 = vunpack.c.l.b16 %v1000
    %v1162 = vunpack.c.h.b16 %v1000
    %v1163 = vunpack.c.l.b16 %v1001
    %v1164 = vunpack.c.h.b16 %v1001
    %v1165 = vunpack.c.l.b16 %v1002
    %v1166 = vunpack.c.h.b16 %v1002
    %v1167 = vunpack.c.l.b16 %v1003
    %v1168 = vunpack.c.h.b16 %v1003
    %v1169 = vunpack.c.l.b16 %v1004
    %v1170 = vunpack.c.h.b16 %v1004
    %v1171 = vunpack.c.l.b16 %v1005
    %v1172 = vunpack.c.h.b16 %v1005
    %v1173 = vunpack.c.l.b16 %v1006
    %v1174 = vunpack.c.h.b16 %v1006
    %v1175 = vunpack.c.l.b16 %v1007
    %v1176 = vunpack.c.h.b16 %v1007
    %v1177 = vunpack.c.l.b16 %v1008
    %v1178 = vunpack.c.h.b16 %v1008
    %v1179 = vunpack.c.l.b16 %v1009
    %v1180 = vunpack.c.h.b16 %v1009
    %v1181 = vunpack.c.l.b16 %v1010
    %v1182 = vunpack.c.h.b16 %v1010
    %v1183 = vunpack.c.l.b16 %v1011
    %v1184 = vunpack.c.h.b16 %v1011
    %v1185 = vunpack.c.l.b16 %v1012
    %v1186 = vunpack.c.h.b16 %v1012
    %v1187 = vunpack.c.l.b16 %v1013
    %v1188 = vunpack.c.h.b16 %v1013
    %v1189 = vunpack.c.l.b16 %v1014
    %v1190 = vunpack.c.h.b16 %v1014
    %v1191 = vunpack.c.l.b16 %v1015
    %v1192 = vunpack.c.h.b16 %v1015
    %v1193 = vunpack.c.l.b16 %v1016
    %v1194 = vunpack.c.h.b16 %v1016
    %v1195 = vunpack.c.l.b16 %v1017
    %v1196 = vunpack.c.h.b16 %v1017
    %v1197 = vunpack.c.l.b16 %v1018
    %v1198 = vunpack.c.h.b16 %v1018
    %v1199 = vunpack.c.l.b16 %v1019
    %v1200 = vunpack.c.h.b16 %v1019
    %v1201 = vunpack.c.l.b16 %v1020
    %v1202 = vunpack.c.h.b16 %v1020
    %v1203 = vunpack.c.l.b16 %v1021
    %v1204 = vunpack.c.h.b16 %v1021
    %v1205 = vunpack.c.l.b16 %v1022
    %v1206 = vunpack.c.h.b16 %v1022
    %v1207 = vunpack.c.l.b16 %v1023
    %v1208 = vunpack.c.h.b16 %v1023
    %v1209 = vunpack.c.l.b16 %v1024
    %v1210 = vunpack.c.h.b16 %v1024
    %v1211 = vunpack.c.l.b16 %v1025
    %v1212 = vunpack.c.h.b16 %v1025
    %v1213 = vunpack.c.l.b16 %v1026
    %v1214 = vunpack.c.h.b16 %v1026
    %v1215 = vunpack.c.l.b16 %v1027
    %v1216 = vunpack.c.h.b16 %v1027
    %v1217 = vunpack.c.l.b16 %v1028
    %v1218 = vunpack.c.h.b16 %v1028
    %v1219 = vunpack.c.l.b16 %v1029
    %v1220 = vunpack.c.h.b16 %v1029
    %v1221 = vunpack.c.l.b16 %v1030
    %v1222 = vunpack.c.h.b16 %v1030
    %v1223 = vpack.c.b16 %v1103, %v1095
    %v1224 = vpack.c.b16 %v1104, %v1096
    %v1225 = vpack.c.b16 %v1105, %v1097
    %v1226 = vpack.c.b16 %v1106, %v1098
    %v1227 = vpack.c.b16 %v1107, %v1099
    %v1228 = vpack.c.b16 %v1108, %v1100
    %v1229 = vpack.c.b16 %v1109, %v1101
    %v1230 = vpack.c.b16 %v1110, %v1102
    %v1231 = vpack.c.b16 %v1119, %v1111
    %v1232 = vpack.c.b16 %v1120, %v1112
    %v1233 = vpack.c.b16 %v1121, %v1113
    %v1234 = vpack.c.b16 %v1122, %v1114
    %v1235 = vpack.c.b16 %v1123, %v1115
    %v1236 = vpack.c.b16 %v1124, %v1116
    %v1237 = vpack.c.b16 %v1125, %v1117
    %v1238 = vpack.c.b16 %v1126, %v1118
    %v1239 = vpack.c.b16 %v1135, %v1127
    %v1240 = vpack.c.b16 %v1136, %v1128
    %v1241 = vpack.c.b16 %v1137, %v1129
    %v1242 = vpack.c.b16 %v1138, %v1130
    %v1243 = vpack.c.b16 %v1139, %v1131
    %v1244 = vpack.c.b16 %v1140, %v1132
    %v1245 = vpack.c.b16 %v1141, %v1133
    %v1246 = vpack.c.b16 %v1142, %v1134
    %v1247 = vpack.c.b16 %v1151, %v1143
    %v1248 = vpack.c.b16 %v1152, %v1144
    %v1249 = vpack.c.b16 %v1153, %v1145
    %v1250 = vpack.c.b16 %v1154, %v1146
    %v1251 = vpack.c.b16 %v1155, %v1147
    %v1252 = vpack.c.b16 %v1156, %v1148
    %v1253 = vpack.c.b16 %v1157, %v1149
    %v1254 = vpack.c.b16 %v1158, %v1150
    %v1255 = vpack.c.b16 %v1167, %v1159
    %v1256 = vpack.c.b16 %v1168, %v1160
    %v1257 = vpack.c.b16 %v1169, %v1161
    %v1258 = vpack.c.b16 %v1170, %v1162
    %v1259 = vpack.c.b16 %v1171, %v1163
    %v1260 = vpack.c.b16 %v1172, %v1164
    %v1261 = vpack.c.b16 %v1173, %v1165
    %v1262 = vpack.c.b16 %v1174, %v1166
    %v1263 = vpack.c.b16 %v1183, %v1175
    %v1264 = vpack.c.b16 %v1184, %v1176
    %v1265 = vpack.c.b16 %v1185, %v1177
    %v1266 = vpack.c.b16 %v1186, %v1178
    %v1267 = vpack.c.b16 %v1187, %v1179
    %v1268 = vpack.c.b16 %v1188, %v1180
    %v1269 = vpack.c.b16 %v1189, %v1181
    %v1270 = vpack.c.b16 %v1190, %v1182
    %v1271 = vpack.c.b16 %v1199, %v1191
    %v1272 = vpack.c.b16 %v1200, %v1192
    %v1273 = vpack.c.b16 %v1201, %v1193
    %v1274 = vpack.c.b16 %v1202, %v1194
    %v1275 = vpack.c.b16 %v1203, %v1195
    %v1276 = vpack.c.b16 %v1204, %v1196
    %v1277 = vpack.c.b16 %v1205, %v1197
    %v1278 = vpack.c.b16 %v1206, %v1198
    %v1279 = vpack.c.b16 %v1215, %v1207
    %v1280 = vpack.c.b16 %v1216, %v1208
    %v1281 = vpack.c.b16 %v1217, %v1209
    %v1282 = vpack.c.b16 %v1218, %v1210
    %v1283 = vpack.c.b16 %v1219, %v1211
    %v1284 = vpack.c.b16 %v1220, %v1212
    %v1285 = vpack.c.b16 %v1221, %v1213
    %v1286 = vpack.c.b16 %v1222, %v1214
    %1351 = vmatpush.bf16.msra.mxu0 %v1279
    %1352 = vmatpush.bf16.msra.mxu0 %v1271
    %1353 = vmatpush.bf16.msra.mxu0 %v1263
    %1354 = vmatpush.bf16.msra.mxu0 %v1255
    %1355 = vmatpush.bf16.msra.mxu0 %v1247
    %1356 = vmatpush.bf16.msra.mxu0 %v1239
    %1357 = vmatpush.bf16.msra.mxu0 %v1231
    %1358 = vmatpush.bf16.msra.mxu0 %v1223
    %1359 = vmatmul.bf16.gmra.mxu0 %v966
    %v1360 = vpop.f32.mrf.mxu0
    %v1361 = vadd.f32 0.0, %v1360
    %v1362 = vpop.f32.mrf.mxu0
    %1363 = vdwg.mxu0
    %1364 = vmatpush.bf16.msra.mxu0 %v1280
    %1365 = vmatpush.bf16.msra.mxu0 %v1272
    %1366 = vmatpush.bf16.msra.mxu0 %v1264
    %1367 = vmatpush.bf16.msra.mxu0 %v1256
    %1368 = vmatpush.bf16.msra.mxu0 %v1248
    %1369 = vmatpush.bf16.msra.mxu0 %v1240
    %1370 = vmatpush.bf16.msra.mxu0 %v1232
    %1371 = vmatpush.bf16.msra.mxu0 %v1224
    %1372 = vmatmul.bf16.gmra.mxu0 %v966
    %v1373 = vpop.f32.mrf.mxu0
    %v1374 = vadd.f32 0.0, %v1373
    %v1375 = vpop.f32.mrf.mxu0
    %1376 = vdwg.mxu0
    %1377 = vmatpush.bf16.msra.mxu0 %v1281
    %1378 = vmatpush.bf16.msra.mxu0 %v1273
    %1379 = vmatpush.bf16.msra.mxu0 %v1265
    %1380 = vmatpush.bf16.msra.mxu0 %v1257
    %1381 = vmatpush.bf16.msra.mxu0 %v1249
    %1382 = vmatpush.bf16.msra.mxu0 %v1241
    %1383 = vmatpush.bf16.msra.mxu0 %v1233
    %1384 = vmatpush.bf16.msra.mxu0 %v1225
    %1385 = vmatmul.bf16.gmra.mxu0 %v966
    %v1386 = vpop.f32.mrf.mxu0
    %v1387 = vadd.f32 0.0, %v1386
    %v1388 = vpop.f32.mrf.mxu0
    %1389 = vdwg.mxu0
    %1390 = vmatpush.bf16.msra.mxu0 %v1282
    %1391 = vmatpush.bf16.msra.mxu0 %v1274
    %1392 = vmatpush.bf16.msra.mxu0 %v1266
    %1393 = vmatpush.bf16.msra.mxu0 %v1258
    %1394 = vmatpush.bf16.msra.mxu0 %v1250
    %1395 = vmatpush.bf16.msra.mxu0 %v1242
    %1396 = vmatpush.bf16.msra.mxu0 %v1234
    %1397 = vmatpush.bf16.msra.mxu0 %v1226
    %1398 = vmatmul.bf16.gmra.mxu0 %v966
    %v1399 = vpop.f32.mrf.mxu0
    %v1400 = vadd.f32 0.0, %v1399
    %v1401 = vpop.f32.mrf.mxu0
    %1402 = vdwg.mxu0
    %1403 = vmatpush.bf16.msra.mxu0 %v1283
    %1404 = vmatpush.bf16.msra.mxu0 %v1275
    %1405 = vmatpush.bf16.msra.mxu0 %v1267
    %1406 = vmatpush.bf16.msra.mxu0 %v1259
    %1407 = vmatpush.bf16.msra.mxu0 %v1251
    %1408 = vmatpush.bf16.msra.mxu0 %v1243
    %1409 = vmatpush.bf16.msra.mxu0 %v1235
    %1410 = vmatpush.bf16.msra.mxu0 %v1227
    %1411 = vmatmul.bf16.gmra.mxu0 %v966
    %v1412 = vpop.f32.mrf.mxu0
    %v1413 = vpop.f32.mrf.mxu0
    %v1414 = vadd.f32 0.0, %v1413
    %1415 = vdwg.mxu0
    %1416 = vmatpush.bf16.msra.mxu0 %v1284
    %1417 = vmatpush.bf16.msra.mxu0 %v1276
    %1418 = vmatpush.bf16.msra.mxu0 %v1268
    %1419 = vmatpush.bf16.msra.mxu0 %v1260
    %1420 = vmatpush.bf16.msra.mxu0 %v1252
    %1421 = vmatpush.bf16.msra.mxu0 %v1244
    %1422 = vmatpush.bf16.msra.mxu0 %v1236
    %1423 = vmatpush.bf16.msra.mxu0 %v1228
    %1424 = vmatmul.bf16.gmra.mxu0 %v966
    %v1425 = vpop.f32.mrf.mxu0
    %v1426 = vpop.f32.mrf.mxu0
    %v1427 = vadd.f32 0.0, %v1426
    %1428 = vdwg.mxu0
    %1429 = vmatpush.bf16.msra.mxu0 %v1285
    %1430 = vmatpush.bf16.msra.mxu0 %v1277
    %1431 = vmatpush.bf16.msra.mxu0 %v1269
    %1432 = vmatpush.bf16.msra.mxu0 %v1261
    %1433 = vmatpush.bf16.msra.mxu0 %v1253
    %1434 = vmatpush.bf16.msra.mxu0 %v1245
    %1435 = vmatpush.bf16.msra.mxu0 %v1237
    %1436 = vmatpush.bf16.msra.mxu0 %v1229
    %1437 = vmatmul.bf16.gmra.mxu0 %v966
    %v1438 = vpop.f32.mrf.mxu0
    %v1439 = vpop.f32.mrf.mxu0
    %v1440 = vadd.f32 0.0, %v1439
    %1441 = vdwg.mxu0
    %1442 = vmatpush.bf16.msra.mxu0 %v1286
    %1443 = vmatpush.bf16.msra.mxu0 %v1278
    %1444 = vmatpush.bf16.msra.mxu0 %v1270
    %1445 = vmatpush.bf16.msra.mxu0 %v1262
    %1446 = vmatpush.bf16.msra.mxu0 %v1254
    %1447 = vmatpush.bf16.msra.mxu0 %v1246
    %1448 = vmatpush.bf16.msra.mxu0 %v1238
    %1449 = vmatpush.bf16.msra.mxu0 %v1230
    %1450 = vmatmul.bf16.gmra.mxu0 %v966
    %v1451 = vpop.f32.mrf.mxu0
    %v1452 = vpop.f32.mrf.mxu0
    %v1453 = vadd.f32 0.0, %v1452
    %1454 = vdwg.mxu0
    %v1455 = vld [vmem:[#allocation2] sm:$0xff]
    %v1456 = vld [vmem:[#allocation2 + $0x8] sm:$0xff]
    %v1457 = vld [vmem:[#allocation2 + $0x10] sm:$0xff]
    %v1458 = vld [vmem:[#allocation2 + $0x18] sm:$0xff]
    %v1459 = vadd.f32 %v1455, %v1361
    %v1460 = vadd.f32 %v1456, %v1374
    %v1461 = vadd.f32 %v1457, %v1387
    %v1462 = vadd.f32 %v1458, %v1400
    %v1463 = vld [vmem:[#allocation3] sm:$0xff]
    %v1464 = vld [vmem:[#allocation3 + $0x8] sm:$0xff]
    %v1465 = vld [vmem:[#allocation3 + $0x10] sm:$0xff]
    %v1466 = vld [vmem:[#allocation3 + $0x18] sm:$0xff]
    %v1467 = vadd.f32 %v1463, %v1414
    %v1468 = vadd.f32 %v1464, %v1427
    %v1469 = vadd.f32 %v1465, %v1440
    %v1470 = vadd.f32 %v1466, %v1453
    %v1471 = vxor.u32 %v1459, 2147483648
    %v1472 = vmul.f32 %v1471, 1.442695
    %v1473 = vpow.pop %v1472
    %v1474 = vadd.f32 %v1473, 1.0
    %v1475 = vrcp.pop %v1474
    %v1476 = vmul.f32 %v1474, %v1475
    %v1477 = vsub.f32 1.0, %v1476
    %v1478 = vmul.f32 %v1475, %v1477
    %v1479 = vadd.f32 %v1475, %v1478
    %vm1480 = vweird.f32 %v1474
    %vm1481 = vweird.f32 %v1475
    %vm1482 = vmor %vm1480, %vm1481
    %v1483 = vsel %vm1482, %v1475, %v1479
    %v1484 = vand.u32 2147483647, %v1474
    %vm1485 = vcmp.eq.f32.partialorder %v1484, 8.507059e+37
    %v1486 = vand.u32 %v1474, 2147483648
    %v1487 = vor.u32 1.1754944e-38, %v1486
    %v1488 = vsel %vm1485, %v1487, %v1483
    %v1489 = vmul.f32 1.0, %v1488
    %v1490 = vxor.u32 %v1460, 2147483648
    %v1491 = vmul.f32 %v1490, 1.442695
    %v1492 = vpow.pop %v1491
    %v1493 = vadd.f32 %v1492, 1.0
    %v1494 = vrcp.pop %v1493
    %v1495 = vmul.f32 %v1493, %v1494
    %v1496 = vsub.f32 1.0, %v1495
    %v1497 = vmul.f32 %v1494, %v1496
    %v1498 = vadd.f32 %v1494, %v1497
    %vm1499 = vweird.f32 %v1493
    %vm1500 = vweird.f32 %v1494
    %vm1501 = vmor %vm1499, %vm1500
    %v1502 = vsel %vm1501, %v1494, %v1498
    %v1503 = vand.u32 2147483647, %v1493
    %vm1504 = vcmp.eq.f32.partialorder %v1503, 8.507059e+37
    %v1505 = vand.u32 %v1493, 2147483648
    %v1506 = vor.u32 1.1754944e-38, %v1505
    %v1507 = vsel %vm1504, %v1506, %v1502
    %v1508 = vmul.f32 1.0, %v1507
    %v1509 = vtanh.pop %v1461
    %v1510 = vxor.u32 %v1462, 2147483648
    %v1511 = vmul.f32 %v1510, 1.442695
    %v1512 = vpow.pop %v1511
    %v1513 = vadd.f32 %v1512, 1.0
    %v1514 = vrcp.pop %v1513
    %v1515 = vmul.f32 %v1513, %v1514
    %v1516 = vsub.f32 1.0, %v1515
    %v1517 = vmul.f32 %v1514, %v1516
    %v1518 = vadd.f32 %v1514, %v1517
    %vm1519 = vweird.f32 %v1513
    %vm1520 = vweird.f32 %v1514
    %vm1521 = vmor %vm1519, %vm1520
    %v1522 = vsel %vm1521, %v1514, %v1518
    %v1523 = vand.u32 2147483647, %v1513
    %vm1524 = vcmp.eq.f32.partialorder %v1523, 8.507059e+37
    %v1525 = vand.u32 %v1513, 2147483648
    %v1526 = vor.u32 1.1754944e-38, %v1525
    %v1527 = vsel %vm1524, %v1526, %v1522
    %v1528 = vmul.f32 1.0, %v1527
    %v1529 = vmul.f32 %v1508, 0.0
    %v1530 = vmul.f32 %v1489, %v1509
    %v1531 = vadd.f32 %v1529, %v1530
    %v1532 = vtanh.pop %v1531
    %v1533 = vmul.f32 %v1528, %v1532
    %v1534 = vxor.u32 %v1467, 2147483648
    %v1535 = vmul.f32 %v1534, 1.442695
    %v1536 = vpow.pop %v1535
    %v1537 = vadd.f32 %v1536, 1.0
    %v1538 = vrcp.pop %v1537
    %v1539 = vmul.f32 %v1537, %v1538
    %v1540 = vsub.f32 1.0, %v1539
    %v1541 = vmul.f32 %v1538, %v1540
    %v1542 = vadd.f32 %v1538, %v1541
    %vm1543 = vweird.f32 %v1537
    %vm1544 = vweird.f32 %v1538
    %vm1545 = vmor %vm1543, %vm1544
    %v1546 = vsel %vm1545, %v1538, %v1542
    %v1547 = vand.u32 2147483647, %v1537
    %vm1548 = vcmp.eq.f32.partialorder %v1547, 8.507059e+37
    %v1549 = vand.u32 %v1537, 2147483648
    %v1550 = vor.u32 1.1754944e-38, %v1549
    %v1551 = vsel %vm1548, %v1550, %v1546
    %v1552 = vmul.f32 1.0, %v1551
    %v1553 = vxor.u32 %v1468, 2147483648
    %v1554 = vmul.f32 %v1553, 1.442695
    %v1555 = vpow.pop %v1554
    %v1556 = vadd.f32 %v1555, 1.0
    %v1557 = vrcp.pop %v1556
    %v1558 = vmul.f32 %v1556, %v1557
    %v1559 = vsub.f32 1.0, %v1558
    %v1560 = vmul.f32 %v1557, %v1559
    %v1561 = vadd.f32 %v1557, %v1560
    %vm1562 = vweird.f32 %v1556
    %vm1563 = vweird.f32 %v1557
    %vm1564 = vmor %vm1562, %vm1563
    %v1565 = vsel %vm1564, %v1557, %v1561
    %v1566 = vand.u32 2147483647, %v1556
    %vm1567 = vcmp.eq.f32.partialorder %v1566, 8.507059e+37
    %v1568 = vand.u32 %v1556, 2147483648
    %v1569 = vor.u32 1.1754944e-38, %v1568
    %v1570 = vsel %vm1567, %v1569, %v1565
    %v1571 = vmul.f32 1.0, %v1570
    %v1572 = vtanh.pop %v1469
    %v1573 = vxor.u32 %v1470, 2147483648
    %v1574 = vmul.f32 %v1573, 1.442695
    %v1575 = vpow.pop %v1574
    %v1576 = vadd.f32 %v1575, 1.0
    %v1577 = vrcp.pop %v1576
    %v1578 = vmul.f32 %v1576, %v1577
    %v1579 = vsub.f32 1.0, %v1578
    %v1580 = vmul.f32 %v1577, %v1579
    %v1581 = vadd.f32 %v1577, %v1580
    %vm1582 = vweird.f32 %v1576
    %vm1583 = vweird.f32 %v1577
    %vm1584 = vmor %vm1582, %vm1583
    %v1585 = vsel %vm1584, %v1577, %v1581
    %v1586 = vand.u32 2147483647, %v1576
    %vm1587 = vcmp.eq.f32.partialorder %v1586, 8.507059e+37
    %v1588 = vand.u32 %v1576, 2147483648
    %v1589 = vor.u32 1.1754944e-38, %v1588
    %v1590 = vsel %vm1587, %v1589, %v1585
    %v1591 = vmul.f32 1.0, %v1590
    %v1592 = vmul.f32 %v1571, 0.0
    %v1593 = vmul.f32 %v1552, %v1572
    %v1594 = vadd.f32 %v1592, %v1593
    %v1595 = vtanh.pop %v1594
    %v1596 = vmul.f32 %v1591, %v1595
    %v1597 = vadd.f32 %v1533, 0.0
    %v1598 = vadd.f32 %v1596, 0.0
    %v1599 = vpack.c.bf16 %v1596, %v1533
    %1600 = vmatpush.bf16.msra.mxu0 %v1279
    %1601 = vmatpush.bf16.msra.mxu0 %v1271
    %1602 = vmatpush.bf16.msra.mxu0 %v1263
    %1603 = vmatpush.bf16.msra.mxu0 %v1255
    %1604 = vmatpush.bf16.msra.mxu0 %v1247
    %1605 = vmatpush.bf16.msra.mxu0 %v1239
    %1606 = vmatpush.bf16.msra.mxu0 %v1231
    %1607 = vmatpush.bf16.msra.mxu0 %v1223
    %1608 = vmatmul.bf16.gmra.mxu0 %v1599
    %v1609 = vpop.f32.mrf.mxu0
    %v1610 = vadd.f32 0.0, %v1609
    %v1611 = vpop.f32.mrf.mxu0
    %1612 = vdwg.mxu0
    %1613 = vmatpush.bf16.msra.mxu0 %v1280
    %1614 = vmatpush.bf16.msra.mxu0 %v1272
    %1615 = vmatpush.bf16.msra.mxu0 %v1264
    %1616 = vmatpush.bf16.msra.mxu0 %v1256
    %1617 = vmatpush.bf16.msra.mxu0 %v1248
    %1618 = vmatpush.bf16.msra.mxu0 %v1240
    %1619 = vmatpush.bf16.msra.mxu0 %v1232
    %1620 = vmatpush.bf16.msra.mxu0 %v1224
    %1621 = vmatmul.bf16.gmra.mxu0 %v1599
    %v1622 = vpop.f32.mrf.mxu0
    %v1623 = vadd.f32 0.0, %v1622
    %v1624 = vpop.f32.mrf.mxu0
    %1625 = vdwg.mxu0
    %1626 = vmatpush.bf16.msra.mxu0 %v1281
    %1627 = vmatpush.bf16.msra.mxu0 %v1273
    %1628 = vmatpush.bf16.msra.mxu0 %v1265
    %1629 = vmatpush.bf16.msra.mxu0 %v1257
    %1630 = vmatpush.bf16.msra.mxu0 %v1249
    %1631 = vmatpush.bf16.msra.mxu0 %v1241
    %1632 = vmatpush.bf16.msra.mxu0 %v1233
    %1633 = vmatpush.bf16.msra.mxu0 %v1225
    %1634 = vmatmul.bf16.gmra.mxu0 %v1599
    %v1635 = vpop.f32.mrf.mxu0
    %v1636 = vadd.f32 0.0, %v1635
    %v1637 = vpop.f32.mrf.mxu0
    %1638 = vdwg.mxu0
    %1639 = vmatpush.bf16.msra.mxu0 %v1282
    %1640 = vmatpush.bf16.msra.mxu0 %v1274
    %1641 = vmatpush.bf16.msra.mxu0 %v1266
    %1642 = vmatpush.bf16.msra.mxu0 %v1258
    %1643 = vmatpush.bf16.msra.mxu0 %v1250
    %1644 = vmatpush.bf16.msra.mxu0 %v1242
    %1645 = vmatpush.bf16.msra.mxu0 %v1234
    %1646 = vmatpush.bf16.msra.mxu0 %v1226
    %1647 = vmatmul.bf16.gmra.mxu0 %v1599
    %v1648 = vpop.f32.mrf.mxu0
    %v1649 = vadd.f32 0.0, %v1648
    %v1650 = vpop.f32.mrf.mxu0
    %1651 = vdwg.mxu0
    %1652 = vmatpush.bf16.msra.mxu0 %v1283
    %1653 = vmatpush.bf16.msra.mxu0 %v1275
    %1654 = vmatpush.bf16.msra.mxu0 %v1267
    %1655 = vmatpush.bf16.msra.mxu0 %v1259
    %1656 = vmatpush.bf16.msra.mxu0 %v1251
    %1657 = vmatpush.bf16.msra.mxu0 %v1243
    %1658 = vmatpush.bf16.msra.mxu0 %v1235
    %1659 = vmatpush.bf16.msra.mxu0 %v1227
    %1660 = vmatmul.bf16.gmra.mxu0 %v1599
    %v1661 = vpop.f32.mrf.mxu0
    %v1662 = vpop.f32.mrf.mxu0
    %v1663 = vadd.f32 0.0, %v1662
    %1664 = vdwg.mxu0
    %1665 = vmatpush.bf16.msra.mxu0 %v1284
    %1666 = vmatpush.bf16.msra.mxu0 %v1276
    %1667 = vmatpush.bf16.msra.mxu0 %v1268
    %1668 = vmatpush.bf16.msra.mxu0 %v1260
    %1669 = vmatpush.bf16.msra.mxu0 %v1252
    %1670 = vmatpush.bf16.msra.mxu0 %v1244
    %1671 = vmatpush.bf16.msra.mxu0 %v1236
    %1672 = vmatpush.bf16.msra.mxu0 %v1228
    %1673 = vmatmul.bf16.gmra.mxu0 %v1599
    %v1674 = vpop.f32.mrf.mxu0
    %v1675 = vpop.f32.mrf.mxu0
    %v1676 = vadd.f32 0.0, %v1675
    %1677 = vdwg.mxu0
    %1678 = vmatpush.bf16.msra.mxu0 %v1285
    %1679 = vmatpush.bf16.msra.mxu0 %v1277
    %1680 = vmatpush.bf16.msra.mxu0 %v1269
    %1681 = vmatpush.bf16.msra.mxu0 %v1261
    %1682 = vmatpush.bf16.msra.mxu0 %v1253
    %1683 = vmatpush.bf16.msra.mxu0 %v1245
    %1684 = vmatpush.bf16.msra.mxu0 %v1237
    %1685 = vmatpush.bf16.msra.mxu0 %v1229
    %1686 = vmatmul.bf16.gmra.mxu0 %v1599
    %v1687 = vpop.f32.mrf.mxu0
    %v1688 = vpop.f32.mrf.mxu0
    %v1689 = vadd.f32 0.0, %v1688
    %1690 = vdwg.mxu0
    %1691 = vmatpush.bf16.msra.mxu0 %v1286
    %1692 = vmatpush.bf16.msra.mxu0 %v1278
    %1693 = vmatpush.bf16.msra.mxu0 %v1270
    %1694 = vmatpush.bf16.msra.mxu0 %v1262
    %1695 = vmatpush.bf16.msra.mxu0 %v1254
    %1696 = vmatpush.bf16.msra.mxu0 %v1246
    %1697 = vmatpush.bf16.msra.mxu0 %v1238
    %1698 = vmatpush.bf16.msra.mxu0 %v1230
    %1699 = vmatmul.bf16.gmra.mxu0 %v1599
    %v1700 = vpop.f32.mrf.mxu0
    %v1701 = vpop.f32.mrf.mxu0
    %v1702 = vadd.f32 0.0, %v1701
    %1703 = vdwg.mxu0
    %v1704 = vld [vmem:[#allocation2 + $0x20] sm:$0xff]
    %v1705 = vld [vmem:[#allocation2 + $0x28] sm:$0xff]
    %v1706 = vld [vmem:[#allocation2 + $0x30] sm:$0xff]
    %v1707 = vld [vmem:[#allocation2 + $0x38] sm:$0xff]
    %v1708 = vadd.f32 %v1704, %v1610
    %v1709 = vadd.f32 %v1705, %v1623
    %v1710 = vadd.f32 %v1706, %v1636
    %v1711 = vadd.f32 %v1707, %v1649
    %v1712 = vld [vmem:[#allocation3 + $0x20] sm:$0xff]
    %v1713 = vld [vmem:[#allocation3 + $0x28] sm:$0xff]
    %v1714 = vld [vmem:[#allocation3 + $0x30] sm:$0xff]
    %v1715 = vld [vmem:[#allocation3 + $0x38] sm:$0xff]
    %v1716 = vadd.f32 %v1712, %v1663
    %v1717 = vadd.f32 %v1713, %v1676
    %v1718 = vadd.f32 %v1714, %v1689
    %v1719 = vadd.f32 %v1715, %v1702
    %v1720 = vxor.u32 %v1708, 2147483648
    %v1721 = vmul.f32 %v1720, 1.442695
    %v1722 = vpow.pop %v1721
    %v1723 = vadd.f32 %v1722, 1.0
    %v1724 = vrcp.pop %v1723
    %v1725 = vmul.f32 %v1723, %v1724
    %v1726 = vsub.f32 1.0, %v1725
    %v1727 = vmul.f32 %v1724, %v1726
    %v1728 = vadd.f32 %v1724, %v1727
    %vm1729 = vweird.f32 %v1723
    %vm1730 = vweird.f32 %v1724
    %vm1731 = vmor %vm1729, %vm1730
    %v1732 = vsel %vm1731, %v1724, %v1728
    %v1733 = vand.u32 2147483647, %v1723
    %vm1734 = vcmp.eq.f32.partialorder %v1733, 8.507059e+37
    %v1735 = vand.u32 %v1723, 2147483648
    %v1736 = vor.u32 1.1754944e-38, %v1735
    %v1737 = vsel %vm1734, %v1736, %v1732
    %v1738 = vmul.f32 1.0, %v1737
    %v1739 = vxor.u32 %v1709, 2147483648
    %v1740 = vmul.f32 %v1739, 1.442695
    %v1741 = vpow.pop %v1740
    %v1742 = vadd.f32 %v1741, 1.0
    %v1743 = vrcp.pop %v1742
    %v1744 = vmul.f32 %v1742, %v1743
    %v1745 = vsub.f32 1.0, %v1744
    %v1746 = vmul.f32 %v1743, %v1745
    %v1747 = vadd.f32 %v1743, %v1746
    %vm1748 = vweird.f32 %v1742
    %vm1749 = vweird.f32 %v1743
    %vm1750 = vmor %vm1748, %vm1749
    %v1751 = vsel %vm1750, %v1743, %v1747
    %v1752 = vand.u32 2147483647, %v1742
    %vm1753 = vcmp.eq.f32.partialorder %v1752, 8.507059e+37
    %v1754 = vand.u32 %v1742, 2147483648
    %v1755 = vor.u32 1.1754944e-38, %v1754
    %v1756 = vsel %vm1753, %v1755, %v1751
    %v1757 = vmul.f32 1.0, %v1756
    %v1758 = vtanh.pop %v1710
    %v1759 = vxor.u32 %v1711, 2147483648
    %v1760 = vmul.f32 %v1759, 1.442695
    %v1761 = vpow.pop %v1760
    %v1762 = vadd.f32 %v1761, 1.0
    %v1763 = vrcp.pop %v1762
    %v1764 = vmul.f32 %v1762, %v1763
    %v1765 = vsub.f32 1.0, %v1764
    %v1766 = vmul.f32 %v1763, %v1765
    %v1767 = vadd.f32 %v1763, %v1766
    %vm1768 = vweird.f32 %v1762
    %vm1769 = vweird.f32 %v1763
    %vm1770 = vmor %vm1768, %vm1769
    %v1771 = vsel %vm1770, %v1763, %v1767
    %v1772 = vand.u32 2147483647, %v1762
    %vm1773 = vcmp.eq.f32.partialorder %v1772, 8.507059e+37
    %v1774 = vand.u32 %v1762, 2147483648
    %v1775 = vor.u32 1.1754944e-38, %v1774
    %v1776 = vsel %vm1773, %v1775, %v1771
    %v1777 = vmul.f32 1.0, %v1776
    %v1778 = vmul.f32 %v1757, %v1531
    %v1779 = vmul.f32 %v1738, %v1758
    %v1780 = vadd.f32 %v1778, %v1779
    %v1781 = vtanh.pop %v1780
    %v1782 = vmul.f32 %v1777, %v1781
    %v1783 = vxor.u32 %v1716, 2147483648
    %v1784 = vmul.f32 %v1783, 1.442695
    %v1785 = vpow.pop %v1784
    %v1786 = vadd.f32 %v1785, 1.0
    %v1787 = vrcp.pop %v1786
    %v1788 = vmul.f32 %v1786, %v1787
    %v1789 = vsub.f32 1.0, %v1788
    %v1790 = vmul.f32 %v1787, %v1789
    %v1791 = vadd.f32 %v1787, %v1790
    %vm1792 = vweird.f32 %v1786
    %vm1793 = vweird.f32 %v1787
    %vm1794 = vmor %vm1792, %vm1793
    %v1795 = vsel %vm1794, %v1787, %v1791
    %v1796 = vand.u32 2147483647, %v1786
    %vm1797 = vcmp.eq.f32.partialorder %v1796, 8.507059e+37
    %v1798 = vand.u32 %v1786, 2147483648
    %v1799 = vor.u32 1.1754944e-38, %v1798
    %v1800 = vsel %vm1797, %v1799, %v1795
    %v1801 = vmul.f32 1.0, %v1800
    %v1802 = vxor.u32 %v1717, 2147483648
    %v1803 = vmul.f32 %v1802, 1.442695
    %v1804 = vpow.pop %v1803
    %v1805 = vadd.f32 %v1804, 1.0
    %v1806 = vrcp.pop %v1805
    %v1807 = vmul.f32 %v1805, %v1806
    %v1808 = vsub.f32 1.0, %v1807
    %v1809 = vmul.f32 %v1806, %v1808
    %v1810 = vadd.f32 %v1806, %v1809
    %vm1811 = vweird.f32 %v1805
    %vm1812 = vweird.f32 %v1806
    %vm1813 = vmor %vm1811, %vm1812
    %v1814 = vsel %vm1813, %v1806, %v1810
    %v1815 = vand.u32 2147483647, %v1805
    %vm1816 = vcmp.eq.f32.partialorder %v1815, 8.507059e+37
    %v1817 = vand.u32 %v1805, 2147483648
    %v1818 = vor.u32 1.1754944e-38, %v1817
    %v1819 = vsel %vm1816, %v1818, %v1814
    %v1820 = vmul.f32 1.0, %v1819
    %v1821 = vtanh.pop %v1718
    %v1822 = vxor.u32 %v1719, 2147483648
    %v1823 = vmul.f32 %v1822, 1.442695
    %v1824 = vpow.pop %v1823
    %v1825 = vadd.f32 %v1824, 1.0
    %v1826 = vrcp.pop %v1825
    %v1827 = vmul.f32 %v1825, %v1826
    %v1828 = vsub.f32 1.0, %v1827
    %v1829 = vmul.f32 %v1826, %v1828
    %v1830 = vadd.f32 %v1826, %v1829
    %vm1831 = vweird.f32 %v1825
    %vm1832 = vweird.f32 %v1826
    %vm1833 = vmor %vm1831, %vm1832
    %v1834 = vsel %vm1833, %v1826, %v1830
    %v1835 = vand.u32 2147483647, %v1825
    %vm1836 = vcmp.eq.f32.partialorder %v1835, 8.507059e+37
    %v1837 = vand.u32 %v1825, 2147483648
    %v1838 = vor.u32 1.1754944e-38, %v1837
    %v1839 = vsel %vm1836, %v1838, %v1834
    %v1840 = vmul.f32 1.0, %v1839
    %v1841 = vmul.f32 %v1820, %v1594
    %v1842 = vmul.f32 %v1801, %v1821
    %v1843 = vadd.f32 %v1841, %v1842
    %v1844 = vtanh.pop %v1843
    %v1845 = vmul.f32 %v1840, %v1844
    %v1846 = vadd.f32 %v1597, %v1782
    %v1847 = vadd.f32 %v1598, %v1845
    %v1848 = vpack.c.bf16 %v1845, %v1782
    %1849 = vmatpush.bf16.msra.mxu0 %v1279
    %1850 = vmatpush.bf16.msra.mxu0 %v1271
    %1851 = vmatpush.bf16.msra.mxu0 %v1263
    %1852 = vmatpush.bf16.msra.mxu0 %v1255
    %1853 = vmatpush.bf16.msra.mxu0 %v1247
    %1854 = vmatpush.bf16.msra.mxu0 %v1239
    %1855 = vmatpush.bf16.msra.mxu0 %v1231
    %1856 = vmatpush.bf16.msra.mxu0 %v1223
    %1857 = vmatmul.bf16.gmra.mxu0 %v1848
    %v1858 = vpop.f32.mrf.mxu0
    %v1859 = vadd.f32 0.0, %v1858
    %v1860 = vpop.f32.mrf.mxu0
    %1861 = vdwg.mxu0
    %1862 = vmatpush.bf16.msra.mxu0 %v1280
    %1863 = vmatpush.bf16.msra.mxu0 %v1272
    %1864 = vmatpush.bf16.msra.mxu0 %v1264
    %1865 = vmatpush.bf16.msra.mxu0 %v1256
    %1866 = vmatpush.bf16.msra.mxu0 %v1248
    %1867 = vmatpush.bf16.msra.mxu0 %v1240
    %1868 = vmatpush.bf16.msra.mxu0 %v1232
    %1869 = vmatpush.bf16.msra.mxu0 %v1224
    %1870 = vmatmul.bf16.gmra.mxu0 %v1848
    %v1871 = vpop.f32.mrf.mxu0
    %v1872 = vadd.f32 0.0, %v1871
    %v1873 = vpop.f32.mrf.mxu0
    %1874 = vdwg.mxu0
    %1875 = vmatpush.bf16.msra.mxu0 %v1281
    %1876 = vmatpush.bf16.msra.mxu0 %v1273
    %1877 = vmatpush.bf16.msra.mxu0 %v1265
    %1878 = vmatpush.bf16.msra.mxu0 %v1257
    %1879 = vmatpush.bf16.msra.mxu0 %v1249
    %1880 = vmatpush.bf16.msra.mxu0 %v1241
    %1881 = vmatpush.bf16.msra.mxu0 %v1233
    %1882 = vmatpush.bf16.msra.mxu0 %v1225
    %1883 = vmatmul.bf16.gmra.mxu0 %v1848
    %v1884 = vpop.f32.mrf.mxu0
    %v1885 = vadd.f32 0.0, %v1884
    %v1886 = vpop.f32.mrf.mxu0
    %1887 = vdwg.mxu0
    %1888 = vmatpush.bf16.msra.mxu0 %v1282
    %1889 = vmatpush.bf16.msra.mxu0 %v1274
    %1890 = vmatpush.bf16.msra.mxu0 %v1266
    %1891 = vmatpush.bf16.msra.mxu0 %v1258
    %1892 = vmatpush.bf16.msra.mxu0 %v1250
    %1893 = vmatpush.bf16.msra.mxu0 %v1242
    %1894 = vmatpush.bf16.msra.mxu0 %v1234
    %1895 = vmatpush.bf16.msra.mxu0 %v1226
    %1896 = vmatmul.bf16.gmra.mxu0 %v1848
    %v1897 = vpop.f32.mrf.mxu0
    %v1898 = vadd.f32 0.0, %v1897
    %v1899 = vpop.f32.mrf.mxu0
    %1900 = vdwg.mxu0
    %1901 = vmatpush.bf16.msra.mxu0 %v1283
    %1902 = vmatpush.bf16.msra.mxu0 %v1275
    %1903 = vmatpush.bf16.msra.mxu0 %v1267
    %1904 = vmatpush.bf16.msra.mxu0 %v1259
    %1905 = vmatpush.bf16.msra.mxu0 %v1251
    %1906 = vmatpush.bf16.msra.mxu0 %v1243
    %1907 = vmatpush.bf16.msra.mxu0 %v1235
    %1908 = vmatpush.bf16.msra.mxu0 %v1227
    %1909 = vmatmul.bf16.gmra.mxu0 %v1848
    %v1910 = vpop.f32.mrf.mxu0
    %v1911 = vpop.f32.mrf.mxu0
    %v1912 = vadd.f32 0.0, %v1911
    %1913 = vdwg.mxu0
    %1914 = vmatpush.bf16.msra.mxu0 %v1284
    %1915 = vmatpush.bf16.msra.mxu0 %v1276
    %1916 = vmatpush.bf16.msra.mxu0 %v1268
    %1917 = vmatpush.bf16.msra.mxu0 %v1260
    %1918 = vmatpush.bf16.msra.mxu0 %v1252
    %1919 = vmatpush.bf16.msra.mxu0 %v1244
    %1920 = vmatpush.bf16.msra.mxu0 %v1236
    %1921 = vmatpush.bf16.msra.mxu0 %v1228
    %1922 = vmatmul.bf16.gmra.mxu0 %v1848
    %v1923 = vpop.f32.mrf.mxu0
    %v1924 = vpop.f32.mrf.mxu0
    %v1925 = vadd.f32 0.0, %v1924
    %1926 = vdwg.mxu0
    %1927 = vmatpush.bf16.msra.mxu0 %v1285
    %1928 = vmatpush.bf16.msra.mxu0 %v1277
    %1929 = vmatpush.bf16.msra.mxu0 %v1269
    %1930 = vmatpush.bf16.msra.mxu0 %v1261
    %1931 = vmatpush.bf16.msra.mxu0 %v1253
    %1932 = vmatpush.bf16.msra.mxu0 %v1245
    %1933 = vmatpush.bf16.msra.mxu0 %v1237
    %1934 = vmatpush.bf16.msra.mxu0 %v1229
    %1935 = vmatmul.bf16.gmra.mxu0 %v1848
    %v1936 = vpop.f32.mrf.mxu0
    %v1937 = vpop.f32.mrf.mxu0
    %v1938 = vadd.f32 0.0, %v1937
    %1939 = vdwg.mxu0
    %1940 = vmatpush.bf16.msra.mxu0 %v1286
    %1941 = vmatpush.bf16.msra.mxu0 %v1278
    %1942 = vmatpush.bf16.msra.mxu0 %v1270
    %1943 = vmatpush.bf16.msra.mxu0 %v1262
    %1944 = vmatpush.bf16.msra.mxu0 %v1254
    %1945 = vmatpush.bf16.msra.mxu0 %v1246
    %1946 = vmatpush.bf16.msra.mxu0 %v1238
    %1947 = vmatpush.bf16.msra.mxu0 %v1230
    %1948 = vmatmul.bf16.gmra.mxu0 %v1848
    %v1949 = vpop.f32.mrf.mxu0
    %v1950 = vpop.f32.mrf.mxu0
    %v1951 = vadd.f32 0.0, %v1950
    %1952 = vdwg.mxu0
    %v1953 = vld [vmem:[#allocation2 + $0x40] sm:$0xff]
    %v1954 = vld [vmem:[#allocation2 + $0x48] sm:$0xff]
    %v1955 = vld [vmem:[#allocation2 + $0x50] sm:$0xff]
    %v1956 = vld [vmem:[#allocation2 + $0x58] sm:$0xff]
    %v1957 = vadd.f32 %v1953, %v1859
    %v1958 = vadd.f32 %v1954, %v1872
    %v1959 = vadd.f32 %v1955, %v1885
    %v1960 = vadd.f32 %v1956, %v1898
    %v1961 = vld [vmem:[#allocation3 + $0x40] sm:$0xff]
    %v1962 = vld [vmem:[#allocation3 + $0x48] sm:$0xff]
    %v1963 = vld [vmem:[#allocation3 + $0x50] sm:$0xff]
    %v1964 = vld [vmem:[#allocation3 + $0x58] sm:$0xff]
    %v1965 = vadd.f32 %v1961, %v1912
    %v1966 = vadd.f32 %v1962, %v1925
    %v1967 = vadd.f32 %v1963, %v1938
    %v1968 = vadd.f32 %v1964, %v1951
    %v1969 = vxor.u32 %v1957, 2147483648
    %v1970 = vmul.f32 %v1969, 1.442695
    %v1971 = vpow.pop %v1970
    %v1972 = vadd.f32 %v1971, 1.0
    %v1973 = vrcp.pop %v1972
    %v1974 = vmul.f32 %v1972, %v1973
    %v1975 = vsub.f32 1.0, %v1974
    %v1976 = vmul.f32 %v1973, %v1975
    %v1977 = vadd.f32 %v1973, %v1976
    %vm1978 = vweird.f32 %v1972
    %vm1979 = vweird.f32 %v1973
    %vm1980 = vmor %vm1978, %vm1979
    %v1981 = vsel %vm1980, %v1973, %v1977
    %v1982 = vand.u32 2147483647, %v1972
    %vm1983 = vcmp.eq.f32.partialorder %v1982, 8.507059e+37
    %v1984 = vand.u32 %v1972, 2147483648
    %v1985 = vor.u32 1.1754944e-38, %v1984
    %v1986 = vsel %vm1983, %v1985, %v1981
    %v1987 = vmul.f32 1.0, %v1986
    %v1988 = vxor.u32 %v1958, 2147483648
    %v1989 = vmul.f32 %v1988, 1.442695
    %v1990 = vpow.pop %v1989
    %v1991 = vadd.f32 %v1990, 1.0
    %v1992 = vrcp.pop %v1991
    %v1993 = vmul.f32 %v1991, %v1992
    %v1994 = vsub.f32 1.0, %v1993
    %v1995 = vmul.f32 %v1992, %v1994
    %v1996 = vadd.f32 %v1992, %v1995
    %vm1997 = vweird.f32 %v1991
    %vm1998 = vweird.f32 %v1992
    %vm1999 = vmor %vm1997, %vm1998
    %v2000 = vsel %vm1999, %v1992, %v1996
    %v2001 = vand.u32 2147483647, %v1991
    %vm2002 = vcmp.eq.f32.partialorder %v2001, 8.507059e+37
    %v2003 = vand.u32 %v1991, 2147483648
    %v2004 = vor.u32 1.1754944e-38, %v2003
    %v2005 = vsel %vm2002, %v2004, %v2000
    %v2006 = vmul.f32 1.0, %v2005
    %v2007 = vtanh.pop %v1959
    %v2008 = vxor.u32 %v1960, 2147483648
    %v2009 = vmul.f32 %v2008, 1.442695
    %v2010 = vpow.pop %v2009
    %v2011 = vadd.f32 %v2010, 1.0
    %v2012 = vrcp.pop %v2011
    %v2013 = vmul.f32 %v2011, %v2012
    %v2014 = vsub.f32 1.0, %v2013
    %v2015 = vmul.f32 %v2012, %v2014
    %v2016 = vadd.f32 %v2012, %v2015
    %vm2017 = vweird.f32 %v2011
    %vm2018 = vweird.f32 %v2012
    %vm2019 = vmor %vm2017, %vm2018
    %v2020 = vsel %vm2019, %v2012, %v2016
    %v2021 = vand.u32 2147483647, %v2011
    %vm2022 = vcmp.eq.f32.partialorder %v2021, 8.507059e+37
    %v2023 = vand.u32 %v2011, 2147483648
    %v2024 = vor.u32 1.1754944e-38, %v2023
    %v2025 = vsel %vm2022, %v2024, %v2020
    %v2026 = vmul.f32 1.0, %v2025
    %v2027 = vmul.f32 %v2006, %v1780
    %v2028 = vmul.f32 %v1987, %v2007
    %v2029 = vadd.f32 %v2027, %v2028
    %v2030 = vtanh.pop %v2029
    %v2031 = vmul.f32 %v2026, %v2030
    %v2032 = vxor.u32 %v1965, 2147483648
    %v2033 = vmul.f32 %v2032, 1.442695
    %v2034 = vpow.pop %v2033
    %v2035 = vadd.f32 %v2034, 1.0
    %v2036 = vrcp.pop %v2035
    %v2037 = vmul.f32 %v2035, %v2036
    %v2038 = vsub.f32 1.0, %v2037
    %v2039 = vmul.f32 %v2036, %v2038
    %v2040 = vadd.f32 %v2036, %v2039
    %vm2041 = vweird.f32 %v2035
    %vm2042 = vweird.f32 %v2036
    %vm2043 = vmor %vm2041, %vm2042
    %v2044 = vsel %vm2043, %v2036, %v2040
    %v2045 = vand.u32 2147483647, %v2035
    %vm2046 = vcmp.eq.f32.partialorder %v2045, 8.507059e+37
    %v2047 = vand.u32 %v2035, 2147483648
    %v2048 = vor.u32 1.1754944e-38, %v2047
    %v2049 = vsel %vm2046, %v2048, %v2044
    %v2050 = vmul.f32 1.0, %v2049
    %v2051 = vxor.u32 %v1966, 2147483648
    %v2052 = vmul.f32 %v2051, 1.442695
    %v2053 = vpow.pop %v2052
    %v2054 = vadd.f32 %v2053, 1.0
    %v2055 = vrcp.pop %v2054
    %v2056 = vmul.f32 %v2054, %v2055
    %v2057 = vsub.f32 1.0, %v2056
    %v2058 = vmul.f32 %v2055, %v2057
    %v2059 = vadd.f32 %v2055, %v2058
    %vm2060 = vweird.f32 %v2054
    %vm2061 = vweird.f32 %v2055
    %vm2062 = vmor %vm2060, %vm2061
    %v2063 = vsel %vm2062, %v2055, %v2059
    %v2064 = vand.u32 2147483647, %v2054
    %vm2065 = vcmp.eq.f32.partialorder %v2064, 8.507059e+37
    %v2066 = vand.u32 %v2054, 2147483648
    %v2067 = vor.u32 1.1754944e-38, %v2066
    %v2068 = vsel %vm2065, %v2067, %v2063
    %v2069 = vmul.f32 1.0, %v2068
    %v2070 = vtanh.pop %v1967
    %v2071 = vxor.u32 %v1968, 2147483648
    %v2072 = vmul.f32 %v2071, 1.442695
    %v2073 = vpow.pop %v2072
    %v2074 = vadd.f32 %v2073, 1.0
    %v2075 = vrcp.pop %v2074
    %v2076 = vmul.f32 %v2074, %v2075
    %v2077 = vsub.f32 1.0, %v2076
    %v2078 = vmul.f32 %v2075, %v2077
    %v2079 = vadd.f32 %v2075, %v2078
    %vm2080 = vweird.f32 %v2074
    %vm2081 = vweird.f32 %v2075
    %vm2082 = vmor %vm2080, %vm2081
    %v2083 = vsel %vm2082, %v2075, %v2079
    %v2084 = vand.u32 2147483647, %v2074
    %vm2085 = vcmp.eq.f32.partialorder %v2084, 8.507059e+37
    %v2086 = vand.u32 %v2074, 2147483648
    %v2087 = vor.u32 1.1754944e-38, %v2086
    %v2088 = vsel %vm2085, %v2087, %v2083
    %v2089 = vmul.f32 1.0, %v2088
    %v2090 = vmul.f32 %v2069, %v1843
    %v2091 = vmul.f32 %v2050, %v2070
    %v2092 = vadd.f32 %v2090, %v2091
    %v2093 = vtanh.pop %v2092
    %v2094 = vmul.f32 %v2089, %v2093
    %v2095 = vadd.f32 %v1846, %v2031
    %v2096 = vadd.f32 %v1847, %v2094
    %v2097 = vpack.c.bf16 %v2094, %v2031
    %2098 = vmatpush.bf16.msra.mxu0 %v1279
    %2099 = vmatpush.bf16.msra.mxu0 %v1271
    %2100 = vmatpush.bf16.msra.mxu0 %v1263
    %2101 = vmatpush.bf16.msra.mxu0 %v1255
    %2102 = vmatpush.bf16.msra.mxu0 %v1247
    %2103 = vmatpush.bf16.msra.mxu0 %v1239
    %2104 = vmatpush.bf16.msra.mxu0 %v1231
    %2105 = vmatpush.bf16.msra.mxu0 %v1223
    %2106 = vmatmul.bf16.gmra.mxu0 %v2097
    %v2107 = vpop.f32.mrf.mxu0
    %v2108 = vadd.f32 0.0, %v2107
    %v2109 = vpop.f32.mrf.mxu0
    %2110 = vdwg.mxu0
    %2111 = vmatpush.bf16.msra.mxu0 %v1280
    %2112 = vmatpush.bf16.msra.mxu0 %v1272
    %2113 = vmatpush.bf16.msra.mxu0 %v1264
    %2114 = vmatpush.bf16.msra.mxu0 %v1256
    %2115 = vmatpush.bf16.msra.mxu0 %v1248
    %2116 = vmatpush.bf16.msra.mxu0 %v1240
    %2117 = vmatpush.bf16.msra.mxu0 %v1232
    %2118 = vmatpush.bf16.msra.mxu0 %v1224
    %2119 = vmatmul.bf16.gmra.mxu0 %v2097
    %v2120 = vpop.f32.mrf.mxu0
    %v2121 = vadd.f32 0.0, %v2120
    %v2122 = vpop.f32.mrf.mxu0
    %2123 = vdwg.mxu0
    %2124 = vmatpush.bf16.msra.mxu0 %v1281
    %2125 = vmatpush.bf16.msra.mxu0 %v1273
    %2126 = vmatpush.bf16.msra.mxu0 %v1265
    %2127 = vmatpush.bf16.msra.mxu0 %v1257
    %2128 = vmatpush.bf16.msra.mxu0 %v1249
    %2129 = vmatpush.bf16.msra.mxu0 %v1241
    %2130 = vmatpush.bf16.msra.mxu0 %v1233
    %2131 = vmatpush.bf16.msra.mxu0 %v1225
    %2132 = vmatmul.bf16.gmra.mxu0 %v2097
    %v2133 = vpop.f32.mrf.mxu0
    %v2134 = vadd.f32 0.0, %v2133
    %v2135 = vpop.f32.mrf.mxu0
    %2136 = vdwg.mxu0
    %2137 = vmatpush.bf16.msra.mxu0 %v1282
    %2138 = vmatpush.bf16.msra.mxu0 %v1274
    %2139 = vmatpush.bf16.msra.mxu0 %v1266
    %2140 = vmatpush.bf16.msra.mxu0 %v1258
    %2141 = vmatpush.bf16.msra.mxu0 %v1250
    %2142 = vmatpush.bf16.msra.mxu0 %v1242
    %2143 = vmatpush.bf16.msra.mxu0 %v1234
    %2144 = vmatpush.bf16.msra.mxu0 %v1226
    %2145 = vmatmul.bf16.gmra.mxu0 %v2097
    %v2146 = vpop.f32.mrf.mxu0
    %v2147 = vadd.f32 0.0, %v2146
    %v2148 = vpop.f32.mrf.mxu0
    %2149 = vdwg.mxu0
    %2150 = vmatpush.bf16.msra.mxu0 %v1283
    %2151 = vmatpush.bf16.msra.mxu0 %v1275
    %2152 = vmatpush.bf16.msra.mxu0 %v1267
    %2153 = vmatpush.bf16.msra.mxu0 %v1259
    %2154 = vmatpush.bf16.msra.mxu0 %v1251
    %2155 = vmatpush.bf16.msra.mxu0 %v1243
    %2156 = vmatpush.bf16.msra.mxu0 %v1235
    %2157 = vmatpush.bf16.msra.mxu0 %v1227
    %2158 = vmatmul.bf16.gmra.mxu0 %v2097
    %v2159 = vpop.f32.mrf.mxu0
    %v2160 = vpop.f32.mrf.mxu0
    %v2161 = vadd.f32 0.0, %v2160
    %2162 = vdwg.mxu0
    %2163 = vmatpush.bf16.msra.mxu0 %v1284
    %2164 = vmatpush.bf16.msra.mxu0 %v1276
    %2165 = vmatpush.bf16.msra.mxu0 %v1268
    %2166 = vmatpush.bf16.msra.mxu0 %v1260
    %2167 = vmatpush.bf16.msra.mxu0 %v1252
    %2168 = vmatpush.bf16.msra.mxu0 %v1244
    %2169 = vmatpush.bf16.msra.mxu0 %v1236
    %2170 = vmatpush.bf16.msra.mxu0 %v1228
    %2171 = vmatmul.bf16.gmra.mxu0 %v2097
    %v2172 = vpop.f32.mrf.mxu0
    %v2173 = vpop.f32.mrf.mxu0
    %v2174 = vadd.f32 0.0, %v2173
    %2175 = vdwg.mxu0
    %2176 = vmatpush.bf16.msra.mxu0 %v1285
    %2177 = vmatpush.bf16.msra.mxu0 %v1277
    %2178 = vmatpush.bf16.msra.mxu0 %v1269
    %2179 = vmatpush.bf16.msra.mxu0 %v1261
    %2180 = vmatpush.bf16.msra.mxu0 %v1253
    %2181 = vmatpush.bf16.msra.mxu0 %v1245
    %2182 = vmatpush.bf16.msra.mxu0 %v1237
    %2183 = vmatpush.bf16.msra.mxu0 %v1229
    %2184 = vmatmul.bf16.gmra.mxu0 %v2097
    %v2185 = vpop.f32.mrf.mxu0
    %v2186 = vpop.f32.mrf.mxu0
    %v2187 = vadd.f32 0.0, %v2186
    %2188 = vdwg.mxu0
    %2189 = vmatpush.bf16.msra.mxu0 %v1286
    %2190 = vmatpush.bf16.msra.mxu0 %v1278
    %2191 = vmatpush.bf16.msra.mxu0 %v1270
    %2192 = vmatpush.bf16.msra.mxu0 %v1262
    %2193 = vmatpush.bf16.msra.mxu0 %v1254
    %2194 = vmatpush.bf16.msra.mxu0 %v1246
    %2195 = vmatpush.bf16.msra.mxu0 %v1238
    %2196 = vmatpush.bf16.msra.mxu0 %v1230
    %2197 = vmatmul.bf16.gmra.mxu0 %v2097
    %v2198 = vpop.f32.mrf.mxu0
    %v2199 = vpop.f32.mrf.mxu0
    %v2200 = vadd.f32 0.0, %v2199
    %2201 = vdwg.mxu0
    %v2202 = vld [vmem:[#allocation2 + $0x60] sm:$0xff]
    %v2203 = vld [vmem:[#allocation2 + $0x68] sm:$0xff]
    %v2204 = vld [vmem:[#allocation2 + $0x70] sm:$0xff]
    %v2205 = vld [vmem:[#allocation2 + $0x78] sm:$0xff]
    %v2206 = vadd.f32 %v2202, %v2108
    %v2207 = vadd.f32 %v2203, %v2121
    %v2208 = vadd.f32 %v2204, %v2134
    %v2209 = vadd.f32 %v2205, %v2147
    %v2210 = vld [vmem:[#allocation3 + $0x60] sm:$0xff]
    %v2211 = vld [vmem:[#allocation3 + $0x68] sm:$0xff]
    %v2212 = vld [vmem:[#allocation3 + $0x70] sm:$0xff]
    %v2213 = vld [vmem:[#allocation3 + $0x78] sm:$0xff]
    %v2214 = vadd.f32 %v2210, %v2161
    %v2215 = vadd.f32 %v2211, %v2174
    %v2216 = vadd.f32 %v2212, %v2187
    %v2217 = vadd.f32 %v2213, %v2200
    %v2218 = vxor.u32 %v2206, 2147483648
    %v2219 = vmul.f32 %v2218, 1.442695
    %v2220 = vpow.pop %v2219
    %v2221 = vadd.f32 %v2220, 1.0
    %v2222 = vrcp.pop %v2221
    %v2223 = vmul.f32 %v2221, %v2222
    %v2224 = vsub.f32 1.0, %v2223
    %v2225 = vmul.f32 %v2222, %v2224
    %v2226 = vadd.f32 %v2222, %v2225
    %vm2227 = vweird.f32 %v2221
    %vm2228 = vweird.f32 %v2222
    %vm2229 = vmor %vm2227, %vm2228
    %v2230 = vsel %vm2229, %v2222, %v2226
    %v2231 = vand.u32 2147483647, %v2221
    %vm2232 = vcmp.eq.f32.partialorder %v2231, 8.507059e+37
    %v2233 = vand.u32 %v2221, 2147483648
    %v2234 = vor.u32 1.1754944e-38, %v2233
    %v2235 = vsel %vm2232, %v2234, %v2230
    %v2236 = vmul.f32 1.0, %v2235
    %v2237 = vxor.u32 %v2207, 2147483648
    %v2238 = vmul.f32 %v2237, 1.442695
    %v2239 = vpow.pop %v2238
    %v2240 = vadd.f32 %v2239, 1.0
    %v2241 = vrcp.pop %v2240
    %v2242 = vmul.f32 %v2240, %v2241
    %v2243 = vsub.f32 1.0, %v2242
    %v2244 = vmul.f32 %v2241, %v2243
    %v2245 = vadd.f32 %v2241, %v2244
    %vm2246 = vweird.f32 %v2240
    %vm2247 = vweird.f32 %v2241
    %vm2248 = vmor %vm2246, %vm2247
    %v2249 = vsel %vm2248, %v2241, %v2245
    %v2250 = vand.u32 2147483647, %v2240
    %vm2251 = vcmp.eq.f32.partialorder %v2250, 8.507059e+37
    %v2252 = vand.u32 %v2240, 2147483648
    %v2253 = vor.u32 1.1754944e-38, %v2252
    %v2254 = vsel %vm2251, %v2253, %v2249
    %v2255 = vmul.f32 1.0, %v2254
    %v2256 = vtanh.pop %v2208
    %v2257 = vxor.u32 %v2209, 2147483648
    %v2258 = vmul.f32 %v2257, 1.442695
    %v2259 = vpow.pop %v2258
    %v2260 = vadd.f32 %v2259, 1.0
    %v2261 = vrcp.pop %v2260
    %v2262 = vmul.f32 %v2260, %v2261
    %v2263 = vsub.f32 1.0, %v2262
    %v2264 = vmul.f32 %v2261, %v2263
    %v2265 = vadd.f32 %v2261, %v2264
    %vm2266 = vweird.f32 %v2260
    %vm2267 = vweird.f32 %v2261
    %vm2268 = vmor %vm2266, %vm2267
    %v2269 = vsel %vm2268, %v2261, %v2265
    %v2270 = vand.u32 2147483647, %v2260
    %vm2271 = vcmp.eq.f32.partialorder %v2270, 8.507059e+37
    %v2272 = vand.u32 %v2260, 2147483648
    %v2273 = vor.u32 1.1754944e-38, %v2272
    %v2274 = vsel %vm2271, %v2273, %v2269
    %v2275 = vmul.f32 1.0, %v2274
    %v2276 = vmul.f32 %v2255, %v2029
    %v2277 = vmul.f32 %v2236, %v2256
    %v2278 = vadd.f32 %v2276, %v2277
    %v2279 = vtanh.pop %v2278
    %v2280 = vmul.f32 %v2275, %v2279
    %v2281 = vxor.u32 %v2214, 2147483648
    %v2282 = vmul.f32 %v2281, 1.442695
    %v2283 = vpow.pop %v2282
    %v2284 = vadd.f32 %v2283, 1.0
    %v2285 = vrcp.pop %v2284
    %v2286 = vmul.f32 %v2284, %v2285
    %v2287 = vsub.f32 1.0, %v2286
    %v2288 = vmul.f32 %v2285, %v2287
    %v2289 = vadd.f32 %v2285, %v2288
    %vm2290 = vweird.f32 %v2284
    %vm2291 = vweird.f32 %v2285
    %vm2292 = vmor %vm2290, %vm2291
    %v2293 = vsel %vm2292, %v2285, %v2289
    %v2294 = vand.u32 2147483647, %v2284
    %vm2295 = vcmp.eq.f32.partialorder %v2294, 8.507059e+37
    %v2296 = vand.u32 %v2284, 2147483648
    %v2297 = vor.u32 1.1754944e-38, %v2296
    %v2298 = vsel %vm2295, %v2297, %v2293
    %v2299 = vmul.f32 1.0, %v2298
    %v2300 = vxor.u32 %v2215, 2147483648
    %v2301 = vmul.f32 %v2300, 1.442695
    %v2302 = vpow.pop %v2301
    %v2303 = vadd.f32 %v2302, 1.0
    %v2304 = vrcp.pop %v2303
    %v2305 = vmul.f32 %v2303, %v2304
    %v2306 = vsub.f32 1.0, %v2305
    %v2307 = vmul.f32 %v2304, %v2306
    %v2308 = vadd.f32 %v2304, %v2307
    %vm2309 = vweird.f32 %v2303
    %vm2310 = vweird.f32 %v2304
    %vm2311 = vmor %vm2309, %vm2310
    %v2312 = vsel %vm2311, %v2304, %v2308
    %v2313 = vand.u32 2147483647, %v2303
    %vm2314 = vcmp.eq.f32.partialorder %v2313, 8.507059e+37
    %v2315 = vand.u32 %v2303, 2147483648
    %v2316 = vor.u32 1.1754944e-38, %v2315
    %v2317 = vsel %vm2314, %v2316, %v2312
    %v2318 = vmul.f32 1.0, %v2317
    %v2319 = vtanh.pop %v2216
    %v2320 = vxor.u32 %v2217, 2147483648
    %v2321 = vmul.f32 %v2320, 1.442695
    %v2322 = vpow.pop %v2321
    %v2323 = vadd.f32 %v2322, 1.0
    %v2324 = vrcp.pop %v2323
    %v2325 = vmul.f32 %v2323, %v2324
    %v2326 = vsub.f32 1.0, %v2325
    %v2327 = vmul.f32 %v2324, %v2326
    %v2328 = vadd.f32 %v2324, %v2327
    %vm2329 = vweird.f32 %v2323
    %vm2330 = vweird.f32 %v2324
    %vm2331 = vmor %vm2329, %vm2330
    %v2332 = vsel %vm2331, %v2324, %v2328
    %v2333 = vand.u32 2147483647, %v2323
    %vm2334 = vcmp.eq.f32.partialorder %v2333, 8.507059e+37
    %v2335 = vand.u32 %v2323, 2147483648
    %v2336 = vor.u32 1.1754944e-38, %v2335
    %v2337 = vsel %vm2334, %v2336, %v2332
    %v2338 = vmul.f32 1.0, %v2337
    %v2339 = vmul.f32 %v2318, %v2092
    %v2340 = vmul.f32 %v2299, %v2319
    %v2341 = vadd.f32 %v2339, %v2340
    %v2342 = vtanh.pop %v2341
    %v2343 = vmul.f32 %v2338, %v2342
    %v2344 = vadd.f32 %v2095, %v2280
    %v2345 = vadd.f32 %v2096, %v2343
    %v2346 = vpack.c.bf16 %v2343, %v2280
    %2347 = vmatpush.bf16.msra.mxu0 %v1279
    %2348 = vmatpush.bf16.msra.mxu0 %v1271
    %2349 = vmatpush.bf16.msra.mxu0 %v1263
    %2350 = vmatpush.bf16.msra.mxu0 %v1255
    %2351 = vmatpush.bf16.msra.mxu0 %v1247
    %2352 = vmatpush.bf16.msra.mxu0 %v1239
    %2353 = vmatpush.bf16.msra.mxu0 %v1231
    %2354 = vmatpush.bf16.msra.mxu0 %v1223
    %2355 = vmatmul.bf16.gmra.mxu0 %v2346
    %v2356 = vpop.f32.mrf.mxu0
    %v2357 = vadd.f32 0.0, %v2356
    %v2358 = vpop.f32.mrf.mxu0
    %2359 = vdwg.mxu0
    %2360 = vmatpush.bf16.msra.mxu0 %v1280
    %2361 = vmatpush.bf16.msra.mxu0 %v1272
    %2362 = vmatpush.bf16.msra.mxu0 %v1264
    %2363 = vmatpush.bf16.msra.mxu0 %v1256
    %2364 = vmatpush.bf16.msra.mxu0 %v1248
    %2365 = vmatpush.bf16.msra.mxu0 %v1240
    %2366 = vmatpush.bf16.msra.mxu0 %v1232
    %2367 = vmatpush.bf16.msra.mxu0 %v1224
    %2368 = vmatmul.bf16.gmra.mxu0 %v2346
    %v2369 = vpop.f32.mrf.mxu0
    %v2370 = vadd.f32 0.0, %v2369
    %v2371 = vpop.f32.mrf.mxu0
    %2372 = vdwg.mxu0
    %2373 = vmatpush.bf16.msra.mxu0 %v1281
    %2374 = vmatpush.bf16.msra.mxu0 %v1273
    %2375 = vmatpush.bf16.msra.mxu0 %v1265
    %2376 = vmatpush.bf16.msra.mxu0 %v1257
    %2377 = vmatpush.bf16.msra.mxu0 %v1249
    %2378 = vmatpush.bf16.msra.mxu0 %v1241
    %2379 = vmatpush.bf16.msra.mxu0 %v1233
    %2380 = vmatpush.bf16.msra.mxu0 %v1225
    %2381 = vmatmul.bf16.gmra.mxu0 %v2346
    %v2382 = vpop.f32.mrf.mxu0
    %v2383 = vadd.f32 0.0, %v2382
    %v2384 = vpop.f32.mrf.mxu0
    %2385 = vdwg.mxu0
    %2386 = vmatpush.bf16.msra.mxu0 %v1282
    %2387 = vmatpush.bf16.msra.mxu0 %v1274
    %2388 = vmatpush.bf16.msra.mxu0 %v1266
    %2389 = vmatpush.bf16.msra.mxu0 %v1258
    %2390 = vmatpush.bf16.msra.mxu0 %v1250
    %2391 = vmatpush.bf16.msra.mxu0 %v1242
    %2392 = vmatpush.bf16.msra.mxu0 %v1234
    %2393 = vmatpush.bf16.msra.mxu0 %v1226
    %2394 = vmatmul.bf16.gmra.mxu0 %v2346
    %v2395 = vpop.f32.mrf.mxu0
    %v2396 = vadd.f32 0.0, %v2395
    %v2397 = vpop.f32.mrf.mxu0
    %2398 = vdwg.mxu0
    %2399 = vmatpush.bf16.msra.mxu0 %v1283
    %2400 = vmatpush.bf16.msra.mxu0 %v1275
    %2401 = vmatpush.bf16.msra.mxu0 %v1267
    %2402 = vmatpush.bf16.msra.mxu0 %v1259
    %2403 = vmatpush.bf16.msra.mxu0 %v1251
    %2404 = vmatpush.bf16.msra.mxu0 %v1243
    %2405 = vmatpush.bf16.msra.mxu0 %v1235
    %2406 = vmatpush.bf16.msra.mxu0 %v1227
    %2407 = vmatmul.bf16.gmra.mxu0 %v2346
    %v2408 = vpop.f32.mrf.mxu0
    %v2409 = vpop.f32.mrf.mxu0
    %v2410 = vadd.f32 0.0, %v2409
    %2411 = vdwg.mxu0
    %2412 = vmatpush.bf16.msra.mxu0 %v1284
    %2413 = vmatpush.bf16.msra.mxu0 %v1276
    %2414 = vmatpush.bf16.msra.mxu0 %v1268
    %2415 = vmatpush.bf16.msra.mxu0 %v1260
    %2416 = vmatpush.bf16.msra.mxu0 %v1252
    %2417 = vmatpush.bf16.msra.mxu0 %v1244
    %2418 = vmatpush.bf16.msra.mxu0 %v1236
    %2419 = vmatpush.bf16.msra.mxu0 %v1228
    %2420 = vmatmul.bf16.gmra.mxu0 %v2346
    %v2421 = vpop.f32.mrf.mxu0
    %v2422 = vpop.f32.mrf.mxu0
    %v2423 = vadd.f32 0.0, %v2422
    %2424 = vdwg.mxu0
    %2425 = vmatpush.bf16.msra.mxu0 %v1285
    %2426 = vmatpush.bf16.msra.mxu0 %v1277
    %2427 = vmatpush.bf16.msra.mxu0 %v1269
    %2428 = vmatpush.bf16.msra.mxu0 %v1261
    %2429 = vmatpush.bf16.msra.mxu0 %v1253
    %2430 = vmatpush.bf16.msra.mxu0 %v1245
    %2431 = vmatpush.bf16.msra.mxu0 %v1237
    %2432 = vmatpush.bf16.msra.mxu0 %v1229
    %2433 = vmatmul.bf16.gmra.mxu0 %v2346
    %v2434 = vpop.f32.mrf.mxu0
    %v2435 = vpop.f32.mrf.mxu0
    %v2436 = vadd.f32 0.0, %v2435
    %2437 = vdwg.mxu0
    %2438 = vmatpush.bf16.msra.mxu0 %v1286
    %2439 = vmatpush.bf16.msra.mxu0 %v1278
    %2440 = vmatpush.bf16.msra.mxu0 %v1270
    %2441 = vmatpush.bf16.msra.mxu0 %v1262
    %2442 = vmatpush.bf16.msra.mxu0 %v1254
    %2443 = vmatpush.bf16.msra.mxu0 %v1246
    %2444 = vmatpush.bf16.msra.mxu0 %v1238
    %2445 = vmatpush.bf16.msra.mxu0 %v1230
    %2446 = vmatmul.bf16.gmra.mxu0 %v2346
    %v2447 = vpop.f32.mrf.mxu0
    %v2448 = vpop.f32.mrf.mxu0
    %v2449 = vadd.f32 0.0, %v2448
    %2450 = vdwg.mxu0
    %v2451 = vld [vmem:[#allocation2 + $0x80] sm:$0xff]
    %v2452 = vld [vmem:[#allocation2 + $0x88] sm:$0xff]
    %v2453 = vld [vmem:[#allocation2 + $0x90] sm:$0xff]
    %v2454 = vld [vmem:[#allocation2 + $0x98] sm:$0xff]
    %v2455 = vadd.f32 %v2451, %v2357
    %v2456 = vadd.f32 %v2452, %v2370
    %v2457 = vadd.f32 %v2453, %v2383
    %v2458 = vadd.f32 %v2454, %v2396
    %v2459 = vld [vmem:[#allocation3 + $0x80] sm:$0xff]
    %v2460 = vld [vmem:[#allocation3 + $0x88] sm:$0xff]
    %v2461 = vld [vmem:[#allocation3 + $0x90] sm:$0xff]
    %v2462 = vld [vmem:[#allocation3 + $0x98] sm:$0xff]
    %v2463 = vadd.f32 %v2459, %v2410
    %v2464 = vadd.f32 %v2460, %v2423
    %v2465 = vadd.f32 %v2461, %v2436
    %v2466 = vadd.f32 %v2462, %v2449
    %v2467 = vxor.u32 %v2455, 2147483648
    %v2468 = vmul.f32 %v2467, 1.442695
    %v2469 = vpow.pop %v2468
    %v2470 = vadd.f32 %v2469, 1.0
    %v2471 = vrcp.pop %v2470
    %v2472 = vmul.f32 %v2470, %v2471
    %v2473 = vsub.f32 1.0, %v2472
    %v2474 = vmul.f32 %v2471, %v2473
    %v2475 = vadd.f32 %v2471, %v2474
    %vm2476 = vweird.f32 %v2470
    %vm2477 = vweird.f32 %v2471
    %vm2478 = vmor %vm2476, %vm2477
    %v2479 = vsel %vm2478, %v2471, %v2475
    %v2480 = vand.u32 2147483647, %v2470
    %vm2481 = vcmp.eq.f32.partialorder %v2480, 8.507059e+37
    %v2482 = vand.u32 %v2470, 2147483648
    %v2483 = vor.u32 1.1754944e-38, %v2482
    %v2484 = vsel %vm2481, %v2483, %v2479
    %v2485 = vmul.f32 1.0, %v2484
    %v2486 = vxor.u32 %v2456, 2147483648
    %v2487 = vmul.f32 %v2486, 1.442695
    %v2488 = vpow.pop %v2487
    %v2489 = vadd.f32 %v2488, 1.0
    %v2490 = vrcp.pop %v2489
    %v2491 = vmul.f32 %v2489, %v2490
    %v2492 = vsub.f32 1.0, %v2491
    %v2493 = vmul.f32 %v2490, %v2492
    %v2494 = vadd.f32 %v2490, %v2493
    %vm2495 = vweird.f32 %v2489
    %vm2496 = vweird.f32 %v2490
    %vm2497 = vmor %vm2495, %vm2496
    %v2498 = vsel %vm2497, %v2490, %v2494
    %v2499 = vand.u32 2147483647, %v2489
    %vm2500 = vcmp.eq.f32.partialorder %v2499, 8.507059e+37
    %v2501 = vand.u32 %v2489, 2147483648
    %v2502 = vor.u32 1.1754944e-38, %v2501
    %v2503 = vsel %vm2500, %v2502, %v2498
    %v2504 = vmul.f32 1.0, %v2503
    %v2505 = vtanh.pop %v2457
    %v2506 = vxor.u32 %v2458, 2147483648
    %v2507 = vmul.f32 %v2506, 1.442695
    %v2508 = vpow.pop %v2507
    %v2509 = vadd.f32 %v2508, 1.0
    %v2510 = vrcp.pop %v2509
    %v2511 = vmul.f32 %v2509, %v2510
    %v2512 = vsub.f32 1.0, %v2511
    %v2513 = vmul.f32 %v2510, %v2512
    %v2514 = vadd.f32 %v2510, %v2513
    %vm2515 = vweird.f32 %v2509
    %vm2516 = vweird.f32 %v2510
    %vm2517 = vmor %vm2515, %vm2516
    %v2518 = vsel %vm2517, %v2510, %v2514
    %v2519 = vand.u32 2147483647, %v2509
    %vm2520 = vcmp.eq.f32.partialorder %v2519, 8.507059e+37
    %v2521 = vand.u32 %v2509, 2147483648
    %v2522 = vor.u32 1.1754944e-38, %v2521
    %v2523 = vsel %vm2520, %v2522, %v2518
    %v2524 = vmul.f32 1.0, %v2523
    %v2525 = vmul.f32 %v2504, %v2278
    %v2526 = vmul.f32 %v2485, %v2505
    %v2527 = vadd.f32 %v2525, %v2526
    %v2528 = vtanh.pop %v2527
    %v2529 = vmul.f32 %v2524, %v2528
    %v2530 = vxor.u32 %v2463, 2147483648
    %v2531 = vmul.f32 %v2530, 1.442695
    %v2532 = vpow.pop %v2531
    %v2533 = vadd.f32 %v2532, 1.0
    %v2534 = vrcp.pop %v2533
    %v2535 = vmul.f32 %v2533, %v2534
    %v2536 = vsub.f32 1.0, %v2535
    %v2537 = vmul.f32 %v2534, %v2536
    %v2538 = vadd.f32 %v2534, %v2537
    %vm2539 = vweird.f32 %v2533
    %vm2540 = vweird.f32 %v2534
    %vm2541 = vmor %vm2539, %vm2540
    %v2542 = vsel %vm2541, %v2534, %v2538
    %v2543 = vand.u32 2147483647, %v2533
    %vm2544 = vcmp.eq.f32.partialorder %v2543, 8.507059e+37
    %v2545 = vand.u32 %v2533, 2147483648
    %v2546 = vor.u32 1.1754944e-38, %v2545
    %v2547 = vsel %vm2544, %v2546, %v2542
    %v2548 = vmul.f32 1.0, %v2547
    %v2549 = vxor.u32 %v2464, 2147483648
    %v2550 = vmul.f32 %v2549, 1.442695
    %v2551 = vpow.pop %v2550
    %v2552 = vadd.f32 %v2551, 1.0
    %v2553 = vrcp.pop %v2552
    %v2554 = vmul.f32 %v2552, %v2553
    %v2555 = vsub.f32 1.0, %v2554
    %v2556 = vmul.f32 %v2553, %v2555
    %v2557 = vadd.f32 %v2553, %v2556
    %vm2558 = vweird.f32 %v2552
    %vm2559 = vweird.f32 %v2553
    %vm2560 = vmor %vm2558, %vm2559
    %v2561 = vsel %vm2560, %v2553, %v2557
    %v2562 = vand.u32 2147483647, %v2552
    %vm2563 = vcmp.eq.f32.partialorder %v2562, 8.507059e+37
    %v2564 = vand.u32 %v2552, 2147483648
    %v2565 = vor.u32 1.1754944e-38, %v2564
    %v2566 = vsel %vm2563, %v2565, %v2561
    %v2567 = vmul.f32 1.0, %v2566
    %v2568 = vtanh.pop %v2465
    %v2569 = vxor.u32 %v2466, 2147483648
    %v2570 = vmul.f32 %v2569, 1.442695
    %v2571 = vpow.pop %v2570
    %v2572 = vadd.f32 %v2571, 1.0
    %v2573 = vrcp.pop %v2572
    %v2574 = vmul.f32 %v2572, %v2573
    %v2575 = vsub.f32 1.0, %v2574
    %v2576 = vmul.f32 %v2573, %v2575
    %v2577 = vadd.f32 %v2573, %v2576
    %vm2578 = vweird.f32 %v2572
    %vm2579 = vweird.f32 %v2573
    %vm2580 = vmor %vm2578, %vm2579
    %v2581 = vsel %vm2580, %v2573, %v2577
    %v2582 = vand.u32 2147483647, %v2572
    %vm2583 = vcmp.eq.f32.partialorder %v2582, 8.507059e+37
    %v2584 = vand.u32 %v2572, 2147483648
    %v2585 = vor.u32 1.1754944e-38, %v2584
    %v2586 = vsel %vm2583, %v2585, %v2581
    %v2587 = vmul.f32 1.0, %v2586
    %v2588 = vmul.f32 %v2567, %v2341
    %v2589 = vmul.f32 %v2548, %v2568
    %v2590 = vadd.f32 %v2588, %v2589
    %v2591 = vtanh.pop %v2590
    %v2592 = vmul.f32 %v2587, %v2591
    %v2593 = vadd.f32 %v2344, %v2529
    %v2594 = vadd.f32 %v2345, %v2592
    %v2595 = vpack.c.bf16 %v2592, %v2529
    %2596 = vmatpush.bf16.msra.mxu0 %v1279
    %2597 = vmatpush.bf16.msra.mxu0 %v1271
    %2598 = vmatpush.bf16.msra.mxu0 %v1263
    %2599 = vmatpush.bf16.msra.mxu0 %v1255
    %2600 = vmatpush.bf16.msra.mxu0 %v1247
    %2601 = vmatpush.bf16.msra.mxu0 %v1239
    %2602 = vmatpush.bf16.msra.mxu0 %v1231
    %2603 = vmatpush.bf16.msra.mxu0 %v1223
    %2604 = vmatmul.bf16.gmra.mxu0 %v2595
    %v2605 = vpop.f32.mrf.mxu0
    %v2606 = vadd.f32 0.0, %v2605
    %v2607 = vpop.f32.mrf.mxu0
    %2608 = vdwg.mxu0
    %2609 = vmatpush.bf16.msra.mxu0 %v1280
    %2610 = vmatpush.bf16.msra.mxu0 %v1272
    %2611 = vmatpush.bf16.msra.mxu0 %v1264
    %2612 = vmatpush.bf16.msra.mxu0 %v1256
    %2613 = vmatpush.bf16.msra.mxu0 %v1248
    %2614 = vmatpush.bf16.msra.mxu0 %v1240
    %2615 = vmatpush.bf16.msra.mxu0 %v1232
    %2616 = vmatpush.bf16.msra.mxu0 %v1224
    %2617 = vmatmul.bf16.gmra.mxu0 %v2595
    %v2618 = vpop.f32.mrf.mxu0
    %v2619 = vadd.f32 0.0, %v2618
    %v2620 = vpop.f32.mrf.mxu0
    %2621 = vdwg.mxu0
    %2622 = vmatpush.bf16.msra.mxu0 %v1281
    %2623 = vmatpush.bf16.msra.mxu0 %v1273
    %2624 = vmatpush.bf16.msra.mxu0 %v1265
    %2625 = vmatpush.bf16.msra.mxu0 %v1257
    %2626 = vmatpush.bf16.msra.mxu0 %v1249
    %2627 = vmatpush.bf16.msra.mxu0 %v1241
    %2628 = vmatpush.bf16.msra.mxu0 %v1233
    %2629 = vmatpush.bf16.msra.mxu0 %v1225
    %2630 = vmatmul.bf16.gmra.mxu0 %v2595
    %v2631 = vpop.f32.mrf.mxu0
    %v2632 = vadd.f32 0.0, %v2631
    %v2633 = vpop.f32.mrf.mxu0
    %2634 = vdwg.mxu0
    %2635 = vmatpush.bf16.msra.mxu0 %v1282
    %2636 = vmatpush.bf16.msra.mxu0 %v1274
    %2637 = vmatpush.bf16.msra.mxu0 %v1266
    %2638 = vmatpush.bf16.msra.mxu0 %v1258
    %2639 = vmatpush.bf16.msra.mxu0 %v1250
    %2640 = vmatpush.bf16.msra.mxu0 %v1242
    %2641 = vmatpush.bf16.msra.mxu0 %v1234
    %2642 = vmatpush.bf16.msra.mxu0 %v1226
    %2643 = vmatmul.bf16.gmra.mxu0 %v2595
    %v2644 = vpop.f32.mrf.mxu0
    %v2645 = vadd.f32 0.0, %v2644
    %v2646 = vpop.f32.mrf.mxu0
    %2647 = vdwg.mxu0
    %2648 = vmatpush.bf16.msra.mxu0 %v1283
    %2649 = vmatpush.bf16.msra.mxu0 %v1275
    %2650 = vmatpush.bf16.msra.mxu0 %v1267
    %2651 = vmatpush.bf16.msra.mxu0 %v1259
    %2652 = vmatpush.bf16.msra.mxu0 %v1251
    %2653 = vmatpush.bf16.msra.mxu0 %v1243
    %2654 = vmatpush.bf16.msra.mxu0 %v1235
    %2655 = vmatpush.bf16.msra.mxu0 %v1227
    %2656 = vmatmul.bf16.gmra.mxu0 %v2595
    %v2657 = vpop.f32.mrf.mxu0
    %v2658 = vpop.f32.mrf.mxu0
    %v2659 = vadd.f32 0.0, %v2658
    %2660 = vdwg.mxu0
    %2661 = vmatpush.bf16.msra.mxu0 %v1284
    %2662 = vmatpush.bf16.msra.mxu0 %v1276
    %2663 = vmatpush.bf16.msra.mxu0 %v1268
    %2664 = vmatpush.bf16.msra.mxu0 %v1260
    %2665 = vmatpush.bf16.msra.mxu0 %v1252
    %2666 = vmatpush.bf16.msra.mxu0 %v1244
    %2667 = vmatpush.bf16.msra.mxu0 %v1236
    %2668 = vmatpush.bf16.msra.mxu0 %v1228
    %2669 = vmatmul.bf16.gmra.mxu0 %v2595
    %v2670 = vpop.f32.mrf.mxu0
    %v2671 = vpop.f32.mrf.mxu0
    %v2672 = vadd.f32 0.0, %v2671
    %2673 = vdwg.mxu0
    %2674 = vmatpush.bf16.msra.mxu0 %v1285
    %2675 = vmatpush.bf16.msra.mxu0 %v1277
    %2676 = vmatpush.bf16.msra.mxu0 %v1269
    %2677 = vmatpush.bf16.msra.mxu0 %v1261
    %2678 = vmatpush.bf16.msra.mxu0 %v1253
    %2679 = vmatpush.bf16.msra.mxu0 %v1245
    %2680 = vmatpush.bf16.msra.mxu0 %v1237
    %2681 = vmatpush.bf16.msra.mxu0 %v1229
    %2682 = vmatmul.bf16.gmra.mxu0 %v2595
    %v2683 = vpop.f32.mrf.mxu0
    %v2684 = vpop.f32.mrf.mxu0
    %v2685 = vadd.f32 0.0, %v2684
    %2686 = vdwg.mxu0
    %2687 = vmatpush.bf16.msra.mxu0 %v1286
    %2688 = vmatpush.bf16.msra.mxu0 %v1278
    %2689 = vmatpush.bf16.msra.mxu0 %v1270
    %2690 = vmatpush.bf16.msra.mxu0 %v1262
    %2691 = vmatpush.bf16.msra.mxu0 %v1254
    %2692 = vmatpush.bf16.msra.mxu0 %v1246
    %2693 = vmatpush.bf16.msra.mxu0 %v1238
    %2694 = vmatpush.bf16.msra.mxu0 %v1230
    %2695 = vmatmul.bf16.gmra.mxu0 %v2595
    %v2696 = vpop.f32.mrf.mxu0
    %v2697 = vpop.f32.mrf.mxu0
    %v2698 = vadd.f32 0.0, %v2697
    %2699 = vdwg.mxu0
    %v2700 = vld [vmem:[#allocation2 + $0xa0] sm:$0xff]
    %v2701 = vld [vmem:[#allocation2 + $0xa8] sm:$0xff]
    %v2702 = vld [vmem:[#allocation2 + $0xb0] sm:$0xff]
    %v2703 = vld [vmem:[#allocation2 + $0xb8] sm:$0xff]
    %v2704 = vadd.f32 %v2700, %v2606
    %v2705 = vadd.f32 %v2701, %v2619
    %v2706 = vadd.f32 %v2702, %v2632
    %v2707 = vadd.f32 %v2703, %v2645
    %v2708 = vld [vmem:[#allocation3 + $0xa0] sm:$0xff]
    %v2709 = vld [vmem:[#allocation3 + $0xa8] sm:$0xff]
    %v2710 = vld [vmem:[#allocation3 + $0xb0] sm:$0xff]
    %v2711 = vld [vmem:[#allocation3 + $0xb8] sm:$0xff]
    %v2712 = vadd.f32 %v2708, %v2659
    %v2713 = vadd.f32 %v2709, %v2672
    %v2714 = vadd.f32 %v2710, %v2685
    %v2715 = vadd.f32 %v2711, %v2698
    %v2716 = vxor.u32 %v2704, 2147483648
    %v2717 = vmul.f32 %v2716, 1.442695
    %v2718 = vpow.pop %v2717
    %v2719 = vadd.f32 %v2718, 1.0
    %v2720 = vrcp.pop %v2719
    %v2721 = vmul.f32 %v2719, %v2720
    %v2722 = vsub.f32 1.0, %v2721
    %v2723 = vmul.f32 %v2720, %v2722
    %v2724 = vadd.f32 %v2720, %v2723
    %vm2725 = vweird.f32 %v2719
    %vm2726 = vweird.f32 %v2720
    %vm2727 = vmor %vm2725, %vm2726
    %v2728 = vsel %vm2727, %v2720, %v2724
    %v2729 = vand.u32 2147483647, %v2719
    %vm2730 = vcmp.eq.f32.partialorder %v2729, 8.507059e+37
    %v2731 = vand.u32 %v2719, 2147483648
    %v2732 = vor.u32 1.1754944e-38, %v2731
    %v2733 = vsel %vm2730, %v2732, %v2728
    %v2734 = vmul.f32 1.0, %v2733
    %v2735 = vxor.u32 %v2705, 2147483648
    %v2736 = vmul.f32 %v2735, 1.442695
    %v2737 = vpow.pop %v2736
    %v2738 = vadd.f32 %v2737, 1.0
    %v2739 = vrcp.pop %v2738
    %v2740 = vmul.f32 %v2738, %v2739
    %v2741 = vsub.f32 1.0, %v2740
    %v2742 = vmul.f32 %v2739, %v2741
    %v2743 = vadd.f32 %v2739, %v2742
    %vm2744 = vweird.f32 %v2738
    %vm2745 = vweird.f32 %v2739
    %vm2746 = vmor %vm2744, %vm2745
    %v2747 = vsel %vm2746, %v2739, %v2743
    %v2748 = vand.u32 2147483647, %v2738
    %vm2749 = vcmp.eq.f32.partialorder %v2748, 8.507059e+37
    %v2750 = vand.u32 %v2738, 2147483648
    %v2751 = vor.u32 1.1754944e-38, %v2750
    %v2752 = vsel %vm2749, %v2751, %v2747
    %v2753 = vmul.f32 1.0, %v2752
    %v2754 = vtanh.pop %v2706
    %v2755 = vxor.u32 %v2707, 2147483648
    %v2756 = vmul.f32 %v2755, 1.442695
    %v2757 = vpow.pop %v2756
    %v2758 = vadd.f32 %v2757, 1.0
    %v2759 = vrcp.pop %v2758
    %v2760 = vmul.f32 %v2758, %v2759
    %v2761 = vsub.f32 1.0, %v2760
    %v2762 = vmul.f32 %v2759, %v2761
    %v2763 = vadd.f32 %v2759, %v2762
    %vm2764 = vweird.f32 %v2758
    %vm2765 = vweird.f32 %v2759
    %vm2766 = vmor %vm2764, %vm2765
    %v2767 = vsel %vm2766, %v2759, %v2763
    %v2768 = vand.u32 2147483647, %v2758
    %vm2769 = vcmp.eq.f32.partialorder %v2768, 8.507059e+37
    %v2770 = vand.u32 %v2758, 2147483648
    %v2771 = vor.u32 1.1754944e-38, %v2770
    %v2772 = vsel %vm2769, %v2771, %v2767
    %v2773 = vmul.f32 1.0, %v2772
    %v2774 = vmul.f32 %v2753, %v2527
    %v2775 = vmul.f32 %v2734, %v2754
    %v2776 = vadd.f32 %v2774, %v2775
    %v2777 = vtanh.pop %v2776
    %v2778 = vmul.f32 %v2773, %v2777
    %v2779 = vxor.u32 %v2712, 2147483648
    %v2780 = vmul.f32 %v2779, 1.442695
    %v2781 = vpow.pop %v2780
    %v2782 = vadd.f32 %v2781, 1.0
    %v2783 = vrcp.pop %v2782
    %v2784 = vmul.f32 %v2782, %v2783
    %v2785 = vsub.f32 1.0, %v2784
    %v2786 = vmul.f32 %v2783, %v2785
    %v2787 = vadd.f32 %v2783, %v2786
    %vm2788 = vweird.f32 %v2782
    %vm2789 = vweird.f32 %v2783
    %vm2790 = vmor %vm2788, %vm2789
    %v2791 = vsel %vm2790, %v2783, %v2787
    %v2792 = vand.u32 2147483647, %v2782
    %vm2793 = vcmp.eq.f32.partialorder %v2792, 8.507059e+37
    %v2794 = vand.u32 %v2782, 2147483648
    %v2795 = vor.u32 1.1754944e-38, %v2794
    %v2796 = vsel %vm2793, %v2795, %v2791
    %v2797 = vmul.f32 1.0, %v2796
    %v2798 = vxor.u32 %v2713, 2147483648
    %v2799 = vmul.f32 %v2798, 1.442695
    %v2800 = vpow.pop %v2799
    %v2801 = vadd.f32 %v2800, 1.0
    %v2802 = vrcp.pop %v2801
    %v2803 = vmul.f32 %v2801, %v2802
    %v2804 = vsub.f32 1.0, %v2803
    %v2805 = vmul.f32 %v2802, %v2804
    %v2806 = vadd.f32 %v2802, %v2805
    %vm2807 = vweird.f32 %v2801
    %vm2808 = vweird.f32 %v2802
    %vm2809 = vmor %vm2807, %vm2808
    %v2810 = vsel %vm2809, %v2802, %v2806
    %v2811 = vand.u32 2147483647, %v2801
    %vm2812 = vcmp.eq.f32.partialorder %v2811, 8.507059e+37
    %v2813 = vand.u32 %v2801, 2147483648
    %v2814 = vor.u32 1.1754944e-38, %v2813
    %v2815 = vsel %vm2812, %v2814, %v2810
    %v2816 = vmul.f32 1.0, %v2815
    %v2817 = vtanh.pop %v2714
    %v2818 = vxor.u32 %v2715, 2147483648
    %v2819 = vmul.f32 %v2818, 1.442695
    %v2820 = vpow.pop %v2819
    %v2821 = vadd.f32 %v2820, 1.0
    %v2822 = vrcp.pop %v2821
    %v2823 = vmul.f32 %v2821, %v2822
    %v2824 = vsub.f32 1.0, %v2823
    %v2825 = vmul.f32 %v2822, %v2824
    %v2826 = vadd.f32 %v2822, %v2825
    %vm2827 = vweird.f32 %v2821
    %vm2828 = vweird.f32 %v2822
    %vm2829 = vmor %vm2827, %vm2828
    %v2830 = vsel %vm2829, %v2822, %v2826
    %v2831 = vand.u32 2147483647, %v2821
    %vm2832 = vcmp.eq.f32.partialorder %v2831, 8.507059e+37
    %v2833 = vand.u32 %v2821, 2147483648
    %v2834 = vor.u32 1.1754944e-38, %v2833
    %v2835 = vsel %vm2832, %v2834, %v2830
    %v2836 = vmul.f32 1.0, %v2835
    %v2837 = vmul.f32 %v2816, %v2590
    %v2838 = vmul.f32 %v2797, %v2817
    %v2839 = vadd.f32 %v2837, %v2838
    %v2840 = vtanh.pop %v2839
    %v2841 = vmul.f32 %v2836, %v2840
    %v2842 = vadd.f32 %v2593, %v2778
    %v2843 = vadd.f32 %v2594, %v2841
    %v2844 = vpack.c.bf16 %v2841, %v2778
    %2845 = vmatpush.bf16.msra.mxu0 %v1279
    %2846 = vmatpush.bf16.msra.mxu0 %v1271
    %2847 = vmatpush.bf16.msra.mxu0 %v1263
    %2848 = vmatpush.bf16.msra.mxu0 %v1255
    %2849 = vmatpush.bf16.msra.mxu0 %v1247
    %2850 = vmatpush.bf16.msra.mxu0 %v1239
    %2851 = vmatpush.bf16.msra.mxu0 %v1231
    %2852 = vmatpush.bf16.msra.mxu0 %v1223
    %2853 = vmatmul.bf16.gmra.mxu0 %v2844
    %v2854 = vpop.f32.mrf.mxu0
    %v2855 = vadd.f32 0.0, %v2854
    %v2856 = vpop.f32.mrf.mxu0
    %2857 = vdwg.mxu0
    %2858 = vmatpush.bf16.msra.mxu0 %v1280
    %2859 = vmatpush.bf16.msra.mxu0 %v1272
    %2860 = vmatpush.bf16.msra.mxu0 %v1264
    %2861 = vmatpush.bf16.msra.mxu0 %v1256
    %2862 = vmatpush.bf16.msra.mxu0 %v1248
    %2863 = vmatpush.bf16.msra.mxu0 %v1240
    %2864 = vmatpush.bf16.msra.mxu0 %v1232
    %2865 = vmatpush.bf16.msra.mxu0 %v1224
    %2866 = vmatmul.bf16.gmra.mxu0 %v2844
    %v2867 = vpop.f32.mrf.mxu0
    %v2868 = vadd.f32 0.0, %v2867
    %v2869 = vpop.f32.mrf.mxu0
    %2870 = vdwg.mxu0
    %2871 = vmatpush.bf16.msra.mxu0 %v1281
    %2872 = vmatpush.bf16.msra.mxu0 %v1273
    %2873 = vmatpush.bf16.msra.mxu0 %v1265
    %2874 = vmatpush.bf16.msra.mxu0 %v1257
    %2875 = vmatpush.bf16.msra.mxu0 %v1249
    %2876 = vmatpush.bf16.msra.mxu0 %v1241
    %2877 = vmatpush.bf16.msra.mxu0 %v1233
    %2878 = vmatpush.bf16.msra.mxu0 %v1225
    %2879 = vmatmul.bf16.gmra.mxu0 %v2844
    %v2880 = vpop.f32.mrf.mxu0
    %v2881 = vadd.f32 0.0, %v2880
    %v2882 = vpop.f32.mrf.mxu0
    %2883 = vdwg.mxu0
    %2884 = vmatpush.bf16.msra.mxu0 %v1282
    %2885 = vmatpush.bf16.msra.mxu0 %v1274
    %2886 = vmatpush.bf16.msra.mxu0 %v1266
    %2887 = vmatpush.bf16.msra.mxu0 %v1258
    %2888 = vmatpush.bf16.msra.mxu0 %v1250
    %2889 = vmatpush.bf16.msra.mxu0 %v1242
    %2890 = vmatpush.bf16.msra.mxu0 %v1234
    %2891 = vmatpush.bf16.msra.mxu0 %v1226
    %2892 = vmatmul.bf16.gmra.mxu0 %v2844
    %v2893 = vpop.f32.mrf.mxu0
    %v2894 = vadd.f32 0.0, %v2893
    %v2895 = vpop.f32.mrf.mxu0
    %2896 = vdwg.mxu0
    %2897 = vmatpush.bf16.msra.mxu0 %v1283
    %2898 = vmatpush.bf16.msra.mxu0 %v1275
    %2899 = vmatpush.bf16.msra.mxu0 %v1267
    %2900 = vmatpush.bf16.msra.mxu0 %v1259
    %2901 = vmatpush.bf16.msra.mxu0 %v1251
    %2902 = vmatpush.bf16.msra.mxu0 %v1243
    %2903 = vmatpush.bf16.msra.mxu0 %v1235
    %2904 = vmatpush.bf16.msra.mxu0 %v1227
    %2905 = vmatmul.bf16.gmra.mxu0 %v2844
    %v2906 = vpop.f32.mrf.mxu0
    %v2907 = vpop.f32.mrf.mxu0
    %v2908 = vadd.f32 0.0, %v2907
    %2909 = vdwg.mxu0
    %2910 = vmatpush.bf16.msra.mxu0 %v1284
    %2911 = vmatpush.bf16.msra.mxu0 %v1276
    %2912 = vmatpush.bf16.msra.mxu0 %v1268
    %2913 = vmatpush.bf16.msra.mxu0 %v1260
    %2914 = vmatpush.bf16.msra.mxu0 %v1252
    %2915 = vmatpush.bf16.msra.mxu0 %v1244
    %2916 = vmatpush.bf16.msra.mxu0 %v1236
    %2917 = vmatpush.bf16.msra.mxu0 %v1228
    %2918 = vmatmul.bf16.gmra.mxu0 %v2844
    %v2919 = vpop.f32.mrf.mxu0
    %v2920 = vpop.f32.mrf.mxu0
    %v2921 = vadd.f32 0.0, %v2920
    %2922 = vdwg.mxu0
    %2923 = vmatpush.bf16.msra.mxu0 %v1285
    %2924 = vmatpush.bf16.msra.mxu0 %v1277
    %2925 = vmatpush.bf16.msra.mxu0 %v1269
    %2926 = vmatpush.bf16.msra.mxu0 %v1261
    %2927 = vmatpush.bf16.msra.mxu0 %v1253
    %2928 = vmatpush.bf16.msra.mxu0 %v1245
    %2929 = vmatpush.bf16.msra.mxu0 %v1237
    %2930 = vmatpush.bf16.msra.mxu0 %v1229
    %2931 = vmatmul.bf16.gmra.mxu0 %v2844
    %v2932 = vpop.f32.mrf.mxu0
    %v2933 = vpop.f32.mrf.mxu0
    %v2934 = vadd.f32 0.0, %v2933
    %2935 = vdwg.mxu0
    %2936 = vmatpush.bf16.msra.mxu0 %v1286
    %2937 = vmatpush.bf16.msra.mxu0 %v1278
    %2938 = vmatpush.bf16.msra.mxu0 %v1270
    %2939 = vmatpush.bf16.msra.mxu0 %v1262
    %2940 = vmatpush.bf16.msra.mxu0 %v1254
    %2941 = vmatpush.bf16.msra.mxu0 %v1246
    %2942 = vmatpush.bf16.msra.mxu0 %v1238
    %2943 = vmatpush.bf16.msra.mxu0 %v1230
    %2944 = vmatmul.bf16.gmra.mxu0 %v2844
    %v2945 = vpop.f32.mrf.mxu0
    %v2946 = vpop.f32.mrf.mxu0
    %v2947 = vadd.f32 0.0, %v2946
    %2948 = vdwg.mxu0
    %v2949 = vld [vmem:[#allocation2 + $0xc0] sm:$0xff]
    %v2950 = vld [vmem:[#allocation2 + $0xc8] sm:$0xff]
    %v2951 = vld [vmem:[#allocation2 + $0xd0] sm:$0xff]
    %v2952 = vld [vmem:[#allocation2 + $0xd8] sm:$0xff]
    %v2953 = vadd.f32 %v2949, %v2855
    %v2954 = vadd.f32 %v2950, %v2868
    %v2955 = vadd.f32 %v2951, %v2881
    %v2956 = vadd.f32 %v2952, %v2894
    %v2957 = vld [vmem:[#allocation3 + $0xc0] sm:$0xff]
    %v2958 = vld [vmem:[#allocation3 + $0xc8] sm:$0xff]
    %v2959 = vld [vmem:[#allocation3 + $0xd0] sm:$0xff]
    %v2960 = vld [vmem:[#allocation3 + $0xd8] sm:$0xff]
    %v2961 = vadd.f32 %v2957, %v2908
    %v2962 = vadd.f32 %v2958, %v2921
    %v2963 = vadd.f32 %v2959, %v2934
    %v2964 = vadd.f32 %v2960, %v2947
    %v2965 = vxor.u32 %v2953, 2147483648
    %v2966 = vmul.f32 %v2965, 1.442695
    %v2967 = vpow.pop %v2966
    %v2968 = vadd.f32 %v2967, 1.0
    %v2969 = vrcp.pop %v2968
    %v2970 = vmul.f32 %v2968, %v2969
    %v2971 = vsub.f32 1.0, %v2970
    %v2972 = vmul.f32 %v2969, %v2971
    %v2973 = vadd.f32 %v2969, %v2972
    %vm2974 = vweird.f32 %v2968
    %vm2975 = vweird.f32 %v2969
    %vm2976 = vmor %vm2974, %vm2975
    %v2977 = vsel %vm2976, %v2969, %v2973
    %v2978 = vand.u32 2147483647, %v2968
    %vm2979 = vcmp.eq.f32.partialorder %v2978, 8.507059e+37
    %v2980 = vand.u32 %v2968, 2147483648
    %v2981 = vor.u32 1.1754944e-38, %v2980
    %v2982 = vsel %vm2979, %v2981, %v2977
    %v2983 = vmul.f32 1.0, %v2982
    %v2984 = vxor.u32 %v2954, 2147483648
    %v2985 = vmul.f32 %v2984, 1.442695
    %v2986 = vpow.pop %v2985
    %v2987 = vadd.f32 %v2986, 1.0
    %v2988 = vrcp.pop %v2987
    %v2989 = vmul.f32 %v2987, %v2988
    %v2990 = vsub.f32 1.0, %v2989
    %v2991 = vmul.f32 %v2988, %v2990
    %v2992 = vadd.f32 %v2988, %v2991
    %vm2993 = vweird.f32 %v2987
    %vm2994 = vweird.f32 %v2988
    %vm2995 = vmor %vm2993, %vm2994
    %v2996 = vsel %vm2995, %v2988, %v2992
    %v2997 = vand.u32 2147483647, %v2987
    %vm2998 = vcmp.eq.f32.partialorder %v2997, 8.507059e+37
    %v2999 = vand.u32 %v2987, 2147483648
    %v3000 = vor.u32 1.1754944e-38, %v2999
    %v3001 = vsel %vm2998, %v3000, %v2996
    %v3002 = vmul.f32 1.0, %v3001
    %v3003 = vtanh.pop %v2955
    %v3004 = vxor.u32 %v2956, 2147483648
    %v3005 = vmul.f32 %v3004, 1.442695
    %v3006 = vpow.pop %v3005
    %v3007 = vadd.f32 %v3006, 1.0
    %v3008 = vrcp.pop %v3007
    %v3009 = vmul.f32 %v3007, %v3008
    %v3010 = vsub.f32 1.0, %v3009
    %v3011 = vmul.f32 %v3008, %v3010
    %v3012 = vadd.f32 %v3008, %v3011
    %vm3013 = vweird.f32 %v3007
    %vm3014 = vweird.f32 %v3008
    %vm3015 = vmor %vm3013, %vm3014
    %v3016 = vsel %vm3015, %v3008, %v3012
    %v3017 = vand.u32 2147483647, %v3007
    %vm3018 = vcmp.eq.f32.partialorder %v3017, 8.507059e+37
    %v3019 = vand.u32 %v3007, 2147483648
    %v3020 = vor.u32 1.1754944e-38, %v3019
    %v3021 = vsel %vm3018, %v3020, %v3016
    %v3022 = vmul.f32 1.0, %v3021
    %v3023 = vmul.f32 %v3002, %v2776
    %v3024 = vmul.f32 %v2983, %v3003
    %v3025 = vadd.f32 %v3023, %v3024
    %v3026 = vtanh.pop %v3025
    %v3027 = vmul.f32 %v3022, %v3026
    %v3028 = vxor.u32 %v2961, 2147483648
    %v3029 = vmul.f32 %v3028, 1.442695
    %v3030 = vpow.pop %v3029
    %v3031 = vadd.f32 %v3030, 1.0
    %v3032 = vrcp.pop %v3031
    %v3033 = vmul.f32 %v3031, %v3032
    %v3034 = vsub.f32 1.0, %v3033
    %v3035 = vmul.f32 %v3032, %v3034
    %v3036 = vadd.f32 %v3032, %v3035
    %vm3037 = vweird.f32 %v3031
    %vm3038 = vweird.f32 %v3032
    %vm3039 = vmor %vm3037, %vm3038
    %v3040 = vsel %vm3039, %v3032, %v3036
    %v3041 = vand.u32 2147483647, %v3031
    %vm3042 = vcmp.eq.f32.partialorder %v3041, 8.507059e+37
    %v3043 = vand.u32 %v3031, 2147483648
    %v3044 = vor.u32 1.1754944e-38, %v3043
    %v3045 = vsel %vm3042, %v3044, %v3040
    %v3046 = vmul.f32 1.0, %v3045
    %v3047 = vxor.u32 %v2962, 2147483648
    %v3048 = vmul.f32 %v3047, 1.442695
    %v3049 = vpow.pop %v3048
    %v3050 = vadd.f32 %v3049, 1.0
    %v3051 = vrcp.pop %v3050
    %v3052 = vmul.f32 %v3050, %v3051
    %v3053 = vsub.f32 1.0, %v3052
    %v3054 = vmul.f32 %v3051, %v3053
    %v3055 = vadd.f32 %v3051, %v3054
    %vm3056 = vweird.f32 %v3050
    %vm3057 = vweird.f32 %v3051
    %vm3058 = vmor %vm3056, %vm3057
    %v3059 = vsel %vm3058, %v3051, %v3055
    %v3060 = vand.u32 2147483647, %v3050
    %vm3061 = vcmp.eq.f32.partialorder %v3060, 8.507059e+37
    %v3062 = vand.u32 %v3050, 2147483648
    %v3063 = vor.u32 1.1754944e-38, %v3062
    %v3064 = vsel %vm3061, %v3063, %v3059
    %v3065 = vmul.f32 1.0, %v3064
    %v3066 = vtanh.pop %v2963
    %v3067 = vxor.u32 %v2964, 2147483648
    %v3068 = vmul.f32 %v3067, 1.442695
    %v3069 = vpow.pop %v3068
    %v3070 = vadd.f32 %v3069, 1.0
    %v3071 = vrcp.pop %v3070
    %v3072 = vmul.f32 %v3070, %v3071
    %v3073 = vsub.f32 1.0, %v3072
    %v3074 = vmul.f32 %v3071, %v3073
    %v3075 = vadd.f32 %v3071, %v3074
    %vm3076 = vweird.f32 %v3070
    %vm3077 = vweird.f32 %v3071
    %vm3078 = vmor %vm3076, %vm3077
    %v3079 = vsel %vm3078, %v3071, %v3075
    %v3080 = vand.u32 2147483647, %v3070
    %vm3081 = vcmp.eq.f32.partialorder %v3080, 8.507059e+37
    %v3082 = vand.u32 %v3070, 2147483648
    %v3083 = vor.u32 1.1754944e-38, %v3082
    %v3084 = vsel %vm3081, %v3083, %v3079
    %v3085 = vmul.f32 1.0, %v3084
    %v3086 = vmul.f32 %v3065, %v2839
    %v3087 = vmul.f32 %v3046, %v3066
    %v3088 = vadd.f32 %v3086, %v3087
    %v3089 = vtanh.pop %v3088
    %v3090 = vmul.f32 %v3085, %v3089
    %v3091 = vadd.f32 %v2842, %v3027
    %v3092 = vadd.f32 %v2843, %v3090
    %v3093 = vpack.c.bf16 %v3090, %v3027
    %3094 = vmatpush.bf16.msra.mxu0 %v1279
    %3095 = vmatpush.bf16.msra.mxu0 %v1271
    %3096 = vmatpush.bf16.msra.mxu0 %v1263
    %3097 = vmatpush.bf16.msra.mxu0 %v1255
    %3098 = vmatpush.bf16.msra.mxu0 %v1247
    %3099 = vmatpush.bf16.msra.mxu0 %v1239
    %3100 = vmatpush.bf16.msra.mxu0 %v1231
    %3101 = vmatpush.bf16.msra.mxu0 %v1223
    %3102 = vmatmul.bf16.gmra.mxu0 %v3093
    %v3103 = vpop.f32.mrf.mxu0
    %v3104 = vadd.f32 0.0, %v3103
    %v3105 = vpop.f32.mrf.mxu0
    %3106 = vdwg.mxu0
    %3107 = vmatpush.bf16.msra.mxu0 %v1280
    %3108 = vmatpush.bf16.msra.mxu0 %v1272
    %3109 = vmatpush.bf16.msra.mxu0 %v1264
    %3110 = vmatpush.bf16.msra.mxu0 %v1256
    %3111 = vmatpush.bf16.msra.mxu0 %v1248
    %3112 = vmatpush.bf16.msra.mxu0 %v1240
    %3113 = vmatpush.bf16.msra.mxu0 %v1232
    %3114 = vmatpush.bf16.msra.mxu0 %v1224
    %3115 = vmatmul.bf16.gmra.mxu0 %v3093
    %v3116 = vpop.f32.mrf.mxu0
    %v3117 = vadd.f32 0.0, %v3116
    %v3118 = vpop.f32.mrf.mxu0
    %3119 = vdwg.mxu0
    %3120 = vmatpush.bf16.msra.mxu0 %v1281
    %3121 = vmatpush.bf16.msra.mxu0 %v1273
    %3122 = vmatpush.bf16.msra.mxu0 %v1265
    %3123 = vmatpush.bf16.msra.mxu0 %v1257
    %3124 = vmatpush.bf16.msra.mxu0 %v1249
    %3125 = vmatpush.bf16.msra.mxu0 %v1241
    %3126 = vmatpush.bf16.msra.mxu0 %v1233
    %3127 = vmatpush.bf16.msra.mxu0 %v1225
    %3128 = vmatmul.bf16.gmra.mxu0 %v3093
    %v3129 = vpop.f32.mrf.mxu0
    %v3130 = vadd.f32 0.0, %v3129
    %v3131 = vpop.f32.mrf.mxu0
    %3132 = vdwg.mxu0
    %3133 = vmatpush.bf16.msra.mxu0 %v1282
    %3134 = vmatpush.bf16.msra.mxu0 %v1274
    %3135 = vmatpush.bf16.msra.mxu0 %v1266
    %3136 = vmatpush.bf16.msra.mxu0 %v1258
    %3137 = vmatpush.bf16.msra.mxu0 %v1250
    %3138 = vmatpush.bf16.msra.mxu0 %v1242
    %3139 = vmatpush.bf16.msra.mxu0 %v1234
    %3140 = vmatpush.bf16.msra.mxu0 %v1226
    %3141 = vmatmul.bf16.gmra.mxu0 %v3093
    %v3142 = vpop.f32.mrf.mxu0
    %v3143 = vadd.f32 0.0, %v3142
    %v3144 = vpop.f32.mrf.mxu0
    %3145 = vdwg.mxu0
    %3146 = vmatpush.bf16.msra.mxu0 %v1283
    %3147 = vmatpush.bf16.msra.mxu0 %v1275
    %3148 = vmatpush.bf16.msra.mxu0 %v1267
    %3149 = vmatpush.bf16.msra.mxu0 %v1259
    %3150 = vmatpush.bf16.msra.mxu0 %v1251
    %3151 = vmatpush.bf16.msra.mxu0 %v1243
    %3152 = vmatpush.bf16.msra.mxu0 %v1235
    %3153 = vmatpush.bf16.msra.mxu0 %v1227
    %3154 = vmatmul.bf16.gmra.mxu0 %v3093
    %v3155 = vpop.f32.mrf.mxu0
    %v3156 = vpop.f32.mrf.mxu0
    %v3157 = vadd.f32 0.0, %v3156
    %3158 = vdwg.mxu0
    %3159 = vmatpush.bf16.msra.mxu0 %v1284
    %3160 = vmatpush.bf16.msra.mxu0 %v1276
    %3161 = vmatpush.bf16.msra.mxu0 %v1268
    %3162 = vmatpush.bf16.msra.mxu0 %v1260
    %3163 = vmatpush.bf16.msra.mxu0 %v1252
    %3164 = vmatpush.bf16.msra.mxu0 %v1244
    %3165 = vmatpush.bf16.msra.mxu0 %v1236
    %3166 = vmatpush.bf16.msra.mxu0 %v1228
    %3167 = vmatmul.bf16.gmra.mxu0 %v3093
    %v3168 = vpop.f32.mrf.mxu0
    %v3169 = vpop.f32.mrf.mxu0
    %v3170 = vadd.f32 0.0, %v3169
    %3171 = vdwg.mxu0
    %3172 = vmatpush.bf16.msra.mxu0 %v1285
    %3173 = vmatpush.bf16.msra.mxu0 %v1277
    %3174 = vmatpush.bf16.msra.mxu0 %v1269
    %3175 = vmatpush.bf16.msra.mxu0 %v1261
    %3176 = vmatpush.bf16.msra.mxu0 %v1253
    %3177 = vmatpush.bf16.msra.mxu0 %v1245
    %3178 = vmatpush.bf16.msra.mxu0 %v1237
    %3179 = vmatpush.bf16.msra.mxu0 %v1229
    %3180 = vmatmul.bf16.gmra.mxu0 %v3093
    %v3181 = vpop.f32.mrf.mxu0
    %v3182 = vpop.f32.mrf.mxu0
    %v3183 = vadd.f32 0.0, %v3182
    %3184 = vdwg.mxu0
    %3185 = vmatpush.bf16.msra.mxu0 %v1286
    %3186 = vmatpush.bf16.msra.mxu0 %v1278
    %3187 = vmatpush.bf16.msra.mxu0 %v1270
    %3188 = vmatpush.bf16.msra.mxu0 %v1262
    %3189 = vmatpush.bf16.msra.mxu0 %v1254
    %3190 = vmatpush.bf16.msra.mxu0 %v1246
    %3191 = vmatpush.bf16.msra.mxu0 %v1238
    %3192 = vmatpush.bf16.msra.mxu0 %v1230
    %3193 = vmatmul.bf16.gmra.mxu0 %v3093
    %v3194 = vpop.f32.mrf.mxu0
    %v3195 = vpop.f32.mrf.mxu0
    %v3196 = vadd.f32 0.0, %v3195
    %3197 = vdwg.mxu0
    %v3198 = vld [vmem:[#allocation2 + $0xe0] sm:$0xff]
    %v3199 = vld [vmem:[#allocation2 + $0xe8] sm:$0xff]
    %v3200 = vld [vmem:[#allocation2 + $0xf0] sm:$0xff]
    %v3201 = vld [vmem:[#allocation2 + $0xf8] sm:$0xff]
    %v3202 = vadd.f32 %v3198, %v3104
    %v3203 = vadd.f32 %v3199, %v3117
    %v3204 = vadd.f32 %v3200, %v3130
    %v3205 = vadd.f32 %v3201, %v3143
    %v3206 = vld [vmem:[#allocation3 + $0xe0] sm:$0xff]
    %v3207 = vld [vmem:[#allocation3 + $0xe8] sm:$0xff]
    %v3208 = vld [vmem:[#allocation3 + $0xf0] sm:$0xff]
    %v3209 = vld [vmem:[#allocation3 + $0xf8] sm:$0xff]
    %v3210 = vadd.f32 %v3206, %v3157
    %v3211 = vadd.f32 %v3207, %v3170
    %v3212 = vadd.f32 %v3208, %v3183
    %v3213 = vadd.f32 %v3209, %v3196
    %v3214 = vxor.u32 %v3202, 2147483648
    %v3215 = vmul.f32 %v3214, 1.442695
    %v3216 = vpow.pop %v3215
    %v3217 = vadd.f32 %v3216, 1.0
    %v3218 = vrcp.pop %v3217
    %v3219 = vmul.f32 %v3217, %v3218
    %v3220 = vsub.f32 1.0, %v3219
    %v3221 = vmul.f32 %v3218, %v3220
    %v3222 = vadd.f32 %v3218, %v3221
    %vm3223 = vweird.f32 %v3217
    %vm3224 = vweird.f32 %v3218
    %vm3225 = vmor %vm3223, %vm3224
    %v3226 = vsel %vm3225, %v3218, %v3222
    %v3227 = vand.u32 2147483647, %v3217
    %vm3228 = vcmp.eq.f32.partialorder %v3227, 8.507059e+37
    %v3229 = vand.u32 %v3217, 2147483648
    %v3230 = vor.u32 1.1754944e-38, %v3229
    %v3231 = vsel %vm3228, %v3230, %v3226
    %v3232 = vmul.f32 1.0, %v3231
    %v3233 = vxor.u32 %v3203, 2147483648
    %v3234 = vmul.f32 %v3233, 1.442695
    %v3235 = vpow.pop %v3234
    %v3236 = vadd.f32 %v3235, 1.0
    %v3237 = vrcp.pop %v3236
    %v3238 = vmul.f32 %v3236, %v3237
    %v3239 = vsub.f32 1.0, %v3238
    %v3240 = vmul.f32 %v3237, %v3239
    %v3241 = vadd.f32 %v3237, %v3240
    %vm3242 = vweird.f32 %v3236
    %vm3243 = vweird.f32 %v3237
    %vm3244 = vmor %vm3242, %vm3243
    %v3245 = vsel %vm3244, %v3237, %v3241
    %v3246 = vand.u32 2147483647, %v3236
    %vm3247 = vcmp.eq.f32.partialorder %v3246, 8.507059e+37
    %v3248 = vand.u32 %v3236, 2147483648
    %v3249 = vor.u32 1.1754944e-38, %v3248
    %v3250 = vsel %vm3247, %v3249, %v3245
    %v3251 = vmul.f32 1.0, %v3250
    %v3252 = vtanh.pop %v3204
    %v3253 = vxor.u32 %v3205, 2147483648
    %v3254 = vmul.f32 %v3253, 1.442695
    %v3255 = vpow.pop %v3254
    %v3256 = vadd.f32 %v3255, 1.0
    %v3257 = vrcp.pop %v3256
    %v3258 = vmul.f32 %v3256, %v3257
    %v3259 = vsub.f32 1.0, %v3258
    %v3260 = vmul.f32 %v3257, %v3259
    %v3261 = vadd.f32 %v3257, %v3260
    %vm3262 = vweird.f32 %v3256
    %vm3263 = vweird.f32 %v3257
    %vm3264 = vmor %vm3262, %vm3263
    %v3265 = vsel %vm3264, %v3257, %v3261
    %v3266 = vand.u32 2147483647, %v3256
    %vm3267 = vcmp.eq.f32.partialorder %v3266, 8.507059e+37
    %v3268 = vand.u32 %v3256, 2147483648
    %v3269 = vor.u32 1.1754944e-38, %v3268
    %v3270 = vsel %vm3267, %v3269, %v3265
    %v3271 = vmul.f32 1.0, %v3270
    %v3272 = vmul.f32 %v3251, %v3025
    %v3273 = vmul.f32 %v3232, %v3252
    %v3274 = vadd.f32 %v3272, %v3273
    %v3275 = vtanh.pop %v3274
    %v3276 = vmul.f32 %v3271, %v3275
    %v3277 = vxor.u32 %v3210, 2147483648
    %v3278 = vmul.f32 %v3277, 1.442695
    %v3279 = vpow.pop %v3278
    %v3280 = vadd.f32 %v3279, 1.0
    %v3281 = vrcp.pop %v3280
    %v3282 = vmul.f32 %v3280, %v3281
    %v3283 = vsub.f32 1.0, %v3282
    %v3284 = vmul.f32 %v3281, %v3283
    %v3285 = vadd.f32 %v3281, %v3284
    %vm3286 = vweird.f32 %v3280
    %vm3287 = vweird.f32 %v3281
    %vm3288 = vmor %vm3286, %vm3287
    %v3289 = vsel %vm3288, %v3281, %v3285
    %v3290 = vand.u32 2147483647, %v3280
    %vm3291 = vcmp.eq.f32.partialorder %v3290, 8.507059e+37
    %v3292 = vand.u32 %v3280, 2147483648
    %v3293 = vor.u32 1.1754944e-38, %v3292
    %v3294 = vsel %vm3291, %v3293, %v3289
    %v3295 = vmul.f32 1.0, %v3294
    %v3296 = vxor.u32 %v3211, 2147483648
    %v3297 = vmul.f32 %v3296, 1.442695
    %v3298 = vpow.pop %v3297
    %v3299 = vadd.f32 %v3298, 1.0
    %v3300 = vrcp.pop %v3299
    %v3301 = vmul.f32 %v3299, %v3300
    %v3302 = vsub.f32 1.0, %v3301
    %v3303 = vmul.f32 %v3300, %v3302
    %v3304 = vadd.f32 %v3300, %v3303
    %vm3305 = vweird.f32 %v3299
    %vm3306 = vweird.f32 %v3300
    %vm3307 = vmor %vm3305, %vm3306
    %v3308 = vsel %vm3307, %v3300, %v3304
    %v3309 = vand.u32 2147483647, %v3299
    %vm3310 = vcmp.eq.f32.partialorder %v3309, 8.507059e+37
    %v3311 = vand.u32 %v3299, 2147483648
    %v3312 = vor.u32 1.1754944e-38, %v3311
    %v3313 = vsel %vm3310, %v3312, %v3308
    %v3314 = vmul.f32 1.0, %v3313
    %v3315 = vtanh.pop %v3212
    %v3316 = vxor.u32 %v3213, 2147483648
    %v3317 = vmul.f32 %v3316, 1.442695
    %v3318 = vpow.pop %v3317
    %v3319 = vadd.f32 %v3318, 1.0
    %v3320 = vrcp.pop %v3319
    %v3321 = vmul.f32 %v3319, %v3320
    %v3322 = vsub.f32 1.0, %v3321
    %v3323 = vmul.f32 %v3320, %v3322
    %v3324 = vadd.f32 %v3320, %v3323
    %vm3325 = vweird.f32 %v3319
    %vm3326 = vweird.f32 %v3320
    %vm3327 = vmor %vm3325, %vm3326
    %v3328 = vsel %vm3327, %v3320, %v3324
    %v3329 = vand.u32 2147483647, %v3319
    %vm3330 = vcmp.eq.f32.partialorder %v3329, 8.507059e+37
    %v3331 = vand.u32 %v3319, 2147483648
    %v3332 = vor.u32 1.1754944e-38, %v3331
    %v3333 = vsel %vm3330, %v3332, %v3328
    %v3334 = vmul.f32 1.0, %v3333
    %v3335 = vmul.f32 %v3314, %v3088
    %v3336 = vmul.f32 %v3295, %v3315
    %v3337 = vadd.f32 %v3335, %v3336
    %v3338 = vtanh.pop %v3337
    %v3339 = vmul.f32 %v3334, %v3338
    %v3340 = vadd.f32 %v3091, %v3276
    %v3341 = vadd.f32 %v3092, %v3339
    %v3342 = vpack.c.bf16 %v3339, %v3339
    %3343 = vmatpush.bf16.msra.mxu0 %v1283
    %3344 = vmatpush.bf16.msra.mxu0 %v1275
    %3345 = vmatpush.bf16.msra.mxu0 %v1267
    %3346 = vmatpush.bf16.msra.mxu0 %v1259
    %3347 = vmatpush.bf16.msra.mxu0 %v1251
    %3348 = vmatpush.bf16.msra.mxu0 %v1243
    %3349 = vmatpush.bf16.msra.mxu0 %v1235
    %3350 = vmatpush.bf16.msra.mxu0 %v1227
    %3351 = vmatmul.bf16.gmra.mxu0 %v3342
    %v3352 = vpop.f32.mrf.mxu0
    %v3353 = vadd.f32 0.0, %v3352
    %v3354 = vpop.f32.mrf.mxu0
    %3355 = vdwg.mxu0
    %3356 = vmatpush.bf16.msra.mxu0 %v1284
    %3357 = vmatpush.bf16.msra.mxu0 %v1276
    %3358 = vmatpush.bf16.msra.mxu0 %v1268
    %3359 = vmatpush.bf16.msra.mxu0 %v1260
    %3360 = vmatpush.bf16.msra.mxu0 %v1252
    %3361 = vmatpush.bf16.msra.mxu0 %v1244
    %3362 = vmatpush.bf16.msra.mxu0 %v1236
    %3363 = vmatpush.bf16.msra.mxu0 %v1228
    %3364 = vmatmul.bf16.gmra.mxu0 %v3342
    %v3365 = vpop.f32.mrf.mxu0
    %v3366 = vadd.f32 0.0, %v3365
    %v3367 = vpop.f32.mrf.mxu0
    %3368 = vdwg.mxu0
    %3369 = vmatpush.bf16.msra.mxu0 %v1285
    %3370 = vmatpush.bf16.msra.mxu0 %v1277
    %3371 = vmatpush.bf16.msra.mxu0 %v1269
    %3372 = vmatpush.bf16.msra.mxu0 %v1261
    %3373 = vmatpush.bf16.msra.mxu0 %v1253
    %3374 = vmatpush.bf16.msra.mxu0 %v1245
    %3375 = vmatpush.bf16.msra.mxu0 %v1237
    %3376 = vmatpush.bf16.msra.mxu0 %v1229
    %3377 = vmatmul.bf16.gmra.mxu0 %v3342
    %v3378 = vpop.f32.mrf.mxu0
    %v3379 = vadd.f32 0.0, %v3378
    %v3380 = vpop.f32.mrf.mxu0
    %3381 = vdwg.mxu0
    %3382 = vmatpush.bf16.msra.mxu0 %v1286
    %3383 = vmatpush.bf16.msra.mxu0 %v1278
    %3384 = vmatpush.bf16.msra.mxu0 %v1270
    %3385 = vmatpush.bf16.msra.mxu0 %v1262
    %3386 = vmatpush.bf16.msra.mxu0 %v1254
    %3387 = vmatpush.bf16.msra.mxu0 %v1246
    %3388 = vmatpush.bf16.msra.mxu0 %v1238
    %3389 = vmatpush.bf16.msra.mxu0 %v1230
    %3390 = vmatmul.bf16.gmra.mxu0 %v3342
    %v3391 = vpop.f32.mrf.mxu0
    %v3392 = vadd.f32 0.0, %v3391
    %v3393 = vpop.f32.mrf.mxu0
    %3394 = vdwg.mxu0
    %v3395 = vld [vmem:[#allocation3 + $0x100] sm:$0xff]
    %v3396 = vld [vmem:[#allocation3 + $0x108] sm:$0xff]
    %v3397 = vld [vmem:[#allocation3 + $0x110] sm:$0xff]
    %v3398 = vld [vmem:[#allocation3 + $0x118] sm:$0xff]
    %v3399 = vadd.f32 %v3395, %v3353
    %v3400 = vadd.f32 %v3396, %v3366
    %v3401 = vadd.f32 %v3397, %v3379
    %v3402 = vadd.f32 %v3398, %v3392
    %v3403 = vxor.u32 %v3399, 2147483648
    %v3404 = vmul.f32 %v3403, 1.442695
    %v3405 = vpow.pop %v3404
    %v3406 = vadd.f32 %v3405, 1.0
    %v3407 = vrcp.pop %v3406
    %v3408 = vmul.f32 %v3406, %v3407
    %v3409 = vsub.f32 1.0, %v3408
    %v3410 = vmul.f32 %v3407, %v3409
    %v3411 = vadd.f32 %v3407, %v3410
    %vm3412 = vweird.f32 %v3406
    %vm3413 = vweird.f32 %v3407
    %vm3414 = vmor %vm3412, %vm3413
    %v3415 = vsel %vm3414, %v3407, %v3411
    %v3416 = vand.u32 2147483647, %v3406
    %vm3417 = vcmp.eq.f32.partialorder %v3416, 8.507059e+37
    %v3418 = vand.u32 %v3406, 2147483648
    %v3419 = vor.u32 1.1754944e-38, %v3418
    %v3420 = vsel %vm3417, %v3419, %v3415
    %v3421 = vmul.f32 1.0, %v3420
    %v3422 = vxor.u32 %v3400, 2147483648
    %v3423 = vmul.f32 %v3422, 1.442695
    %v3424 = vpow.pop %v3423
    %v3425 = vadd.f32 %v3424, 1.0
    %v3426 = vrcp.pop %v3425
    %v3427 = vmul.f32 %v3425, %v3426
    %v3428 = vsub.f32 1.0, %v3427
    %v3429 = vmul.f32 %v3426, %v3428
    %v3430 = vadd.f32 %v3426, %v3429
    %vm3431 = vweird.f32 %v3425
    %vm3432 = vweird.f32 %v3426
    %vm3433 = vmor %vm3431, %vm3432
    %v3434 = vsel %vm3433, %v3426, %v3430
    %v3435 = vand.u32 2147483647, %v3425
    %vm3436 = vcmp.eq.f32.partialorder %v3435, 8.507059e+37
    %v3437 = vand.u32 %v3425, 2147483648
    %v3438 = vor.u32 1.1754944e-38, %v3437
    %v3439 = vsel %vm3436, %v3438, %v3434
    %v3440 = vmul.f32 1.0, %v3439
    %v3441 = vtanh.pop %v3401
    %v3442 = vxor.u32 %v3402, 2147483648
    %v3443 = vmul.f32 %v3442, 1.442695
    %v3444 = vpow.pop %v3443
    %v3445 = vadd.f32 %v3444, 1.0
    %v3446 = vrcp.pop %v3445
    %v3447 = vmul.f32 %v3445, %v3446
    %v3448 = vsub.f32 1.0, %v3447
    %v3449 = vmul.f32 %v3446, %v3448
    %v3450 = vadd.f32 %v3446, %v3449
    %vm3451 = vweird.f32 %v3445
    %vm3452 = vweird.f32 %v3446
    %vm3453 = vmor %vm3451, %vm3452
    %v3454 = vsel %vm3453, %v3446, %v3450
    %v3455 = vand.u32 2147483647, %v3445
    %vm3456 = vcmp.eq.f32.partialorder %v3455, 8.507059e+37
    %v3457 = vand.u32 %v3445, 2147483648
    %v3458 = vor.u32 1.1754944e-38, %v3457
    %v3459 = vsel %vm3456, %v3458, %v3454
    %v3460 = vmul.f32 1.0, %v3459
    %v3461 = vmul.f32 %v3440, %v3337
    %v3462 = vmul.f32 %v3421, %v3441
    %v3463 = vadd.f32 %v3461, %v3462
    %v3464 = vtanh.pop %v3463
    %v3465 = vmul.f32 %v3460, %v3464
    %v3466 = vadd.f32 %v3341, %v3465
    %v3467 = vpack.c.bf16 %v3465, %v3465
    %3468 = vmatpush.bf16.msra.mxu0 %v1283
    %3469 = vmatpush.bf16.msra.mxu0 %v1275
    %3470 = vmatpush.bf16.msra.mxu0 %v1267
    %3471 = vmatpush.bf16.msra.mxu0 %v1259
    %3472 = vmatpush.bf16.msra.mxu0 %v1251
    %3473 = vmatpush.bf16.msra.mxu0 %v1243
    %3474 = vmatpush.bf16.msra.mxu0 %v1235
    %3475 = vmatpush.bf16.msra.mxu0 %v1227
    %3476 = vmatmul.bf16.gmra.mxu0 %v3467
    %v3477 = vpop.f32.mrf.mxu0
    %v3478 = vadd.f32 0.0, %v3477
    %v3479 = vpop.f32.mrf.mxu0
    %3480 = vdwg.mxu0
    %3481 = vmatpush.bf16.msra.mxu0 %v1284
    %3482 = vmatpush.bf16.msra.mxu0 %v1276
    %3483 = vmatpush.bf16.msra.mxu0 %v1268
    %3484 = vmatpush.bf16.msra.mxu0 %v1260
    %3485 = vmatpush.bf16.msra.mxu0 %v1252
    %3486 = vmatpush.bf16.msra.mxu0 %v1244
    %3487 = vmatpush.bf16.msra.mxu0 %v1236
    %3488 = vmatpush.bf16.msra.mxu0 %v1228
    %3489 = vmatmul.bf16.gmra.mxu0 %v3467
    %v3490 = vpop.f32.mrf.mxu0
    %v3491 = vadd.f32 0.0, %v3490
    %v3492 = vpop.f32.mrf.mxu0
    %3493 = vdwg.mxu0
    %3494 = vmatpush.bf16.msra.mxu0 %v1285
    %3495 = vmatpush.bf16.msra.mxu0 %v1277
    %3496 = vmatpush.bf16.msra.mxu0 %v1269
    %3497 = vmatpush.bf16.msra.mxu0 %v1261
    %3498 = vmatpush.bf16.msra.mxu0 %v1253
    %3499 = vmatpush.bf16.msra.mxu0 %v1245
    %3500 = vmatpush.bf16.msra.mxu0 %v1237
    %3501 = vmatpush.bf16.msra.mxu0 %v1229
    %3502 = vmatmul.bf16.gmra.mxu0 %v3467
    %v3503 = vpop.f32.mrf.mxu0
    %v3504 = vadd.f32 0.0, %v3503
    %v3505 = vpop.f32.mrf.mxu0
    %3506 = vdwg.mxu0
    %3507 = vmatpush.bf16.msra.mxu0 %v1286
    %3508 = vmatpush.bf16.msra.mxu0 %v1278
    %3509 = vmatpush.bf16.msra.mxu0 %v1270
    %3510 = vmatpush.bf16.msra.mxu0 %v1262
    %3511 = vmatpush.bf16.msra.mxu0 %v1254
    %3512 = vmatpush.bf16.msra.mxu0 %v1246
    %3513 = vmatpush.bf16.msra.mxu0 %v1238
    %3514 = vmatpush.bf16.msra.mxu0 %v1230
    %3515 = vmatmul.bf16.gmra.mxu0 %v3467
    %v3516 = vpop.f32.mrf.mxu0
    %v3517 = vadd.f32 0.0, %v3516
    %v3518 = vpop.f32.mrf.mxu0
    %3519 = vdwg.mxu0
    %v3520 = vld [vmem:[#allocation3 + $0x120] sm:$0xff]
    %v3521 = vld [vmem:[#allocation3 + $0x128] sm:$0xff]
    %v3522 = vld [vmem:[#allocation3 + $0x130] sm:$0xff]
    %v3523 = vld [vmem:[#allocation3 + $0x138] sm:$0xff]
    %v3524 = vadd.f32 %v3520, %v3478
    %v3525 = vadd.f32 %v3521, %v3491
    %v3526 = vadd.f32 %v3522, %v3504
    %v3527 = vadd.f32 %v3523, %v3517
    %v3528 = vxor.u32 %v3524, 2147483648
    %v3529 = vmul.f32 %v3528, 1.442695
    %v3530 = vpow.pop %v3529
    %v3531 = vadd.f32 %v3530, 1.0
    %v3532 = vrcp.pop %v3531
    %v3533 = vmul.f32 %v3531, %v3532
    %v3534 = vsub.f32 1.0, %v3533
    %v3535 = vmul.f32 %v3532, %v3534
    %v3536 = vadd.f32 %v3532, %v3535
    %vm3537 = vweird.f32 %v3531
    %vm3538 = vweird.f32 %v3532
    %vm3539 = vmor %vm3537, %vm3538
    %v3540 = vsel %vm3539, %v3532, %v3536
    %v3541 = vand.u32 2147483647, %v3531
    %vm3542 = vcmp.eq.f32.partialorder %v3541, 8.507059e+37
    %v3543 = vand.u32 %v3531, 2147483648
    %v3544 = vor.u32 1.1754944e-38, %v3543
    %v3545 = vsel %vm3542, %v3544, %v3540
    %v3546 = vmul.f32 1.0, %v3545
    %v3547 = vxor.u32 %v3525, 2147483648
    %v3548 = vmul.f32 %v3547, 1.442695
    %v3549 = vpow.pop %v3548
    %v3550 = vadd.f32 %v3549, 1.0
    %v3551 = vrcp.pop %v3550
    %v3552 = vmul.f32 %v3550, %v3551
    %v3553 = vsub.f32 1.0, %v3552
    %v3554 = vmul.f32 %v3551, %v3553
    %v3555 = vadd.f32 %v3551, %v3554
    %vm3556 = vweird.f32 %v3550
    %vm3557 = vweird.f32 %v3551
    %vm3558 = vmor %vm3556, %vm3557
    %v3559 = vsel %vm3558, %v3551, %v3555
    %v3560 = vand.u32 2147483647, %v3550
    %vm3561 = vcmp.eq.f32.partialorder %v3560, 8.507059e+37
    %v3562 = vand.u32 %v3550, 2147483648
    %v3563 = vor.u32 1.1754944e-38, %v3562
    %v3564 = vsel %vm3561, %v3563, %v3559
    %v3565 = vmul.f32 1.0, %v3564
    %v3566 = vtanh.pop %v3526
    %v3567 = vxor.u32 %v3527, 2147483648
    %v3568 = vmul.f32 %v3567, 1.442695
    %v3569 = vpow.pop %v3568
    %v3570 = vadd.f32 %v3569, 1.0
    %v3571 = vrcp.pop %v3570
    %v3572 = vmul.f32 %v3570, %v3571
    %v3573 = vsub.f32 1.0, %v3572
    %v3574 = vmul.f32 %v3571, %v3573
    %v3575 = vadd.f32 %v3571, %v3574
    %vm3576 = vweird.f32 %v3570
    %vm3577 = vweird.f32 %v3571
    %vm3578 = vmor %vm3576, %vm3577
    %v3579 = vsel %vm3578, %v3571, %v3575
    %v3580 = vand.u32 2147483647, %v3570
    %vm3581 = vcmp.eq.f32.partialorder %v3580, 8.507059e+37
    %v3582 = vand.u32 %v3570, 2147483648
    %v3583 = vor.u32 1.1754944e-38, %v3582
    %v3584 = vsel %vm3581, %v3583, %v3579
    %v3585 = vmul.f32 1.0, %v3584
    %v3586 = vmul.f32 %v3565, %v3463
    %v3587 = vmul.f32 %v3546, %v3566
    %v3588 = vadd.f32 %v3586, %v3587
    %v3589 = vtanh.pop %v3588
    %v3590 = vmul.f32 %v3585, %v3589
    %v3591 = vadd.f32 %v3466, %v3590
    %v3592 = vpack.c.bf16 %v3590, %v3590
    %3593 = vmatpush.bf16.msra.mxu0 %v1283
    %3594 = vmatpush.bf16.msra.mxu0 %v1275
    %3595 = vmatpush.bf16.msra.mxu0 %v1267
    %3596 = vmatpush.bf16.msra.mxu0 %v1259
    %3597 = vmatpush.bf16.msra.mxu0 %v1251
    %3598 = vmatpush.bf16.msra.mxu0 %v1243
    %3599 = vmatpush.bf16.msra.mxu0 %v1235
    %3600 = vmatpush.bf16.msra.mxu0 %v1227
    %3601 = vmatmul.bf16.gmra.mxu0 %v3592
    %v3602 = vpop.f32.mrf.mxu0
    %v3603 = vadd.f32 0.0, %v3602
    %v3604 = vpop.f32.mrf.mxu0
    %3605 = vdwg.mxu0
    %3606 = vmatpush.bf16.msra.mxu0 %v1284
    %3607 = vmatpush.bf16.msra.mxu0 %v1276
    %3608 = vmatpush.bf16.msra.mxu0 %v1268
    %3609 = vmatpush.bf16.msra.mxu0 %v1260
    %3610 = vmatpush.bf16.msra.mxu0 %v1252
    %3611 = vmatpush.bf16.msra.mxu0 %v1244
    %3612 = vmatpush.bf16.msra.mxu0 %v1236
    %3613 = vmatpush.bf16.msra.mxu0 %v1228
    %3614 = vmatmul.bf16.gmra.mxu0 %v3592
    %v3615 = vpop.f32.mrf.mxu0
    %v3616 = vadd.f32 0.0, %v3615
    %v3617 = vpop.f32.mrf.mxu0
    %3618 = vdwg.mxu0
    %3619 = vmatpush.bf16.msra.mxu0 %v1285
    %3620 = vmatpush.bf16.msra.mxu0 %v1277
    %3621 = vmatpush.bf16.msra.mxu0 %v1269
    %3622 = vmatpush.bf16.msra.mxu0 %v1261
    %3623 = vmatpush.bf16.msra.mxu0 %v1253
    %3624 = vmatpush.bf16.msra.mxu0 %v1245
    %3625 = vmatpush.bf16.msra.mxu0 %v1237
    %3626 = vmatpush.bf16.msra.mxu0 %v1229
    %3627 = vmatmul.bf16.gmra.mxu0 %v3592
    %v3628 = vpop.f32.mrf.mxu0
    %v3629 = vadd.f32 0.0, %v3628
    %v3630 = vpop.f32.mrf.mxu0
    %3631 = vdwg.mxu0
    %3632 = vmatpush.bf16.msra.mxu0 %v1286
    %3633 = vmatpush.bf16.msra.mxu0 %v1278
    %3634 = vmatpush.bf16.msra.mxu0 %v1270
    %3635 = vmatpush.bf16.msra.mxu0 %v1262
    %3636 = vmatpush.bf16.msra.mxu0 %v1254
    %3637 = vmatpush.bf16.msra.mxu0 %v1246
    %3638 = vmatpush.bf16.msra.mxu0 %v1238
    %3639 = vmatpush.bf16.msra.mxu0 %v1230
    %3640 = vmatmul.bf16.gmra.mxu0 %v3592
    %v3641 = vpop.f32.mrf.mxu0
    %v3642 = vadd.f32 0.0, %v3641
    %v3643 = vpop.f32.mrf.mxu0
    %3644 = vdwg.mxu0
    %v3645 = vld [vmem:[#allocation3 + $0x140] sm:$0xff]
    %v3646 = vld [vmem:[#allocation3 + $0x148] sm:$0xff]
    %v3647 = vld [vmem:[#allocation3 + $0x150] sm:$0xff]
    %v3648 = vld [vmem:[#allocation3 + $0x158] sm:$0xff]
    %v3649 = vadd.f32 %v3645, %v3603
    %v3650 = vadd.f32 %v3646, %v3616
    %v3651 = vadd.f32 %v3647, %v3629
    %v3652 = vadd.f32 %v3648, %v3642
    %v3653 = vxor.u32 %v3649, 2147483648
    %v3654 = vmul.f32 %v3653, 1.442695
    %v3655 = vpow.pop %v3654
    %v3656 = vadd.f32 %v3655, 1.0
    %v3657 = vrcp.pop %v3656
    %v3658 = vmul.f32 %v3656, %v3657
    %v3659 = vsub.f32 1.0, %v3658
    %v3660 = vmul.f32 %v3657, %v3659
    %v3661 = vadd.f32 %v3657, %v3660
    %vm3662 = vweird.f32 %v3656
    %vm3663 = vweird.f32 %v3657
    %vm3664 = vmor %vm3662, %vm3663
    %v3665 = vsel %vm3664, %v3657, %v3661
    %v3666 = vand.u32 2147483647, %v3656
    %vm3667 = vcmp.eq.f32.partialorder %v3666, 8.507059e+37
    %v3668 = vand.u32 %v3656, 2147483648
    %v3669 = vor.u32 1.1754944e-38, %v3668
    %v3670 = vsel %vm3667, %v3669, %v3665
    %v3671 = vmul.f32 1.0, %v3670
    %v3672 = vxor.u32 %v3650, 2147483648
    %v3673 = vmul.f32 %v3672, 1.442695
    %v3674 = vpow.pop %v3673
    %v3675 = vadd.f32 %v3674, 1.0
    %v3676 = vrcp.pop %v3675
    %v3677 = vmul.f32 %v3675, %v3676
    %v3678 = vsub.f32 1.0, %v3677
    %v3679 = vmul.f32 %v3676, %v3678
    %v3680 = vadd.f32 %v3676, %v3679
    %vm3681 = vweird.f32 %v3675
    %vm3682 = vweird.f32 %v3676
    %vm3683 = vmor %vm3681, %vm3682
    %v3684 = vsel %vm3683, %v3676, %v3680
    %v3685 = vand.u32 2147483647, %v3675
    %vm3686 = vcmp.eq.f32.partialorder %v3685, 8.507059e+37
    %v3687 = vand.u32 %v3675, 2147483648
    %v3688 = vor.u32 1.1754944e-38, %v3687
    %v3689 = vsel %vm3686, %v3688, %v3684
    %v3690 = vmul.f32 1.0, %v3689
    %v3691 = vtanh.pop %v3651
    %v3692 = vxor.u32 %v3652, 2147483648
    %v3693 = vmul.f32 %v3692, 1.442695
    %v3694 = vpow.pop %v3693
    %v3695 = vadd.f32 %v3694, 1.0
    %v3696 = vrcp.pop %v3695
    %v3697 = vmul.f32 %v3695, %v3696
    %v3698 = vsub.f32 1.0, %v3697
    %v3699 = vmul.f32 %v3696, %v3698
    %v3700 = vadd.f32 %v3696, %v3699
    %vm3701 = vweird.f32 %v3695
    %vm3702 = vweird.f32 %v3696
    %vm3703 = vmor %vm3701, %vm3702
    %v3704 = vsel %vm3703, %v3696, %v3700
    %v3705 = vand.u32 2147483647, %v3695
    %vm3706 = vcmp.eq.f32.partialorder %v3705, 8.507059e+37
    %v3707 = vand.u32 %v3695, 2147483648
    %v3708 = vor.u32 1.1754944e-38, %v3707
    %v3709 = vsel %vm3706, %v3708, %v3704
    %v3710 = vmul.f32 1.0, %v3709
    %v3711 = vmul.f32 %v3690, %v3588
    %v3712 = vmul.f32 %v3671, %v3691
    %v3713 = vadd.f32 %v3711, %v3712
    %v3714 = vtanh.pop %v3713
    %v3715 = vmul.f32 %v3710, %v3714
    %v3716 = vadd.f32 %v3591, %v3715
    %v3717 = vpack.c.bf16 %v3715, %v3715
    %3718 = vmatpush.bf16.msra.mxu0 %v1283
    %3719 = vmatpush.bf16.msra.mxu0 %v1275
    %3720 = vmatpush.bf16.msra.mxu0 %v1267
    %3721 = vmatpush.bf16.msra.mxu0 %v1259
    %3722 = vmatpush.bf16.msra.mxu0 %v1251
    %3723 = vmatpush.bf16.msra.mxu0 %v1243
    %3724 = vmatpush.bf16.msra.mxu0 %v1235
    %3725 = vmatpush.bf16.msra.mxu0 %v1227
    %3726 = vmatmul.bf16.gmra.mxu0 %v3717
    %v3727 = vpop.f32.mrf.mxu0
    %v3728 = vadd.f32 0.0, %v3727
    %v3729 = vpop.f32.mrf.mxu0
    %3730 = vdwg.mxu0
    %3731 = vmatpush.bf16.msra.mxu0 %v1284
    %3732 = vmatpush.bf16.msra.mxu0 %v1276
    %3733 = vmatpush.bf16.msra.mxu0 %v1268
    %3734 = vmatpush.bf16.msra.mxu0 %v1260
    %3735 = vmatpush.bf16.msra.mxu0 %v1252
    %3736 = vmatpush.bf16.msra.mxu0 %v1244
    %3737 = vmatpush.bf16.msra.mxu0 %v1236
    %3738 = vmatpush.bf16.msra.mxu0 %v1228
    %3739 = vmatmul.bf16.gmra.mxu0 %v3717
    %v3740 = vpop.f32.mrf.mxu0
    %v3741 = vadd.f32 0.0, %v3740
    %v3742 = vpop.f32.mrf.mxu0
    %3743 = vdwg.mxu0
    %3744 = vmatpush.bf16.msra.mxu0 %v1285
    %3745 = vmatpush.bf16.msra.mxu0 %v1277
    %3746 = vmatpush.bf16.msra.mxu0 %v1269
    %3747 = vmatpush.bf16.msra.mxu0 %v1261
    %3748 = vmatpush.bf16.msra.mxu0 %v1253
    %3749 = vmatpush.bf16.msra.mxu0 %v1245
    %3750 = vmatpush.bf16.msra.mxu0 %v1237
    %3751 = vmatpush.bf16.msra.mxu0 %v1229
    %3752 = vmatmul.bf16.gmra.mxu0 %v3717
    %v3753 = vpop.f32.mrf.mxu0
    %v3754 = vadd.f32 0.0, %v3753
    %v3755 = vpop.f32.mrf.mxu0
    %3756 = vdwg.mxu0
    %3757 = vmatpush.bf16.msra.mxu0 %v1286
    %3758 = vmatpush.bf16.msra.mxu0 %v1278
    %3759 = vmatpush.bf16.msra.mxu0 %v1270
    %3760 = vmatpush.bf16.msra.mxu0 %v1262
    %3761 = vmatpush.bf16.msra.mxu0 %v1254
    %3762 = vmatpush.bf16.msra.mxu0 %v1246
    %3763 = vmatpush.bf16.msra.mxu0 %v1238
    %3764 = vmatpush.bf16.msra.mxu0 %v1230
    %3765 = vmatmul.bf16.gmra.mxu0 %v3717
    %v3766 = vpop.f32.mrf.mxu0
    %v3767 = vadd.f32 0.0, %v3766
    %v3768 = vpop.f32.mrf.mxu0
    %3769 = vdwg.mxu0
    %v3770 = vld [vmem:[#allocation3 + $0x160] sm:$0xff]
    %v3771 = vld [vmem:[#allocation3 + $0x168] sm:$0xff]
    %v3772 = vld [vmem:[#allocation3 + $0x170] sm:$0xff]
    %v3773 = vld [vmem:[#allocation3 + $0x178] sm:$0xff]
    %v3774 = vadd.f32 %v3770, %v3728
    %v3775 = vadd.f32 %v3771, %v3741
    %v3776 = vadd.f32 %v3772, %v3754
    %v3777 = vadd.f32 %v3773, %v3767
    %v3778 = vxor.u32 %v3774, 2147483648
    %v3779 = vmul.f32 %v3778, 1.442695
    %v3780 = vpow.pop %v3779
    %v3781 = vadd.f32 %v3780, 1.0
    %v3782 = vrcp.pop %v3781
    %v3783 = vmul.f32 %v3781, %v3782
    %v3784 = vsub.f32 1.0, %v3783
    %v3785 = vmul.f32 %v3782, %v3784
    %v3786 = vadd.f32 %v3782, %v3785
    %vm3787 = vweird.f32 %v3781
    %vm3788 = vweird.f32 %v3782
    %vm3789 = vmor %vm3787, %vm3788
    %v3790 = vsel %vm3789, %v3782, %v3786
    %v3791 = vand.u32 2147483647, %v3781
    %vm3792 = vcmp.eq.f32.partialorder %v3791, 8.507059e+37
    %v3793 = vand.u32 %v3781, 2147483648
    %v3794 = vor.u32 1.1754944e-38, %v3793
    %v3795 = vsel %vm3792, %v3794, %v3790
    %v3796 = vmul.f32 1.0, %v3795
    %v3797 = vxor.u32 %v3775, 2147483648
    %v3798 = vmul.f32 %v3797, 1.442695
    %v3799 = vpow.pop %v3798
    %v3800 = vadd.f32 %v3799, 1.0
    %v3801 = vrcp.pop %v3800
    %v3802 = vmul.f32 %v3800, %v3801
    %v3803 = vsub.f32 1.0, %v3802
    %v3804 = vmul.f32 %v3801, %v3803
    %v3805 = vadd.f32 %v3801, %v3804
    %vm3806 = vweird.f32 %v3800
    %vm3807 = vweird.f32 %v3801
    %vm3808 = vmor %vm3806, %vm3807
    %v3809 = vsel %vm3808, %v3801, %v3805
    %v3810 = vand.u32 2147483647, %v3800
    %vm3811 = vcmp.eq.f32.partialorder %v3810, 8.507059e+37
    %v3812 = vand.u32 %v3800, 2147483648
    %v3813 = vor.u32 1.1754944e-38, %v3812
    %v3814 = vsel %vm3811, %v3813, %v3809
    %v3815 = vmul.f32 1.0, %v3814
    %v3816 = vtanh.pop %v3776
    %v3817 = vxor.u32 %v3777, 2147483648
    %v3818 = vmul.f32 %v3817, 1.442695
    %v3819 = vpow.pop %v3818
    %v3820 = vadd.f32 %v3819, 1.0
    %v3821 = vrcp.pop %v3820
    %v3822 = vmul.f32 %v3820, %v3821
    %v3823 = vsub.f32 1.0, %v3822
    %v3824 = vmul.f32 %v3821, %v3823
    %v3825 = vadd.f32 %v3821, %v3824
    %vm3826 = vweird.f32 %v3820
    %vm3827 = vweird.f32 %v3821
    %vm3828 = vmor %vm3826, %vm3827
    %v3829 = vsel %vm3828, %v3821, %v3825
    %v3830 = vand.u32 2147483647, %v3820
    %vm3831 = vcmp.eq.f32.partialorder %v3830, 8.507059e+37
    %v3832 = vand.u32 %v3820, 2147483648
    %v3833 = vor.u32 1.1754944e-38, %v3832
    %v3834 = vsel %vm3831, %v3833, %v3829
    %v3835 = vmul.f32 1.0, %v3834
    %v3836 = vmul.f32 %v3815, %v3713
    %v3837 = vmul.f32 %v3796, %v3816
    %v3838 = vadd.f32 %v3836, %v3837
    %v3839 = vtanh.pop %v3838
    %v3840 = vmul.f32 %v3835, %v3839
    %v3841 = vadd.f32 %v3716, %v3840
    %v3842 = vld [vmem:[%s5] sm:$0x1]
    %v3844 = vperm.slane %v3842, 0
    %v3846 = vmul.f32 %v3340, %v3844
    %3847 = vadd.xlane.f32.xlu0 %v3846
    %v3848 = vpop.xlane.xlu0 %3847
    %v3849 = vld [vmem:[%s6] sm:$0x1]
    %v3851 = vperm.slane %v3849, 0
    %v3853 = vmul.f32 %v3841, %v3851
    %3854 = vadd.xlane.f32.xlu0 %v3853
    %v3855 = vpop.xlane.xlu0 %3854
    %v3856 = vadd.f32 %v3848, %v3855
    %v3857 = vld [vmem:[#allocation6] sm:$0x1]
    %v3859 = vperm.slane %v3857, 0
    %v3861 = vadd.f32 %v3856, %v3859
    %vm3862 = vcmask 7168
    %3863 = vst.msk [vmem:[%s8] sm:$0xff] %vm3862, %v3861
    // Predicated region
    $region42: #{tpu_custom_call.1} parent=1 // pred_check
      _
    $region43: #{tpu_custom_call.1} parent=1 // pred_check_branch
      %3865 = sbr.rel (0) target = $region45
    $region44: #{tpu_custom_call.1} parent=1 // pred_region
      _
    $region45: #{tpu_custom_call.1} parent=1 // pred_fallthru
      _
    // Predicated region
    $region46: #{tpu_custom_call.1} parent=1 // pred_check
      _
    $region47: #{tpu_custom_call.1} parent=1 // pred_check_branch
      %3867 = sbr.rel (0) target = $region49
    $region48: #{tpu_custom_call.1} parent=1 // pred_region
      _
    $region49: #{tpu_custom_call.1} parent=1 // pred_fallthru
      _
    %3868 = vsyncpa [#allocation8], 1
    %3869 = vsyncpa [#allocation10], 1
  %3870 = vsyncmov [#allocation5]
  %s3871 = vpop.sfrf %3870
  %p3872 = scmp.eq.s32.totalorder %s3871, 0
  %p3873 = pneg %p3872
  %3875 = shalt.err (%p3873)

</llo_original>
